<compile_context>
chip_gen: v5e
topology: v5e:2x2
jax: 0.10.0
libtpu: 0.0.40
codegen_flags: <defaults>
</compile_context>

<pallas_src>
import numpy as np
import jax
import jax.numpy as jnp
from jax.experimental import pallas as pl
from jax.experimental.pallas import tpu as pltpu


# ----------------------------------------------------------------------------
# Tiled matmul kernel (bf16 operands -> MXU fast path, f32 accumulator)
# ----------------------------------------------------------------------------
def _matmul_kernel(a_ref, b_ref, o_ref, acc_ref):
    @pl.when(pl.program_id(2) == 0)
    def _():
        acc_ref[...] = jnp.zeros_like(acc_ref)

    acc_ref[...] += jnp.dot(a_ref[...], b_ref[...],
                            preferred_element_type=jnp.float32)

    @pl.when(pl.program_id(2) == pl.num_programs(2) - 1)
    def _():
        o_ref[...] = acc_ref[...].astype(o_ref.dtype)


def _pick_tile(d, cap=512):
    # Cap at 512 so the tile set fits the scoped VMEM of all generations
    # (v5e 16 MiB default, v7x 64 MiB physical).
    for t in (cap, 256, 128):
        if d % t == 0:
            return t
    return d  # small dim: block == full extent (always legal)


def matmul(a, b, out_dtype=None):
    M, K = a.shape
    K2, N = b.shape
    assert K == K2
    out_dtype = out_dtype or a.dtype
    tm, tn, tk = _pick_tile(M), _pick_tile(N), _pick_tile(K)
    assert M % tm == 0 and N % tn == 0 and K % tk == 0
    return pl.pallas_call(
        _matmul_kernel,
        out_shape=jax.ShapeDtypeStruct((M, N), out_dtype),
        grid_spec=pltpu.PrefetchScalarGridSpec(
            num_scalar_prefetch=0,
            grid=(M // tm, N // tn, K // tk),
            in_specs=[pl.BlockSpec((tm, tk), lambda i, j, k: (i, k)),
                      pl.BlockSpec((tk, tn), lambda i, j, k: (k, j))],
            out_specs=pl.BlockSpec((tm, tn), lambda i, j, k: (i, j)),
            scratch_shapes=[pltpu.VMEM((tm, tn), jnp.float32)]),
        compiler_params=pltpu.CompilerParams(
            dimension_semantics=("parallel", "parallel", "arbitrary")),
    )(a, b)


# ----------------------------------------------------------------------------
# Split-half RoPE kernel: rotate the q/k columns of the QKV projection output
# once, outside the O(S^2) attention loop.
# ----------------------------------------------------------------------------
def rope_split_half(qkv, cos, sin, *, n_rot_heads, head_dim, seq):
    """qkv: (B*S, N) flat projection output (q|k|v column blocks).
    Returns the rotated first n_rot_heads*head_dim columns.
    cos/sin: (seq, head_dim//2) f32 tables."""
    M, _ = qkv.shape
    D, hd2 = head_dim, head_dim // 2
    tm = _pick_tile(seq)
    assert seq % tm == 0 and M % seq == 0
    nsb = seq // tm  # seq blocks per batch element

    def kernel(x_ref, c_ref, s_ref, o_ref):
        x = x_ref[...].astype(jnp.float32)
        x1, x2 = x[:, :hd2], x[:, hd2:]
        c, s = c_ref[...], s_ref[...]
        o_ref[...] = jnp.concatenate(
            [x1 * c - x2 * s, x2 * c + x1 * s], axis=1).astype(o_ref.dtype)

    return pl.pallas_call(
        kernel,
        out_shape=jax.ShapeDtypeStruct((M, n_rot_heads * D), qkv.dtype),
        grid_spec=pltpu.PrefetchScalarGridSpec(
            num_scalar_prefetch=0,
            grid=(M // tm, n_rot_heads),
            in_specs=[pl.BlockSpec((tm, D), lambda i, j: (i, j)),
                      pl.BlockSpec((tm, hd2), lambda i, j: (i % nsb, 0)),
                      pl.BlockSpec((tm, hd2), lambda i, j: (i % nsb, 0))],
            out_specs=pl.BlockSpec((tm, D), lambda i, j: (i, j))),
        compiler_params=pltpu.CompilerParams(
            dimension_semantics=("parallel", "parallel")),
    )(qkv, cos, sin)


# ----------------------------------------------------------------------------
# Causal flash attention over the flat (B*S, features) buffers.
# Lower-triangle (qi, ki) grid via scalar prefetch; GQA via index_map.
# ----------------------------------------------------------------------------
def flash_attention_causal(qk_rot, qkv, *, bsz, seq, n_heads, n_kv_heads,
                           head_dim, block=256):
    M = bsz * seq
    H, Hkv, D = n_heads, n_kv_heads, head_dim
    hpg = H // Hkv
    blk = min(block, seq)
    assert seq % blk == 0
    nblk = seq // blk

    # lower-triangle (qi, ki) enumeration: fully-masked kv blocks are skipped
    qi_l, ki_l = zip(*[(qi, ki) for qi in range(nblk) for ki in range(qi + 1)])
    qi_tbl = jnp.asarray(np.asarray(qi_l, np.int32))
    ki_tbl = jnp.asarray(np.asarray(ki_l, np.int32))
    n_steps = len(qi_l)

    def kernel(qi_ref, ki_ref, q_ref, k_ref, v_ref, o_ref, m_sc, l_sc, acc_sc):
        t = pl.program_id(2)
        qi = qi_ref[t]
        ki = ki_ref[t]

        @pl.when(ki == 0)  # first kv block of this q row: reset accumulators
        def _():
            m_sc[...] = jnp.full(m_sc.shape, -jnp.inf, m_sc.dtype)
            l_sc[...] = jnp.zeros(l_sc.shape, l_sc.dtype)
            acc_sc[...] = jnp.zeros(acc_sc.shape, acc_sc.dtype)

        v = v_ref[...]                                        # bf16
        s = jax.lax.dot_general(                              # bf16 x bf16 -> f32
            q_ref[...], k_ref[...], (((1,), (1,)), ((), ())),
            preferred_element_type=jnp.float32)

        def online_softmax_update(scores):
            m_prev = m_sc[...]
            m_new = jnp.maximum(m_prev, scores.max(axis=-1, keepdims=True))
            alpha = jnp.exp(m_prev - m_new)
            p = jnp.exp(scores - m_new)
            l_sc[...] = alpha * l_sc[...] + p.sum(axis=-1, keepdims=True)
            acc_sc[...] = alpha * acc_sc[...] + jax.lax.dot_general(
                p.astype(v.dtype), v, (((1,), (0,)), ((), ())),
                preferred_element_type=jnp.float32)
            m_sc[...] = m_new

        on_diag = qi == ki

        @pl.when(jnp.logical_not(on_diag))  # strictly below diagonal: no mask
        def _():
            online_softmax_update(s)

        @pl.when(on_diag)  # diagonal block: mask, update, then finalize row
        def _():
            row = jax.lax.broadcasted_iota(jnp.int32, (blk, blk), 0)
            col = jax.lax.broadcasted_iota(jnp.int32, (blk, blk), 1)
            online_softmax_update(jnp.where(row >= col, s, jnp.float32(-1e30)))
            o_ref[...] = (acc_sc[...] / l_sc[...]).astype(o_ref.dtype)

    # qkv column blocks (units of D): [0,H) = q, [H,H+Hkv) = k, [H+Hkv,..) = v
    q_idx = lambda b, h, t, qi, ki: (b * nblk + qi[t], h)
    k_idx = lambda b, h, t, qi, ki: (b * nblk + ki[t], H + h // hpg)
    v_idx = lambda b, h, t, qi, ki: (b * nblk + ki[t], H + Hkv + h // hpg)

    return pl.pallas_call(
        kernel,
        out_shape=jax.ShapeDtypeStruct((M, H * D), qkv.dtype),
        grid_spec=pltpu.PrefetchScalarGridSpec(
            num_scalar_prefetch=2,
            grid=(bsz, H, n_steps),
            in_specs=[pl.BlockSpec((blk, D), q_idx),
                      pl.BlockSpec((blk, D), k_idx),
                      pl.BlockSpec((blk, D), v_idx)],
            out_specs=pl.BlockSpec((blk, D), q_idx),
            scratch_shapes=[pltpu.VMEM((blk, 1), jnp.float32),
                            pltpu.VMEM((blk, 1), jnp.float32),
                            pltpu.VMEM((blk, D), jnp.float32)]),
        compiler_params=pltpu.CompilerParams(
            dimension_semantics=("parallel", "parallel", "arbitrary")),
    )(qi_tbl, ki_tbl, qk_rot, qk_rot, qkv)


# ----------------------------------------------------------------------------
# Module wrapper (mirrors lingua Attention, base config)
# ----------------------------------------------------------------------------
class Attention:
    # TODO(synk): qk_norm, ngpt, kv_cache, residual_value, residual_post_norm,
    # flex_attention / fmha backends not implemented (base sdpa+causal only).
    def __init__(self, key, dim, head_dim, n_heads, n_kv_heads, rope_theta):
        self.dim = dim
        self.head_dim = head_dim
        self.n_heads = n_heads
        self.n_kv_heads = n_kv_heads
        self.heads_per_group = n_heads // n_kv_heads
        self.rope_theta = rope_theta

        kq, kk, kv, ko = jax.random.split(key, 4)
        std_in = dim ** -0.5
        std_out = (n_heads * head_dim) ** -0.5

        # Master weights (in_features, out_features), rounded once to bf16 so
        # the f32/f64 reference and the bf16 kernels see identical values.
        def init(k, shape, std):
            w = jax.random.normal(k, shape, jnp.float32) * std
            return w.astype(jnp.bfloat16).astype(jnp.float32)

        self.wq = init(kq, (dim, n_heads * head_dim), std_in)
        self.wk = init(kk, (dim, n_kv_heads * head_dim), std_in)
        self.wv = init(kv, (dim, n_kv_heads * head_dim), std_in)
        self.wo = init(ko, (n_heads * head_dim, dim), std_out)

        # Permute wq/wk output features per head from interleaved (even, odd)
        # pairs to split-half rotary layout (scores are invariant to a common
        # per-head permutation of q and k); fold the sdpa scale into wq.
        D = head_dim
        scale = float(head_dim) ** (-0.5)
        perm_head = np.concatenate([np.arange(0, D, 2), np.arange(1, D, 2)])
        q_perm = np.concatenate([h * D + perm_head for h in range(n_heads)])
        k_perm = np.concatenate([h * D + perm_head for h in range(n_kv_heads)])
        wq_p = self.wq[:, q_perm] * scale
        wk_p = self.wk[:, k_perm]
        # Fused, lane-dense QKV weight (bf16), one matmul per forward.
        self.w_qkv = jnp.concatenate([wq_p, wk_p, self.wv],
                                     axis=1).astype(jnp.bfloat16)
        self.wo_b16 = self.wo.astype(jnp.bfloat16)
        self.q_width = n_heads * head_dim
        self.kv_width = n_kv_heads * head_dim

    def __call__(self, x, freq_cis, mask="causal", attn_impl="sdpa"):
        assert attn_impl == "sdpa" and mask == "causal"
        bsz, seq, dim = x.shape
        H, Hkv, D = self.n_heads, self.n_kv_heads, self.head_dim
        assert seq % 128 == 0 and dim % 128 == 0 and D % 128 == 0

        x2d = x.reshape(bsz * seq, dim).astype(jnp.bfloat16)
        # 1) fused QKV projection (bf16 MXU, f32 accumulation)
        qkv = matmul(x2d, self.w_qkv, out_dtype=jnp.bfloat16)

        # 2) split-half RoPE on the q/k columns, applied once
        cos = freq_cis[:seq, :, 0, 0].astype(jnp.float32)   # (seq, D//2)
        sin = freq_cis[:seq, :, 1, 0].astype(jnp.float32)
        qk_rot = rope_split_half(qkv, cos, sin, n_rot_heads=H + Hkv,
                                 head_dim=D, seq=seq)

        # 3) causal flash attention directly on the flat projection buffers
        o = flash_attention_causal(qk_rot, qkv, bsz=bsz, seq=seq, n_heads=H,
                                   n_kv_heads=Hkv, head_dim=D)

        # 4) output projection
        out = matmul(o, self.wo_b16, out_dtype=jnp.float32)
        return out.reshape(bsz, seq, dim)


# ----------------------------------------------------------------------------
# Pure numpy reference (follows the PyTorch module exactly, interleaved RoPE)
# ----------------------------------------------------------------------------
def _precompute_freqs_cis(head_dim, end, theta):
    hd2 = head_dim // 2
    inv_freq = 1.0 / theta ** (np.arange(0, head_dim, 2)[:hd2].astype(np.float64)
                               / head_dim)
    t = np.arange(end, dtype=np.float64)
    f = np.outer(t, inv_freq)
    cos, sin = np.cos(f), np.sin(f)
    return np.stack([cos, -sin, sin, cos], axis=-1).reshape(
        end, hd2, 2, 2).astype(np.float32)


def _ref_attention_forward(x, wq, wk, wv, wo, freq_cis, n_heads, n_kv_heads,
                           head_dim):
    bsz, seq, dim = x.shape
    hd2 = head_dim // 2
    xq = (x.reshape(bsz * seq, dim) @ wq).reshape(bsz, seq, n_heads, head_dim)
    xk = (x.reshape(bsz * seq, dim) @ wk).reshape(bsz, seq, n_kv_heads, head_dim)
    xv = (x.reshape(bsz * seq, dim) @ wv).reshape(bsz, seq, n_kv_heads, head_dim)

    cos = freq_cis[:seq, :, 0, 0]
    sin = freq_cis[:seq, :, 1, 0]

    def rope(t):
        t_ = t.reshape(*t.shape[:-1], hd2, 2)
        t0, t1 = t_[..., 0], t_[..., 1]
        c = cos[None, :, None, :]
        s = sin[None, :, None, :]
        return np.stack([t0 * c - t1 * s, t0 * s + t1 * c],
                        axis=-1).reshape(t.shape)

    xq, xk = rope(xq), rope(xk)
    hpg = n_heads // n_kv_heads
    xk = np.repeat(xk, hpg, axis=2)
    xv = np.repeat(xv, hpg, axis=2)

    q = xq.transpose(0, 2, 1, 3)
    k = xk.transpose(0, 2, 1, 3)
    v = xv.transpose(0, 2, 1, 3)
    scores = (q @ k.transpose(0, 1, 3, 2)) * head_dim ** (-0.5)
    causal = np.tril(np.ones((seq, seq), dtype=bool))
    scores = np.where(causal[None, None], scores, -np.inf)
    scores = scores - scores.max(-1, keepdims=True)
    p = np.exp(scores)
    p = p / p.sum(-1, keepdims=True)
    o = (p @ v).transpose(0, 2, 1, 3).reshape(bsz * seq, n_heads * head_dim)
    return (o @ wo).reshape(bsz, seq, dim)


if __name__ == "__main__":
    key = jax.random.PRNGKey(0)
    bsz, seq = 2, 512
    dim, head_dim = 256, 128
    n_heads, n_kv_heads = 4, 2
    theta = 10000.0
    max_seqlen = 1024

    kx, kw = jax.random.split(key)
    x = jax.random.normal(kx, (bsz, seq, dim), jnp.float32)
    x = x.astype(jnp.bfloat16).astype(jnp.float32)   # kernels run in bf16
    attn = Attention(kw, dim, head_dim, n_heads, n_kv_heads, theta)
    freq_cis = jnp.asarray(_precompute_freqs_cis(head_dim, max_seqlen, theta))

    out = jax.block_until_ready(attn(x, freq_cis))

    ref = _ref_attention_forward(
        np.asarray(x, np.float64), np.asarray(attn.wq, np.float64),
        np.asarray(attn.wk, np.float64), np.asarray(attn.wv, np.float64),
        np.asarray(attn.wo, np.float64), np.asarray(freq_cis, np.float64),
        n_heads, n_kv_heads, head_dim)

    assert out.shape == (bsz, seq, dim)
    np.testing.assert_allclose(np.asarray(out, np.float64), ref,
                               rtol=5e-2, atol=5e-2)
    print("KERNEL_OK")
</pallas_src>

<mosaic_0001>
module attributes {stable_mosaic.version = 11 : i64} {
  func.func @_matmul_kernel(%arg0: i32, %arg1: i32, %arg2: i32, %arg3: memref<512x256xbf16, #tpu.memory_space<vmem>>, %arg4: memref<256x512xbf16, #tpu.memory_space<vmem>>, %arg5: memref<512x512xbf16, #tpu.memory_space<vmem>>, %arg6: memref<512x512xf32, #tpu.memory_space<vmem>>) attributes {dimension_semantics = [#tpu.dimension_semantics<parallel>, #tpu.dimension_semantics<parallel>, #tpu.dimension_semantics<arbitrary>], iteration_bounds = array<i64: 2, 2, 1>, scalar_prefetch = 0 : i64, scratch_operands = 1 : i64, tpu.core_type = #tpu.core_type<tc>, window_params = [{transform_indices = @transform_0, window_bounds = array<i64: 512, 256>}, {transform_indices = @transform_1, window_bounds = array<i64: 256, 512>}, {transform_indices = @transform_2, window_bounds = array<i64: 512, 512>}]} {
    %c0_i32 = arith.constant 0 : i32
    %0 = arith.cmpi eq, %arg2, %c0_i32 : i32
    %1 = arith.extui %0 : i1 to i32
    %c0_i32_0 = arith.constant 0 : i32
    %2 = arith.cmpi ne, %1, %c0_i32_0 : i32
    scf.if %2 {
      %cst_10 = arith.constant 0.000000e+00 : f32
      %12 = vector.broadcast %cst_10 : f32 to vector<512x512xf32>
      %c0_11 = arith.constant 0 : index
      %c0_12 = arith.constant 0 : index
      %13 = vector.load %arg6[%c0_11, %c0_12] : memref<512x512xf32, #tpu.memory_space<vmem>>, vector<512x512xf32>
      tpu.vector_store %arg6[%c0_11, %c0_12], %12 {strides = array<i32>} : memref<512x512xf32, #tpu.memory_space<vmem>>, vector<512x512xf32>,
    } else {
    }
    %c0 = arith.constant 0 : index
    %c0_1 = arith.constant 0 : index
    %3 = vector.load %arg6[%c0, %c0_1] : memref<512x512xf32, #tpu.memory_space<vmem>>, vector<512x512xf32>
    %c0_2 = arith.constant 0 : index
    %c0_3 = arith.constant 0 : index
    %4 = vector.load %arg3[%c0_2, %c0_3] : memref<512x256xbf16, #tpu.memory_space<vmem>>, vector<512x256xbf16>
    %c0_4 = arith.constant 0 : index
    %c0_5 = arith.constant 0 : index
    %5 = vector.load %arg4[%c0_4, %c0_5] : memref<256x512xbf16, #tpu.memory_space<vmem>>, vector<256x512xbf16>
    %cst = arith.constant dense<0.000000e+00> : vector<512x512xf32>
    %6 = tpu.matmul %4, %5, %cst {dimension_numbers = #tpu.dot_dimension_numbers<[1], [0], [0], [1], [0, 0, 1, 1], [], []>} : vector<512x256xbf16>, vector<256x512xbf16>, vector<512x512xf32> -> vector<512x512xf32>
    %7 = arith.addf %3, %6 : vector<512x512xf32>
    %c0_6 = arith.constant 0 : index
    %c0_7 = arith.constant 0 : index
    %8 = vector.load %arg6[%c0_6, %c0_7] : memref<512x512xf32, #tpu.memory_space<vmem>>, vector<512x512xf32>
    tpu.vector_store %arg6[%c0_6, %c0_7], %7 {strides = array<i32>} : memref<512x512xf32, #tpu.memory_space<vmem>>, vector<512x512xf32>,
    %c0_i32_8 = arith.constant 0 : i32
    %9 = arith.cmpi eq, %arg2, %c0_i32_8 : i32
    %10 = arith.extui %9 : i1 to i32
    %c0_i32_9 = arith.constant 0 : i32
    %11 = arith.cmpi ne, %10, %c0_i32_9 : i32
    scf.if %11 {
      %c0_10 = arith.constant 0 : index
      %c0_11 = arith.constant 0 : index
      %12 = vector.load %arg6[%c0_10, %c0_11] : memref<512x512xf32, #tpu.memory_space<vmem>>, vector<512x512xf32>
      %13 = arith.truncf %12 : vector<512x512xf32> to vector<512x512xbf16>
      %c0_12 = arith.constant 0 : index
      %c0_13 = arith.constant 0 : index
      %14 = vector.load %arg5[%c0_12, %c0_13] : memref<512x512xbf16, #tpu.memory_space<vmem>>, vector<512x512xbf16>
      tpu.vector_store %arg5[%c0_12, %c0_13], %13 {strides = array<i32>} : memref<512x512xbf16, #tpu.memory_space<vmem>>, vector<512x512xbf16>,
    } else {
    }
    return
  }
  func.func @transform_0(%arg0: i32, %arg1: i32, %arg2: i32) -> (i32, i32) {
    %c0_i32 = arith.constant 0 : i32
    return %arg0, %arg2 : i32, i32
  }
  func.func @transform_1(%arg0: i32, %arg1: i32, %arg2: i32) -> (i32, i32) {
    %c0_i32 = arith.constant 0 : i32
    return %arg2, %arg1 : i32, i32
  }
  func.func @transform_2(%arg0: i32, %arg1: i32, %arg2: i32) -> (i32, i32) {
    %c0_i32 = arith.constant 0 : i32
    return %arg0, %arg1 : i32, i32
  }
}

</mosaic_0001>

<llo_original>
// kernel: tpu_custom_call.1
$region0: #{tpu_custom_call.1}
  #allocation0 [shape = 'u32[]', space=smem, size = 0x4, offset = 0x4, fixed_abs, tag = 'smem constant byte address 0x4 - core index']
  #allocation1 [shape = 'u32[72,128]{1,0:T(1,128)}', space=vmem, size = 0x9000, scoped, tag = 'internal scratch']
  #allocation2 [shape = 'f32[512,512]{1,0:T(8,128)}', space=vmem, size = 0x100000, scoped, tag = 'scratch operand']
  %s0 = inlined_call_operand.hbm [shape: bf16[1024,256], index: 0, kind: input, shape index: {}]
  %s1 = inlined_call_operand.hbm [shape: bf16[256,1024], index: 1, kind: input, shape index: {}]
  %s2 = inlined_call_operand.hbm [shape: bf16[1024,1024], index: 2, kind: output, shape index: {}]
  %s3 = sld [smem:[#allocation0]]
  $region57: #{tpu_custom_call.1} parent=0
    _
  %s5 = ssub.s32 1, %s3
  %s6 = scalar_select 0, %s5, %s3
  $region1: #{tpu_custom_call.1} parent=0
    #allocation3 [shape = 'u8[524288]{0}', space=vmem, size = 0x80000, scoped, tag = 'input window, operand 0']
    #allocation4 [shape = 's32[2]{0}', space=sflag, size = 0x8, scoped, tag = 'scoped memory for tpu_custom_call.1']
    #allocation5 [shape = 's32[2]{0}', space=sflag, size = 0x8, scoped, tag = 'scoped memory for tpu_custom_call.1']
    #allocation6 [shape = 'u8[524288]{0}', space=vmem, size = 0x80000, scoped, tag = 'input window, operand 1']
    #allocation7 [shape = 's32[2]{0}', space=sflag, size = 0x8, scoped, tag = 'scoped memory for tpu_custom_call.1']
    #allocation8 [shape = 'u8[1048576]{0}', space=vmem, size = 0x100000, scoped, tag = 'output window, operand 0']
    %7 = vsyncpa [#allocation4], 0
    %s8 = scalar_lea.sflag [#allocation4], 1
    %9 = vsyncpa %s8, 0
    %10 = vsyncpa [#allocation7], 0
    %s11 = scalar_lea.sflag [#allocation7], 1
    %12 = vsyncpa %s11, 0
    %13 = vsyncpa [#allocation5], 0
    %s14 = scalar_lea.sflag [#allocation5], 1
    %15 = vsyncpa %s14, 0
    loop: start=0, step=1, limit=6
    $region2: #{tpu_custom_call.1} parent=1 // loop_pre_header
      _
    $region3: #{tpu_custom_call.1} parent=1 // loop_header
      %s17 = sphi 0, %s21
      %p18 = scmp.ge.s32.totalorder %s17, 6
      %s24 = sphi 0, %s43
      %s25 = sphi 0, %s39
      %s26 = sphi 0, %s35
      %s27 = sphi 0, %s24
      %s28 = sphi 0, %s25
      %s29 = sphi 0, %s26
      %s30 = sphi 0, %s27
      %s31 = sphi 0, %s28
      %s32 = sphi 0, %s29
      %s48 = sphi 0, %s50
      %s51 = sphi 0, %s48
      %s52 = sphi 0, %s51
      %s68 = sphi 0, %s52
      %s76 = sphi 0, %s78
      %s79 = sphi 0, %s76
      %s80 = sphi 0, %s79
      %s96 = sphi 0, %s80
      %s104 = sphi 0, %s106
      %s107 = sphi 0, %s104
      %s108 = sphi 0, %s107
      %s124 = sphi 0, %s108
    $region4: #{tpu_custom_call.1} parent=1 // loop_header_branch
      %20 = sbr.rel (%p18) target = $region8
    $region5: #{tpu_custom_call.1} parent=1 // loop_body
      %s22 = ssub.s32 %s17, 1
      %s23 = ssub.s32 %s17, 2
      %s33 = sadd.s32 1, %s26
      %p34 = scmp.ge.s32.totalorder %s33, 1
      %s35 = scalar_select %p34, 0, %s33
      %s36 = sadd.s32 1, %s25
      %s37 = scalar_select %p34, %s36, %s25
      %p38 = scmp.ge.s32.totalorder %s37, 2
      %s39 = scalar_select %p38, 0, %s37
      %s40 = sadd.s32 1, %s24
      %s41 = scalar_select %p38, %s40, %s24
      %p42 = scmp.ge.s32.totalorder %s41, 2
      %s43 = scalar_select %p42, 0, %s41
      %s44 = ssub.s32 %s24, %s43
      %s45 = ssub.s32 %s26, %s35
      %s46 = sor.u32 %s44, %s45
      %p47 = scmp.eq.s32.totalorder %s46, 0
      %s49 = sadd.s32 %s48, 1
      %s50 = scalar_select %p47, %s48, %s49
      %p53 = pneg %p47
      %p54 = scmp.eq.s32.totalorder %s17, 3
      %p55 = por %p53, %p54
      %p56 = scmp.ne.s32.totalorder %s48, %s51
      %p57 = scmp.eq.s32.totalorder %s17, 0
      %p58 = por %p56, %p57
      %p59 = scmp.ne.s32.totalorder %s48, %s51
      %p60 = scmp.eq.s32.totalorder %s22, 3
      %p61 = por %p59, %p60
      %p62 = scmp.ne.s32.totalorder %s51, %s52
      %p63 = scmp.eq.s32.totalorder %s22, 0
      %p64 = por %p62, %p63
      %p65 = scmp.ne.s32.totalorder %s51, %s52
      %p66 = scmp.eq.s32.totalorder %s23, 3
      %p67 = por %p65, %p66
      %p69 = scmp.ne.s32.totalorder %s52, %s68
      %p70 = scmp.eq.s32.totalorder %s23, 0
      %p71 = por %p69, %p70
      %s72 = ssub.s32 %s26, %s35
      %s73 = ssub.s32 %s25, %s39
      %s74 = sor.u32 %s72, %s73
      %p75 = scmp.eq.s32.totalorder %s74, 0
      %s77 = sadd.s32 %s76, 1
      %s78 = scalar_select %p75, %s76, %s77
      %p81 = pneg %p75
      %p82 = scmp.eq.s32.totalorder %s17, 3
      %p83 = por %p81, %p82
      %p84 = scmp.ne.s32.totalorder %s76, %s79
      %p85 = scmp.eq.s32.totalorder %s17, 0
      %p86 = por %p84, %p85
      %p87 = scmp.ne.s32.totalorder %s76, %s79
      %p88 = scmp.eq.s32.totalorder %s22, 3
      %p89 = por %p87, %p88
      %p90 = scmp.ne.s32.totalorder %s79, %s80
      %p91 = scmp.eq.s32.totalorder %s22, 0
      %p92 = por %p90, %p91
      %p93 = scmp.ne.s32.totalorder %s79, %s80
      %p94 = scmp.eq.s32.totalorder %s23, 3
      %p95 = por %p93, %p94
      %p97 = scmp.ne.s32.totalorder %s80, %s96
      %p98 = scmp.eq.s32.totalorder %s23, 0
      %p99 = por %p97, %p98
      %s100 = ssub.s32 %s24, %s43
      %s101 = ssub.s32 %s25, %s39
      %s102 = sor.u32 %s100, %s101
      %p103 = scmp.eq.s32.totalorder %s102, 0
      %s105 = sadd.s32 %s104, 1
      %s106 = scalar_select %p103, %s104, %s105
      %p109 = pneg %p103
      %p110 = scmp.eq.s32.totalorder %s17, 3
      %p111 = por %p109, %p110
      %p112 = scmp.ne.s32.totalorder %s104, %s107
      %p113 = scmp.eq.s32.totalorder %s17, 0
      %p114 = por %p112, %p113
      %p115 = scmp.ne.s32.totalorder %s104, %s107
      %p116 = scmp.eq.s32.totalorder %s22, 3
      %p117 = por %p115, %p116
      %p118 = scmp.ne.s32.totalorder %s107, %s108
      %p119 = scmp.eq.s32.totalorder %s22, 0
      %p120 = por %p118, %p119
      %p121 = scmp.ne.s32.totalorder %s107, %s108
      %p122 = scmp.eq.s32.totalorder %s23, 3
      %p123 = por %p121, %p122
      %p125 = scmp.ne.s32.totalorder %s108, %s124
      %p126 = scmp.eq.s32.totalorder %s23, 0
      %p127 = por %p125, %p126
      %p128 = scmp.le.s32.totalorder 1, %s17
      %p129 = scmp.lt.s32.totalorder %s17, 5
      %p130 = pnand %p128, %p129
      %p131 = pneg %p130
      // Predicated region
      $region9: #{tpu_custom_call.1} parent=5 // pred_check
        _
      $region10: #{tpu_custom_call.1} parent=5 // pred_check_branch
        %133 = sbr.rel (%p130) target = $region12
      $region11: #{tpu_custom_call.1} parent=5 // pred_region
        %s134 = ssub.s32 %s17, 1
      $region12: #{tpu_custom_call.1} parent=5 // pred_fallthru
        _
      %p135 = scmp.lt.s32.totalorder %s17, 4
      // Predicated region
      $region13: #{tpu_custom_call.1} parent=5 // pred_check
        %p136 = pneg %p135
      $region14: #{tpu_custom_call.1} parent=5 // pred_check_branch
        %138 = sbr.rel (%p136) target = $region16
      $region15: #{tpu_custom_call.1} parent=5 // pred_region
        // Predicated region
        $region17: #{tpu_custom_call.1} parent=15 // pred_check
          %p139 = pneg %p58
        $region18: #{tpu_custom_call.1} parent=15 // pred_check_branch
          %141 = sbr.rel (%p139) target = $region20
        $region19: #{tpu_custom_call.1} parent=15 // pred_region
          %s142 = sand.u32 %s48, 1
          %s143 = scalar_lea.sflag [#allocation4], %s142
          %s144 = sand.u32 %s48, 1
          %s145 = smul.addr %s144, 512
          %s146 = scalar_lea.vmem [#allocation3], %s145
          %s147 = smul.u32 64, %s24
          %s148 = smul.u32 2, %s26
          %150 = vsyncadd %s143, 0
          %s151 = smul.addr %s147, 2
          %s152 = sadd.s32 %s148, %s151
          %s153 = smul.addr %s152, 4
          %s154 = scalar_lea.hbm %s0, %s153
          %s155 = sshll.u32 %s154, 4
          %s156 = int_to_ptr.hbm [resolvable:$true] %s155
          %s157 = sshll.u32 %s146, 4
          %s158 = int_to_ptr.vmem [resolvable:$true] %s157
          %163 = dma.hbm_to_vmem [thread:$0]  %s156, 8192, %s158, %s143, 128, 128, 8
        $region20: #{tpu_custom_call.1} parent=15 // pred_fallthru
          _
        // Predicated region
        $region21: #{tpu_custom_call.1} parent=15 // pred_check
          %p164 = pneg %p86
        $region22: #{tpu_custom_call.1} parent=15 // pred_check_branch
          %166 = sbr.rel (%p164) target = $region24
        $region23: #{tpu_custom_call.1} parent=15 // pred_region
          %s167 = sand.u32 %s76, 1
          %s168 = scalar_lea.sflag [#allocation7], %s167
          %s169 = sand.u32 %s76, 1
          %s170 = smul.addr %s169, 512
          %s171 = scalar_lea.vmem [#allocation6], %s170
          %s172 = smul.u32 32, %s26
          %s173 = smul.u32 4, %s25
          %175 = vsyncadd %s168, 0
          %s176 = smul.addr %s172, 8
          %s177 = sadd.s32 %s173, %s176
          %s178 = smul.addr %s177, 4
          %s179 = scalar_lea.hbm %s1, %s178
          %s180 = sshll.u32 %s179, 4
          %s181 = int_to_ptr.hbm [resolvable:$true] %s180
          %s182 = sshll.u32 %s171, 4
          %s183 = int_to_ptr.vmem [resolvable:$true] %s182
          %188 = dma.hbm_to_vmem [thread:$0]  %s181, 8192, %s183, %s168, 512, 256, 16
        $region24: #{tpu_custom_call.1} parent=15 // pred_fallthru
          _
      $region16: #{tpu_custom_call.1} parent=5 // pred_fallthru
        _
      %p189 = scmp.le.s32.totalorder 1, %s17
      %p190 = scmp.lt.s32.totalorder %s17, 5
      %p191 = pnand %p189, %p190
      %p192 = pneg %p191
      // Predicated region
      $region25: #{tpu_custom_call.1} parent=5 // pred_check
        _
      $region26: #{tpu_custom_call.1} parent=5 // pred_check_branch
        %194 = sbr.rel (%p191) target = $region28
      $region27: #{tpu_custom_call.1} parent=5 // pred_region
        %s195 = ssub.s32 %s17, 1
        %s196 = sand.u32 %s51, 1
        %s197 = scalar_lea.sflag [#allocation4], %s196
        %s198 = sand.u32 %s51, 1
        %s199 = smul.addr %s198, 512
        %s200 = scalar_lea.vmem [#allocation3], %s199
        // Predicated region
        $region29: #{tpu_custom_call.1} parent=27 // pred_check
          %p201 = pneg %p64
        $region30: #{tpu_custom_call.1} parent=27 // pred_check_branch
          %203 = sbr.rel (%p201) target = $region32
        $region31: #{tpu_custom_call.1} parent=27 // pred_region
          %205 = dma.done %s197, 8192
        $region32: #{tpu_custom_call.1} parent=27 // pred_fallthru
          _
        %s206 = sand.u32 %s79, 1
        %s207 = scalar_lea.sflag [#allocation7], %s206
        %s208 = sand.u32 %s79, 1
        %s209 = smul.addr %s208, 512
        %s210 = scalar_lea.vmem [#allocation6], %s209
        // Predicated region
        $region33: #{tpu_custom_call.1} parent=27 // pred_check
          %p211 = pneg %p92
        $region34: #{tpu_custom_call.1} parent=27 // pred_check_branch
          %213 = sbr.rel (%p211) target = $region36
        $region35: #{tpu_custom_call.1} parent=27 // pred_region
          %215 = dma.done %s207, 8192
        $region36: #{tpu_custom_call.1} parent=27 // pred_fallthru
          _
        %s216 = sand.u32 %s51, 1
        %s217 = scalar_lea.sflag [#allocation4], %s216
        %s218 = sand.u32 %s51, 1
        %s219 = smul.addr %s218, 512
        %s220 = scalar_lea.vmem [#allocation3], %s219
        %p221 = pneg %p64
        %p222 = pneg %p61
        %s223 = sand.u32 %s79, 1
        %s224 = scalar_lea.sflag [#allocation7], %s223
        %s225 = sand.u32 %s79, 1
        %s226 = smul.addr %s225, 512
        %s227 = scalar_lea.vmem [#allocation6], %s226
        %p228 = pneg %p92
        %p229 = pneg %p89
        %p230 = pneg %p120
        %p231 = pneg %p117
        %s232 = sand.u32 %s107, 1
        %s233 = scalar_lea.sflag [#allocation5], %s232
        %s234 = sand.u32 %s107, 1
        %s235 = smul.addr %s234, 1024
        %s236 = scalar_lea.vmem [#allocation8], %s235
        %s237 = smul.u32 64, %s27
        %s238 = smul.u32 2, %s29
        %s239 = smul.u32 32, %s29
        %s240 = smul.u32 4, %s28
        %s241 = smul.u32 64, %s27
        %s242 = smul.u32 4, %s28
        %p243 = scmp.eq.s32.totalorder %s29, 0
        // Predicated region
        $region37: #{tpu_custom_call.1} parent=27 // pred_check
          %p244 = pneg %p243
        $region38: #{tpu_custom_call.1} parent=27 // pred_check_branch
          %246 = sbr.rel (%p244) target = $region40
        $region39: #{tpu_custom_call.1} parent=27 // pred_region
          %247 = vst [vmem:[#allocation2] sm:$0xff] 0.0
          %248 = vst [vmem:[#allocation2 + $0x8] sm:$0xff] 0.0
          %249 = vst [vmem:[#allocation2 + $0x10] sm:$0xff] 0.0
          %250 = vst [vmem:[#allocation2 + $0x18] sm:$0xff] 0.0
          %251 = vst [vmem:[#allocation2 + $0x20] sm:$0xff] 0.0
          %252 = vst [vmem:[#allocation2 + $0x28] sm:$0xff] 0.0
          %253 = vst [vmem:[#allocation2 + $0x30] sm:$0xff] 0.0
          %254 = vst [vmem:[#allocation2 + $0x38] sm:$0xff] 0.0
          %255 = vst [vmem:[#allocation2 + $0x40] sm:$0xff] 0.0
          %256 = vst [vmem:[#allocation2 + $0x48] sm:$0xff] 0.0
          %257 = vst [vmem:[#allocation2 + $0x50] sm:$0xff] 0.0
          %258 = vst [vmem:[#allocation2 + $0x58] sm:$0xff] 0.0
          %259 = vst [vmem:[#allocation2 + $0x60] sm:$0xff] 0.0
          %260 = vst [vmem:[#allocation2 + $0x68] sm:$0xff] 0.0
          %261 = vst [vmem:[#allocation2 + $0x70] sm:$0xff] 0.0
          %262 = vst [vmem:[#allocation2 + $0x78] sm:$0xff] 0.0
          %263 = vst [vmem:[#allocation2 + $0x80] sm:$0xff] 0.0
          %264 = vst [vmem:[#allocation2 + $0x88] sm:$0xff] 0.0
          %265 = vst [vmem:[#allocation2 + $0x90] sm:$0xff] 0.0
          %266 = vst [vmem:[#allocation2 + $0x98] sm:$0xff] 0.0
          %267 = vst [vmem:[#allocation2 + $0xa0] sm:$0xff] 0.0
          %268 = vst [vmem:[#allocation2 + $0xa8] sm:$0xff] 0.0
          %269 = vst [vmem:[#allocation2 + $0xb0] sm:$0xff] 0.0
          %270 = vst [vmem:[#allocation2 + $0xb8] sm:$0xff] 0.0
          %271 = vst [vmem:[#allocation2 + $0xc0] sm:$0xff] 0.0
          %272 = vst [vmem:[#allocation2 + $0xc8] sm:$0xff] 0.0
          %273 = vst [vmem:[#allocation2 + $0xd0] sm:$0xff] 0.0
          %274 = vst [vmem:[#allocation2 + $0xd8] sm:$0xff] 0.0
          %275 = vst [vmem:[#allocation2 + $0xe0] sm:$0xff] 0.0
          %276 = vst [vmem:[#allocation2 + $0xe8] sm:$0xff] 0.0
          %277 = vst [vmem:[#allocation2 + $0xf0] sm:$0xff] 0.0
          %278 = vst [vmem:[#allocation2 + $0xf8] sm:$0xff] 0.0
          %279 = vst [vmem:[#allocation2 + $0x100] sm:$0xff] 0.0
          %280 = vst [vmem:[#allocation2 + $0x108] sm:$0xff] 0.0
          %281 = vst [vmem:[#allocation2 + $0x110] sm:$0xff] 0.0
          %282 = vst [vmem:[#allocation2 + $0x118] sm:$0xff] 0.0
          %283 = vst [vmem:[#allocation2 + $0x120] sm:$0xff] 0.0
          %284 = vst [vmem:[#allocation2 + $0x128] sm:$0xff] 0.0
          %285 = vst [vmem:[#allocation2 + $0x130] sm:$0xff] 0.0
          %286 = vst [vmem:[#allocation2 + $0x138] sm:$0xff] 0.0
          %287 = vst [vmem:[#allocation2 + $0x140] sm:$0xff] 0.0
          %288 = vst [vmem:[#allocation2 + $0x148] sm:$0xff] 0.0
          %289 = vst [vmem:[#allocation2 + $0x150] sm:$0xff] 0.0
          %290 = vst [vmem:[#allocation2 + $0x158] sm:$0xff] 0.0
          %291 = vst [vmem:[#allocation2 + $0x160] sm:$0xff] 0.0
          %292 = vst [vmem:[#allocation2 + $0x168] sm:$0xff] 0.0
          %293 = vst [vmem:[#allocation2 + $0x170] sm:$0xff] 0.0
          %294 = vst [vmem:[#allocation2 + $0x178] sm:$0xff] 0.0
          %295 = vst [vmem:[#allocation2 + $0x180] sm:$0xff] 0.0
          %296 = vst [vmem:[#allocation2 + $0x188] sm:$0xff] 0.0
          %297 = vst [vmem:[#allocation2 + $0x190] sm:$0xff] 0.0
          %298 = vst [vmem:[#allocation2 + $0x198] sm:$0xff] 0.0
          %299 = vst [vmem:[#allocation2 + $0x1a0] sm:$0xff] 0.0
          %300 = vst [vmem:[#allocation2 + $0x1a8] sm:$0xff] 0.0
          %301 = vst [vmem:[#allocation2 + $0x1b0] sm:$0xff] 0.0
          %302 = vst [vmem:[#allocation2 + $0x1b8] sm:$0xff] 0.0
          %303 = vst [vmem:[#allocation2 + $0x1c0] sm:$0xff] 0.0
          %304 = vst [vmem:[#allocation2 + $0x1c8] sm:$0xff] 0.0
          %305 = vst [vmem:[#allocation2 + $0x1d0] sm:$0xff] 0.0
          %306 = vst [vmem:[#allocation2 + $0x1d8] sm:$0xff] 0.0
          %307 = vst [vmem:[#allocation2 + $0x1e0] sm:$0xff] 0.0
          %308 = vst [vmem:[#allocation2 + $0x1e8] sm:$0xff] 0.0
          %309 = vst [vmem:[#allocation2 + $0x1f0] sm:$0xff] 0.0
          %310 = vst [vmem:[#allocation2 + $0x1f8] sm:$0xff] 0.0
          %311 = vst [vmem:[#allocation2 + $0x200] sm:$0xff] 0.0
          %312 = vst [vmem:[#allocation2 + $0x208] sm:$0xff] 0.0
          %313 = vst [vmem:[#allocation2 + $0x210] sm:$0xff] 0.0
          %314 = vst [vmem:[#allocation2 + $0x218] sm:$0xff] 0.0
          %315 = vst [vmem:[#allocation2 + $0x220] sm:$0xff] 0.0
          %316 = vst [vmem:[#allocation2 + $0x228] sm:$0xff] 0.0
          %317 = vst [vmem:[#allocation2 + $0x230] sm:$0xff] 0.0
          %318 = vst [vmem:[#allocation2 + $0x238] sm:$0xff] 0.0
          %319 = vst [vmem:[#allocation2 + $0x240] sm:$0xff] 0.0
          %320 = vst [vmem:[#allocation2 + $0x248] sm:$0xff] 0.0
          %321 = vst [vmem:[#allocation2 + $0x250] sm:$0xff] 0.0
          %322 = vst [vmem:[#allocation2 + $0x258] sm:$0xff] 0.0
          %323 = vst [vmem:[#allocation2 + $0x260] sm:$0xff] 0.0
          %324 = vst [vmem:[#allocation2 + $0x268] sm:$0xff] 0.0
          %325 = vst [vmem:[#allocation2 + $0x270] sm:$0xff] 0.0
          %326 = vst [vmem:[#allocation2 + $0x278] sm:$0xff] 0.0
          %327 = vst [vmem:[#allocation2 + $0x280] sm:$0xff] 0.0
          %328 = vst [vmem:[#allocation2 + $0x288] sm:$0xff] 0.0
          %329 = vst [vmem:[#allocation2 + $0x290] sm:$0xff] 0.0
          %330 = vst [vmem:[#allocation2 + $0x298] sm:$0xff] 0.0
          %331 = vst [vmem:[#allocation2 + $0x2a0] sm:$0xff] 0.0
          %332 = vst [vmem:[#allocation2 + $0x2a8] sm:$0xff] 0.0
          %333 = vst [vmem:[#allocation2 + $0x2b0] sm:$0xff] 0.0
          %334 = vst [vmem:[#allocation2 + $0x2b8] sm:$0xff] 0.0
          %335 = vst [vmem:[#allocation2 + $0x2c0] sm:$0xff] 0.0
          %336 = vst [vmem:[#allocation2 + $0x2c8] sm:$0xff] 0.0
          %337 = vst [vmem:[#allocation2 + $0x2d0] sm:$0xff] 0.0
          %338 = vst [vmem:[#allocation2 + $0x2d8] sm:$0xff] 0.0
          %339 = vst [vmem:[#allocation2 + $0x2e0] sm:$0xff] 0.0
          %340 = vst [vmem:[#allocation2 + $0x2e8] sm:$0xff] 0.0
          %341 = vst [vmem:[#allocation2 + $0x2f0] sm:$0xff] 0.0
          %342 = vst [vmem:[#allocation2 + $0x2f8] sm:$0xff] 0.0
          %343 = vst [vmem:[#allocation2 + $0x300] sm:$0xff] 0.0
          %344 = vst [vmem:[#allocation2 + $0x308] sm:$0xff] 0.0
          %345 = vst [vmem:[#allocation2 + $0x310] sm:$0xff] 0.0
          %346 = vst [vmem:[#allocation2 + $0x318] sm:$0xff] 0.0
          %347 = vst [vmem:[#allocation2 + $0x320] sm:$0xff] 0.0
          %348 = vst [vmem:[#allocation2 + $0x328] sm:$0xff] 0.0
          %349 = vst [vmem:[#allocation2 + $0x330] sm:$0xff] 0.0
          %350 = vst [vmem:[#allocation2 + $0x338] sm:$0xff] 0.0
          %351 = vst [vmem:[#allocation2 + $0x340] sm:$0xff] 0.0
          %352 = vst [vmem:[#allocation2 + $0x348] sm:$0xff] 0.0
          %353 = vst [vmem:[#allocation2 + $0x350] sm:$0xff] 0.0
          %354 = vst [vmem:[#allocation2 + $0x358] sm:$0xff] 0.0
          %355 = vst [vmem:[#allocation2 + $0x360] sm:$0xff] 0.0
          %356 = vst [vmem:[#allocation2 + $0x368] sm:$0xff] 0.0
          %357 = vst [vmem:[#allocation2 + $0x370] sm:$0xff] 0.0
          %358 = vst [vmem:[#allocation2 + $0x378] sm:$0xff] 0.0
          %359 = vst [vmem:[#allocation2 + $0x380] sm:$0xff] 0.0
          %360 = vst [vmem:[#allocation2 + $0x388] sm:$0xff] 0.0
          %361 = vst [vmem:[#allocation2 + $0x390] sm:$0xff] 0.0
          %362 = vst [vmem:[#allocation2 + $0x398] sm:$0xff] 0.0
          %363 = vst [vmem:[#allocation2 + $0x3a0] sm:$0xff] 0.0
          %364 = vst [vmem:[#allocation2 + $0x3a8] sm:$0xff] 0.0
          %365 = vst [vmem:[#allocation2 + $0x3b0] sm:$0xff] 0.0
          %366 = vst [vmem:[#allocation2 + $0x3b8] sm:$0xff] 0.0
          %367 = vst [vmem:[#allocation2 + $0x3c0] sm:$0xff] 0.0
          %368 = vst [vmem:[#allocation2 + $0x3c8] sm:$0xff] 0.0
          %369 = vst [vmem:[#allocation2 + $0x3d0] sm:$0xff] 0.0
          %370 = vst [vmem:[#allocation2 + $0x3d8] sm:$0xff] 0.0
          %371 = vst [vmem:[#allocation2 + $0x3e0] sm:$0xff] 0.0
          %372 = vst [vmem:[#allocation2 + $0x3e8] sm:$0xff] 0.0
          %373 = vst [vmem:[#allocation2 + $0x3f0] sm:$0xff] 0.0
          %374 = vst [vmem:[#allocation2 + $0x3f8] sm:$0xff] 0.0
          %375 = vst [vmem:[#allocation2 + $0x400] sm:$0xff] 0.0
          %376 = vst [vmem:[#allocation2 + $0x408] sm:$0xff] 0.0
          %377 = vst [vmem:[#allocation2 + $0x410] sm:$0xff] 0.0
          %378 = vst [vmem:[#allocation2 + $0x418] sm:$0xff] 0.0
          %379 = vst [vmem:[#allocation2 + $0x420] sm:$0xff] 0.0
          %380 = vst [vmem:[#allocation2 + $0x428] sm:$0xff] 0.0
          %381 = vst [vmem:[#allocation2 + $0x430] sm:$0xff] 0.0
          %382 = vst [vmem:[#allocation2 + $0x438] sm:$0xff] 0.0
          %383 = vst [vmem:[#allocation2 + $0x440] sm:$0xff] 0.0
          %384 = vst [vmem:[#allocation2 + $0x448] sm:$0xff] 0.0
          %385 = vst [vmem:[#allocation2 + $0x450] sm:$0xff] 0.0
          %386 = vst [vmem:[#allocation2 + $0x458] sm:$0xff] 0.0
          %387 = vst [vmem:[#allocation2 + $0x460] sm:$0xff] 0.0
          %388 = vst [vmem:[#allocation2 + $0x468] sm:$0xff] 0.0
          %389 = vst [vmem:[#allocation2 + $0x470] sm:$0xff] 0.0
          %390 = vst [vmem:[#allocation2 + $0x478] sm:$0xff] 0.0
          %391 = vst [vmem:[#allocation2 + $0x480] sm:$0xff] 0.0
          %392 = vst [vmem:[#allocation2 + $0x488] sm:$0xff] 0.0
          %393 = vst [vmem:[#allocation2 + $0x490] sm:$0xff] 0.0
          %394 = vst [vmem:[#allocation2 + $0x498] sm:$0xff] 0.0
          %395 = vst [vmem:[#allocation2 + $0x4a0] sm:$0xff] 0.0
          %396 = vst [vmem:[#allocation2 + $0x4a8] sm:$0xff] 0.0
          %397 = vst [vmem:[#allocation2 + $0x4b0] sm:$0xff] 0.0
          %398 = vst [vmem:[#allocation2 + $0x4b8] sm:$0xff] 0.0
          %399 = vst [vmem:[#allocation2 + $0x4c0] sm:$0xff] 0.0
          %400 = vst [vmem:[#allocation2 + $0x4c8] sm:$0xff] 0.0
          %401 = vst [vmem:[#allocation2 + $0x4d0] sm:$0xff] 0.0
          %402 = vst [vmem:[#allocation2 + $0x4d8] sm:$0xff] 0.0
          %403 = vst [vmem:[#allocation2 + $0x4e0] sm:$0xff] 0.0
          %404 = vst [vmem:[#allocation2 + $0x4e8] sm:$0xff] 0.0
          %405 = vst [vmem:[#allocation2 + $0x4f0] sm:$0xff] 0.0
          %406 = vst [vmem:[#allocation2 + $0x4f8] sm:$0xff] 0.0
          %407 = vst [vmem:[#allocation2 + $0x500] sm:$0xff] 0.0
          %408 = vst [vmem:[#allocation2 + $0x508] sm:$0xff] 0.0
          %409 = vst [vmem:[#allocation2 + $0x510] sm:$0xff] 0.0
          %410 = vst [vmem:[#allocation2 + $0x518] sm:$0xff] 0.0
          %411 = vst [vmem:[#allocation2 + $0x520] sm:$0xff] 0.0
          %412 = vst [vmem:[#allocation2 + $0x528] sm:$0xff] 0.0
          %413 = vst [vmem:[#allocation2 + $0x530] sm:$0xff] 0.0
          %414 = vst [vmem:[#allocation2 + $0x538] sm:$0xff] 0.0
          %415 = vst [vmem:[#allocation2 + $0x540] sm:$0xff] 0.0
          %416 = vst [vmem:[#allocation2 + $0x548] sm:$0xff] 0.0
          %417 = vst [vmem:[#allocation2 + $0x550] sm:$0xff] 0.0
          %418 = vst [vmem:[#allocation2 + $0x558] sm:$0xff] 0.0
          %419 = vst [vmem:[#allocation2 + $0x560] sm:$0xff] 0.0
          %420 = vst [vmem:[#allocation2 + $0x568] sm:$0xff] 0.0
          %421 = vst [vmem:[#allocation2 + $0x570] sm:$0xff] 0.0
          %422 = vst [vmem:[#allocation2 + $0x578] sm:$0xff] 0.0
          %423 = vst [vmem:[#allocation2 + $0x580] sm:$0xff] 0.0
          %424 = vst [vmem:[#allocation2 + $0x588] sm:$0xff] 0.0
          %425 = vst [vmem:[#allocation2 + $0x590] sm:$0xff] 0.0
          %426 = vst [vmem:[#allocation2 + $0x598] sm:$0xff] 0.0
          %427 = vst [vmem:[#allocation2 + $0x5a0] sm:$0xff] 0.0
          %428 = vst [vmem:[#allocation2 + $0x5a8] sm:$0xff] 0.0
          %429 = vst [vmem:[#allocation2 + $0x5b0] sm:$0xff] 0.0
          %430 = vst [vmem:[#allocation2 + $0x5b8] sm:$0xff] 0.0
          %431 = vst [vmem:[#allocation2 + $0x5c0] sm:$0xff] 0.0
          %432 = vst [vmem:[#allocation2 + $0x5c8] sm:$0xff] 0.0
          %433 = vst [vmem:[#allocation2 + $0x5d0] sm:$0xff] 0.0
          %434 = vst [vmem:[#allocation2 + $0x5d8] sm:$0xff] 0.0
          %435 = vst [vmem:[#allocation2 + $0x5e0] sm:$0xff] 0.0
          %436 = vst [vmem:[#allocation2 + $0x5e8] sm:$0xff] 0.0
          %437 = vst [vmem:[#allocation2 + $0x5f0] sm:$0xff] 0.0
          %438 = vst [vmem:[#allocation2 + $0x5f8] sm:$0xff] 0.0
          %439 = vst [vmem:[#allocation2 + $0x600] sm:$0xff] 0.0
          %440 = vst [vmem:[#allocation2 + $0x608] sm:$0xff] 0.0
          %441 = vst [vmem:[#allocation2 + $0x610] sm:$0xff] 0.0
          %442 = vst [vmem:[#allocation2 + $0x618] sm:$0xff] 0.0
          %443 = vst [vmem:[#allocation2 + $0x620] sm:$0xff] 0.0
          %444 = vst [vmem:[#allocation2 + $0x628] sm:$0xff] 0.0
          %445 = vst [vmem:[#allocation2 + $0x630] sm:$0xff] 0.0
          %446 = vst [vmem:[#allocation2 + $0x638] sm:$0xff] 0.0
          %447 = vst [vmem:[#allocation2 + $0x640] sm:$0xff] 0.0
          %448 = vst [vmem:[#allocation2 + $0x648] sm:$0xff] 0.0
          %449 = vst [vmem:[#allocation2 + $0x650] sm:$0xff] 0.0
          %450 = vst [vmem:[#allocation2 + $0x658] sm:$0xff] 0.0
          %451 = vst [vmem:[#allocation2 + $0x660] sm:$0xff] 0.0
          %452 = vst [vmem:[#allocation2 + $0x668] sm:$0xff] 0.0
          %453 = vst [vmem:[#allocation2 + $0x670] sm:$0xff] 0.0
          %454 = vst [vmem:[#allocation2 + $0x678] sm:$0xff] 0.0
          %455 = vst [vmem:[#allocation2 + $0x680] sm:$0xff] 0.0
          %456 = vst [vmem:[#allocation2 + $0x688] sm:$0xff] 0.0
          %457 = vst [vmem:[#allocation2 + $0x690] sm:$0xff] 0.0
          %458 = vst [vmem:[#allocation2 + $0x698] sm:$0xff] 0.0
          %459 = vst [vmem:[#allocation2 + $0x6a0] sm:$0xff] 0.0
          %460 = vst [vmem:[#allocation2 + $0x6a8] sm:$0xff] 0.0
          %461 = vst [vmem:[#allocation2 + $0x6b0] sm:$0xff] 0.0
          %462 = vst [vmem:[#allocation2 + $0x6b8] sm:$0xff] 0.0
          %463 = vst [vmem:[#allocation2 + $0x6c0] sm:$0xff] 0.0
          %464 = vst [vmem:[#allocation2 + $0x6c8] sm:$0xff] 0.0
          %465 = vst [vmem:[#allocation2 + $0x6d0] sm:$0xff] 0.0
          %466 = vst [vmem:[#allocation2 + $0x6d8] sm:$0xff] 0.0
          %467 = vst [vmem:[#allocation2 + $0x6e0] sm:$0xff] 0.0
          %468 = vst [vmem:[#allocation2 + $0x6e8] sm:$0xff] 0.0
          %469 = vst [vmem:[#allocation2 + $0x6f0] sm:$0xff] 0.0
          %470 = vst [vmem:[#allocation2 + $0x6f8] sm:$0xff] 0.0
          %471 = vst [vmem:[#allocation2 + $0x700] sm:$0xff] 0.0
          %472 = vst [vmem:[#allocation2 + $0x708] sm:$0xff] 0.0
          %473 = vst [vmem:[#allocation2 + $0x710] sm:$0xff] 0.0
          %474 = vst [vmem:[#allocation2 + $0x718] sm:$0xff] 0.0
          %475 = vst [vmem:[#allocation2 + $0x720] sm:$0xff] 0.0
          %476 = vst [vmem:[#allocation2 + $0x728] sm:$0xff] 0.0
          %477 = vst [vmem:[#allocation2 + $0x730] sm:$0xff] 0.0
          %478 = vst [vmem:[#allocation2 + $0x738] sm:$0xff] 0.0
          %479 = vst [vmem:[#allocation2 + $0x740] sm:$0xff] 0.0
          %480 = vst [vmem:[#allocation2 + $0x748] sm:$0xff] 0.0
          %481 = vst [vmem:[#allocation2 + $0x750] sm:$0xff] 0.0
          %482 = vst [vmem:[#allocation2 + $0x758] sm:$0xff] 0.0
          %483 = vst [vmem:[#allocation2 + $0x760] sm:$0xff] 0.0
          %484 = vst [vmem:[#allocation2 + $0x768] sm:$0xff] 0.0
          %485 = vst [vmem:[#allocation2 + $0x770] sm:$0xff] 0.0
          %486 = vst [vmem:[#allocation2 + $0x778] sm:$0xff] 0.0
          %487 = vst [vmem:[#allocation2 + $0x780] sm:$0xff] 0.0
          %488 = vst [vmem:[#allocation2 + $0x788] sm:$0xff] 0.0
          %489 = vst [vmem:[#allocation2 + $0x790] sm:$0xff] 0.0
          %490 = vst [vmem:[#allocation2 + $0x798] sm:$0xff] 0.0
          %491 = vst [vmem:[#allocation2 + $0x7a0] sm:$0xff] 0.0
          %492 = vst [vmem:[#allocation2 + $0x7a8] sm:$0xff] 0.0
          %493 = vst [vmem:[#allocation2 + $0x7b0] sm:$0xff] 0.0
          %494 = vst [vmem:[#allocation2 + $0x7b8] sm:$0xff] 0.0
          %495 = vst [vmem:[#allocation2 + $0x7c0] sm:$0xff] 0.0
          %496 = vst [vmem:[#allocation2 + $0x7c8] sm:$0xff] 0.0
          %497 = vst [vmem:[#allocation2 + $0x7d0] sm:$0xff] 0.0
          %498 = vst [vmem:[#allocation2 + $0x7d8] sm:$0xff] 0.0
          %499 = vst [vmem:[#allocation2 + $0x7e0] sm:$0xff] 0.0
          %500 = vst [vmem:[#allocation2 + $0x7e8] sm:$0xff] 0.0
          %501 = vst [vmem:[#allocation2 + $0x7f0] sm:$0xff] 0.0
          %502 = vst [vmem:[#allocation2 + $0x7f8] sm:$0xff] 0.0
        $region40: #{tpu_custom_call.1} parent=27 // pred_fallthru
          _
        %v503 = vld [vmem:[#allocation2] sm:$0xff]
        %v504 = vld [vmem:[#allocation2 + $0x8] sm:$0xff]
        %v505 = vld [vmem:[#allocation2 + $0x10] sm:$0xff]
        %v506 = vld [vmem:[#allocation2 + $0x18] sm:$0xff]
        %v507 = vld [vmem:[#allocation2 + $0x20] sm:$0xff]
        %v508 = vld [vmem:[#allocation2 + $0x28] sm:$0xff]
        %v509 = vld [vmem:[#allocation2 + $0x30] sm:$0xff]
        %v510 = vld [vmem:[#allocation2 + $0x38] sm:$0xff]
        %v511 = vld [vmem:[#allocation2 + $0x40] sm:$0xff]
        %v512 = vld [vmem:[#allocation2 + $0x48] sm:$0xff]
        %v513 = vld [vmem:[#allocation2 + $0x50] sm:$0xff]
        %v514 = vld [vmem:[#allocation2 + $0x58] sm:$0xff]
        %v515 = vld [vmem:[#allocation2 + $0x60] sm:$0xff]
        %v516 = vld [vmem:[#allocation2 + $0x68] sm:$0xff]
        %v517 = vld [vmem:[#allocation2 + $0x70] sm:$0xff]
        %v518 = vld [vmem:[#allocation2 + $0x78] sm:$0xff]
        %v519 = vld [vmem:[#allocation2 + $0x80] sm:$0xff]
        %v520 = vld [vmem:[#allocation2 + $0x88] sm:$0xff]
        %v521 = vld [vmem:[#allocation2 + $0x90] sm:$0xff]
        %v522 = vld [vmem:[#allocation2 + $0x98] sm:$0xff]
        %v523 = vld [vmem:[#allocation2 + $0xa0] sm:$0xff]
        %v524 = vld [vmem:[#allocation2 + $0xa8] sm:$0xff]
        %v525 = vld [vmem:[#allocation2 + $0xb0] sm:$0xff]
        %v526 = vld [vmem:[#allocation2 + $0xb8] sm:$0xff]
        %v527 = vld [vmem:[#allocation2 + $0xc0] sm:$0xff]
        %v528 = vld [vmem:[#allocation2 + $0xc8] sm:$0xff]
        %v529 = vld [vmem:[#allocation2 + $0xd0] sm:$0xff]
        %v530 = vld [vmem:[#allocation2 + $0xd8] sm:$0xff]
        %v531 = vld [vmem:[#allocation2 + $0xe0] sm:$0xff]
        %v532 = vld [vmem:[#allocation2 + $0xe8] sm:$0xff]
        %v533 = vld [vmem:[#allocation2 + $0xf0] sm:$0xff]
        %v534 = vld [vmem:[#allocation2 + $0xf8] sm:$0xff]
        %v535 = vld [vmem:[#allocation2 + $0x100] sm:$0xff]
        %v536 = vld [vmem:[#allocation2 + $0x108] sm:$0xff]
        %v537 = vld [vmem:[#allocation2 + $0x110] sm:$0xff]
        %v538 = vld [vmem:[#allocation2 + $0x118] sm:$0xff]
        %v539 = vld [vmem:[#allocation2 + $0x120] sm:$0xff]
        %v540 = vld [vmem:[#allocation2 + $0x128] sm:$0xff]
        %v541 = vld [vmem:[#allocation2 + $0x130] sm:$0xff]
        %v542 = vld [vmem:[#allocation2 + $0x138] sm:$0xff]
        %v543 = vld [vmem:[#allocation2 + $0x140] sm:$0xff]
        %v544 = vld [vmem:[#allocation2 + $0x148] sm:$0xff]
        %v545 = vld [vmem:[#allocation2 + $0x150] sm:$0xff]
        %v546 = vld [vmem:[#allocation2 + $0x158] sm:$0xff]
        %v547 = vld [vmem:[#allocation2 + $0x160] sm:$0xff]
        %v548 = vld [vmem:[#allocation2 + $0x168] sm:$0xff]
        %v549 = vld [vmem:[#allocation2 + $0x170] sm:$0xff]
        %v550 = vld [vmem:[#allocation2 + $0x178] sm:$0xff]
        %v551 = vld [vmem:[#allocation2 + $0x180] sm:$0xff]
        %v552 = vld [vmem:[#allocation2 + $0x188] sm:$0xff]
        %v553 = vld [vmem:[#allocation2 + $0x190] sm:$0xff]
        %v554 = vld [vmem:[#allocation2 + $0x198] sm:$0xff]
        %v555 = vld [vmem:[#allocation2 + $0x1a0] sm:$0xff]
        %v556 = vld [vmem:[#allocation2 + $0x1a8] sm:$0xff]
        %v557 = vld [vmem:[#allocation2 + $0x1b0] sm:$0xff]
        %v558 = vld [vmem:[#allocation2 + $0x1b8] sm:$0xff]
        %v559 = vld [vmem:[#allocation2 + $0x1c0] sm:$0xff]
        %v560 = vld [vmem:[#allocation2 + $0x1c8] sm:$0xff]
        %v561 = vld [vmem:[#allocation2 + $0x1d0] sm:$0xff]
        %v562 = vld [vmem:[#allocation2 + $0x1d8] sm:$0xff]
        %v563 = vld [vmem:[#allocation2 + $0x1e0] sm:$0xff]
        %v564 = vld [vmem:[#allocation2 + $0x1e8] sm:$0xff]
        %v565 = vld [vmem:[#allocation2 + $0x1f0] sm:$0xff]
        %v566 = vld [vmem:[#allocation2 + $0x1f8] sm:$0xff]
        %v567 = vld [vmem:[#allocation2 + $0x200] sm:$0xff]
        %v568 = vld [vmem:[#allocation2 + $0x208] sm:$0xff]
        %v569 = vld [vmem:[#allocation2 + $0x210] sm:$0xff]
        %v570 = vld [vmem:[#allocation2 + $0x218] sm:$0xff]
        %v571 = vld [vmem:[#allocation2 + $0x220] sm:$0xff]
        %v572 = vld [vmem:[#allocation2 + $0x228] sm:$0xff]
        %v573 = vld [vmem:[#allocation2 + $0x230] sm:$0xff]
        %v574 = vld [vmem:[#allocation2 + $0x238] sm:$0xff]
        %v575 = vld [vmem:[#allocation2 + $0x240] sm:$0xff]
        %v576 = vld [vmem:[#allocation2 + $0x248] sm:$0xff]
        %v577 = vld [vmem:[#allocation2 + $0x250] sm:$0xff]
        %v578 = vld [vmem:[#allocation2 + $0x258] sm:$0xff]
        %v579 = vld [vmem:[#allocation2 + $0x260] sm:$0xff]
        %v580 = vld [vmem:[#allocation2 + $0x268] sm:$0xff]
        %v581 = vld [vmem:[#allocation2 + $0x270] sm:$0xff]
        %v582 = vld [vmem:[#allocation2 + $0x278] sm:$0xff]
        %v583 = vld [vmem:[#allocation2 + $0x280] sm:$0xff]
        %v584 = vld [vmem:[#allocation2 + $0x288] sm:$0xff]
        %v585 = vld [vmem:[#allocation2 + $0x290] sm:$0xff]
        %v586 = vld [vmem:[#allocation2 + $0x298] sm:$0xff]
        %v587 = vld [vmem:[#allocation2 + $0x2a0] sm:$0xff]
        %v588 = vld [vmem:[#allocation2 + $0x2a8] sm:$0xff]
        %v589 = vld [vmem:[#allocation2 + $0x2b0] sm:$0xff]
        %v590 = vld [vmem:[#allocation2 + $0x2b8] sm:$0xff]
        %v591 = vld [vmem:[#allocation2 + $0x2c0] sm:$0xff]
        %v592 = vld [vmem:[#allocation2 + $0x2c8] sm:$0xff]
        %v593 = vld [vmem:[#allocation2 + $0x2d0] sm:$0xff]
        %v594 = vld [vmem:[#allocation2 + $0x2d8] sm:$0xff]
        %v595 = vld [vmem:[#allocation2 + $0x2e0] sm:$0xff]
        %v596 = vld [vmem:[#allocation2 + $0x2e8] sm:$0xff]
        %v597 = vld [vmem:[#allocation2 + $0x2f0] sm:$0xff]
        %v598 = vld [vmem:[#allocation2 + $0x2f8] sm:$0xff]
        %v599 = vld [vmem:[#allocation2 + $0x300] sm:$0xff]
        %v600 = vld [vmem:[#allocation2 + $0x308] sm:$0xff]
        %v601 = vld [vmem:[#allocation2 + $0x310] sm:$0xff]
        %v602 = vld [vmem:[#allocation2 + $0x318] sm:$0xff]
        %v603 = vld [vmem:[#allocation2 + $0x320] sm:$0xff]
        %v604 = vld [vmem:[#allocation2 + $0x328] sm:$0xff]
        %v605 = vld [vmem:[#allocation2 + $0x330] sm:$0xff]
        %v606 = vld [vmem:[#allocation2 + $0x338] sm:$0xff]
        %v607 = vld [vmem:[#allocation2 + $0x340] sm:$0xff]
        %v608 = vld [vmem:[#allocation2 + $0x348] sm:$0xff]
        %v609 = vld [vmem:[#allocation2 + $0x350] sm:$0xff]
        %v610 = vld [vmem:[#allocation2 + $0x358] sm:$0xff]
        %v611 = vld [vmem:[#allocation2 + $0x360] sm:$0xff]
        %v612 = vld [vmem:[#allocation2 + $0x368] sm:$0xff]
        %v613 = vld [vmem:[#allocation2 + $0x370] sm:$0xff]
        %v614 = vld [vmem:[#allocation2 + $0x378] sm:$0xff]
        %v615 = vld [vmem:[#allocation2 + $0x380] sm:$0xff]
        %v616 = vld [vmem:[#allocation2 + $0x388] sm:$0xff]
        %v617 = vld [vmem:[#allocation2 + $0x390] sm:$0xff]
        %v618 = vld [vmem:[#allocation2 + $0x398] sm:$0xff]
        %v619 = vld [vmem:[#allocation2 + $0x3a0] sm:$0xff]
        %v620 = vld [vmem:[#allocation2 + $0x3a8] sm:$0xff]
        %v621 = vld [vmem:[#allocation2 + $0x3b0] sm:$0xff]
        %v622 = vld [vmem:[#allocation2 + $0x3b8] sm:$0xff]
        %v623 = vld [vmem:[#allocation2 + $0x3c0] sm:$0xff]
        %v624 = vld [vmem:[#allocation2 + $0x3c8] sm:$0xff]
        %v625 = vld [vmem:[#allocation2 + $0x3d0] sm:$0xff]
        %v626 = vld [vmem:[#allocation2 + $0x3d8] sm:$0xff]
        %v627 = vld [vmem:[#allocation2 + $0x3e0] sm:$0xff]
        %v628 = vld [vmem:[#allocation2 + $0x3e8] sm:$0xff]
        %v629 = vld [vmem:[#allocation2 + $0x3f0] sm:$0xff]
        %v630 = vld [vmem:[#allocation2 + $0x3f8] sm:$0xff]
        %v631 = vld [vmem:[#allocation2 + $0x400] sm:$0xff]
        %v632 = vld [vmem:[#allocation2 + $0x408] sm:$0xff]
        %v633 = vld [vmem:[#allocation2 + $0x410] sm:$0xff]
        %v634 = vld [vmem:[#allocation2 + $0x418] sm:$0xff]
        %v635 = vld [vmem:[#allocation2 + $0x420] sm:$0xff]
        %v636 = vld [vmem:[#allocation2 + $0x428] sm:$0xff]
        %v637 = vld [vmem:[#allocation2 + $0x430] sm:$0xff]
        %v638 = vld [vmem:[#allocation2 + $0x438] sm:$0xff]
        %v639 = vld [vmem:[#allocation2 + $0x440] sm:$0xff]
        %v640 = vld [vmem:[#allocation2 + $0x448] sm:$0xff]
        %v641 = vld [vmem:[#allocation2 + $0x450] sm:$0xff]
        %v642 = vld [vmem:[#allocation2 + $0x458] sm:$0xff]
        %v643 = vld [vmem:[#allocation2 + $0x460] sm:$0xff]
        %v644 = vld [vmem:[#allocation2 + $0x468] sm:$0xff]
        %v645 = vld [vmem:[#allocation2 + $0x470] sm:$0xff]
        %v646 = vld [vmem:[#allocation2 + $0x478] sm:$0xff]
        %v647 = vld [vmem:[#allocation2 + $0x480] sm:$0xff]
        %v648 = vld [vmem:[#allocation2 + $0x488] sm:$0xff]
        %v649 = vld [vmem:[#allocation2 + $0x490] sm:$0xff]
        %v650 = vld [vmem:[#allocation2 + $0x498] sm:$0xff]
        %v651 = vld [vmem:[#allocation2 + $0x4a0] sm:$0xff]
        %v652 = vld [vmem:[#allocation2 + $0x4a8] sm:$0xff]
        %v653 = vld [vmem:[#allocation2 + $0x4b0] sm:$0xff]
        %v654 = vld [vmem:[#allocation2 + $0x4b8] sm:$0xff]
        %v655 = vld [vmem:[#allocation2 + $0x4c0] sm:$0xff]
        %v656 = vld [vmem:[#allocation2 + $0x4c8] sm:$0xff]
        %v657 = vld [vmem:[#allocation2 + $0x4d0] sm:$0xff]
        %v658 = vld [vmem:[#allocation2 + $0x4d8] sm:$0xff]
        %v659 = vld [vmem:[#allocation2 + $0x4e0] sm:$0xff]
        %v660 = vld [vmem:[#allocation2 + $0x4e8] sm:$0xff]
        %v661 = vld [vmem:[#allocation2 + $0x4f0] sm:$0xff]
        %v662 = vld [vmem:[#allocation2 + $0x4f8] sm:$0xff]
        %v663 = vld [vmem:[#allocation2 + $0x500] sm:$0xff]
        %v664 = vld [vmem:[#allocation2 + $0x508] sm:$0xff]
        %v665 = vld [vmem:[#allocation2 + $0x510] sm:$0xff]
        %v666 = vld [vmem:[#allocation2 + $0x518] sm:$0xff]
        %v667 = vld [vmem:[#allocation2 + $0x520] sm:$0xff]
        %v668 = vld [vmem:[#allocation2 + $0x528] sm:$0xff]
        %v669 = vld [vmem:[#allocation2 + $0x530] sm:$0xff]
        %v670 = vld [vmem:[#allocation2 + $0x538] sm:$0xff]
        %v671 = vld [vmem:[#allocation2 + $0x540] sm:$0xff]
        %v672 = vld [vmem:[#allocation2 + $0x548] sm:$0xff]
        %v673 = vld [vmem:[#allocation2 + $0x550] sm:$0xff]
        %v674 = vld [vmem:[#allocation2 + $0x558] sm:$0xff]
        %v675 = vld [vmem:[#allocation2 + $0x560] sm:$0xff]
        %v676 = vld [vmem:[#allocation2 + $0x568] sm:$0xff]
        %v677 = vld [vmem:[#allocation2 + $0x570] sm:$0xff]
        %v678 = vld [vmem:[#allocation2 + $0x578] sm:$0xff]
        %v679 = vld [vmem:[#allocation2 + $0x580] sm:$0xff]
        %v680 = vld [vmem:[#allocation2 + $0x588] sm:$0xff]
        %v681 = vld [vmem:[#allocation2 + $0x590] sm:$0xff]
        %v682 = vld [vmem:[#allocation2 + $0x598] sm:$0xff]
        %v683 = vld [vmem:[#allocation2 + $0x5a0] sm:$0xff]
        %v684 = vld [vmem:[#allocation2 + $0x5a8] sm:$0xff]
        %v685 = vld [vmem:[#allocation2 + $0x5b0] sm:$0xff]
        %v686 = vld [vmem:[#allocation2 + $0x5b8] sm:$0xff]
        %v687 = vld [vmem:[#allocation2 + $0x5c0] sm:$0xff]
        %v688 = vld [vmem:[#allocation2 + $0x5c8] sm:$0xff]
        %v689 = vld [vmem:[#allocation2 + $0x5d0] sm:$0xff]
        %v690 = vld [vmem:[#allocation2 + $0x5d8] sm:$0xff]
        %v691 = vld [vmem:[#allocation2 + $0x5e0] sm:$0xff]
        %v692 = vld [vmem:[#allocation2 + $0x5e8] sm:$0xff]
        %v693 = vld [vmem:[#allocation2 + $0x5f0] sm:$0xff]
        %v694 = vld [vmem:[#allocation2 + $0x5f8] sm:$0xff]
        %v695 = vld [vmem:[#allocation2 + $0x600] sm:$0xff]
        %v696 = vld [vmem:[#allocation2 + $0x608] sm:$0xff]
        %v697 = vld [vmem:[#allocation2 + $0x610] sm:$0xff]
        %v698 = vld [vmem:[#allocation2 + $0x618] sm:$0xff]
        %v699 = vld [vmem:[#allocation2 + $0x620] sm:$0xff]
        %v700 = vld [vmem:[#allocation2 + $0x628] sm:$0xff]
        %v701 = vld [vmem:[#allocation2 + $0x630] sm:$0xff]
        %v702 = vld [vmem:[#allocation2 + $0x638] sm:$0xff]
        %v703 = vld [vmem:[#allocation2 + $0x640] sm:$0xff]
        %v704 = vld [vmem:[#allocation2 + $0x648] sm:$0xff]
        %v705 = vld [vmem:[#allocation2 + $0x650] sm:$0xff]
        %v706 = vld [vmem:[#allocation2 + $0x658] sm:$0xff]
        %v707 = vld [vmem:[#allocation2 + $0x660] sm:$0xff]
        %v708 = vld [vmem:[#allocation2 + $0x668] sm:$0xff]
        %v709 = vld [vmem:[#allocation2 + $0x670] sm:$0xff]
        %v710 = vld [vmem:[#allocation2 + $0x678] sm:$0xff]
        %v711 = vld [vmem:[#allocation2 + $0x680] sm:$0xff]
        %v712 = vld [vmem:[#allocation2 + $0x688] sm:$0xff]
        %v713 = vld [vmem:[#allocation2 + $0x690] sm:$0xff]
        %v714 = vld [vmem:[#allocation2 + $0x698] sm:$0xff]
        %v715 = vld [vmem:[#allocation2 + $0x6a0] sm:$0xff]
        %v716 = vld [vmem:[#allocation2 + $0x6a8] sm:$0xff]
        %v717 = vld [vmem:[#allocation2 + $0x6b0] sm:$0xff]
        %v718 = vld [vmem:[#allocation2 + $0x6b8] sm:$0xff]
        %v719 = vld [vmem:[#allocation2 + $0x6c0] sm:$0xff]
        %v720 = vld [vmem:[#allocation2 + $0x6c8] sm:$0xff]
        %v721 = vld [vmem:[#allocation2 + $0x6d0] sm:$0xff]
        %v722 = vld [vmem:[#allocation2 + $0x6d8] sm:$0xff]
        %v723 = vld [vmem:[#allocation2 + $0x6e0] sm:$0xff]
        %v724 = vld [vmem:[#allocation2 + $0x6e8] sm:$0xff]
        %v725 = vld [vmem:[#allocation2 + $0x6f0] sm:$0xff]
        %v726 = vld [vmem:[#allocation2 + $0x6f8] sm:$0xff]
        %v727 = vld [vmem:[#allocation2 + $0x700] sm:$0xff]
        %v728 = vld [vmem:[#allocation2 + $0x708] sm:$0xff]
        %v729 = vld [vmem:[#allocation2 + $0x710] sm:$0xff]
        %v730 = vld [vmem:[#allocation2 + $0x718] sm:$0xff]
        %v731 = vld [vmem:[#allocation2 + $0x720] sm:$0xff]
        %v732 = vld [vmem:[#allocation2 + $0x728] sm:$0xff]
        %v733 = vld [vmem:[#allocation2 + $0x730] sm:$0xff]
        %v734 = vld [vmem:[#allocation2 + $0x738] sm:$0xff]
        %v735 = vld [vmem:[#allocation2 + $0x740] sm:$0xff]
        %v736 = vld [vmem:[#allocation2 + $0x748] sm:$0xff]
        %v737 = vld [vmem:[#allocation2 + $0x750] sm:$0xff]
        %v738 = vld [vmem:[#allocation2 + $0x758] sm:$0xff]
        %v739 = vld [vmem:[#allocation2 + $0x760] sm:$0xff]
        %v740 = vld [vmem:[#allocation2 + $0x768] sm:$0xff]
        %v741 = vld [vmem:[#allocation2 + $0x770] sm:$0xff]
        %v742 = vld [vmem:[#allocation2 + $0x778] sm:$0xff]
        %v743 = vld [vmem:[#allocation2 + $0x780] sm:$0xff]
        %v744 = vld [vmem:[#allocation2 + $0x788] sm:$0xff]
        %v745 = vld [vmem:[#allocation2 + $0x790] sm:$0xff]
        %v746 = vld [vmem:[#allocation2 + $0x798] sm:$0xff]
        %v747 = vld [vmem:[#allocation2 + $0x7a0] sm:$0xff]
        %v748 = vld [vmem:[#allocation2 + $0x7a8] sm:$0xff]
        %v749 = vld [vmem:[#allocation2 + $0x7b0] sm:$0xff]
        %v750 = vld [vmem:[#allocation2 + $0x7b8] sm:$0xff]
        %v751 = vld [vmem:[#allocation2 + $0x7c0] sm:$0xff]
        %v752 = vld [vmem:[#allocation2 + $0x7c8] sm:$0xff]
        %v753 = vld [vmem:[#allocation2 + $0x7d0] sm:$0xff]
        %v754 = vld [vmem:[#allocation2 + $0x7d8] sm:$0xff]
        %v755 = vld [vmem:[#allocation2 + $0x7e0] sm:$0xff]
        %v756 = vld [vmem:[#allocation2 + $0x7e8] sm:$0xff]
        %v757 = vld [vmem:[#allocation2 + $0x7f0] sm:$0xff]
        %v758 = vld [vmem:[#allocation2 + $0x7f8] sm:$0xff]
        %v759 = vld [vmem:[%s200] sm:$0xff]
        %v760 = vld [vmem:[%s200 + $0x8] sm:$0xff]
        %v761 = vld [vmem:[%s200 + $0x10] sm:$0xff]
        %v762 = vld [vmem:[%s200 + $0x18] sm:$0xff]
        %v763 = vld [vmem:[%s200 + $0x20] sm:$0xff]
        %v764 = vld [vmem:[%s200 + $0x28] sm:$0xff]
        %v765 = vld [vmem:[%s200 + $0x30] sm:$0xff]
        %v766 = vld [vmem:[%s200 + $0x38] sm:$0xff]
        %v767 = vld [vmem:[%s200 + $0x40] sm:$0xff]
        %v768 = vld [vmem:[%s200 + $0x48] sm:$0xff]
        %v769 = vld [vmem:[%s200 + $0x50] sm:$0xff]
        %v770 = vld [vmem:[%s200 + $0x58] sm:$0xff]
        %v771 = vld [vmem:[%s200 + $0x60] sm:$0xff]
        %v772 = vld [vmem:[%s200 + $0x68] sm:$0xff]
        %v773 = vld [vmem:[%s200 + $0x70] sm:$0xff]
        %v774 = vld [vmem:[%s200 + $0x78] sm:$0xff]
        %v775 = vld [vmem:[%s200 + $0x80] sm:$0xff]
        %v776 = vld [vmem:[%s200 + $0x88] sm:$0xff]
        %v777 = vld [vmem:[%s200 + $0x90] sm:$0xff]
        %v778 = vld [vmem:[%s200 + $0x98] sm:$0xff]
        %v779 = vld [vmem:[%s200 + $0xa0] sm:$0xff]
        %v780 = vld [vmem:[%s200 + $0xa8] sm:$0xff]
        %v781 = vld [vmem:[%s200 + $0xb0] sm:$0xff]
        %v782 = vld [vmem:[%s200 + $0xb8] sm:$0xff]
        %v783 = vld [vmem:[%s200 + $0xc0] sm:$0xff]
        %v784 = vld [vmem:[%s200 + $0xc8] sm:$0xff]
        %v785 = vld [vmem:[%s200 + $0xd0] sm:$0xff]
        %v786 = vld [vmem:[%s200 + $0xd8] sm:$0xff]
        %v787 = vld [vmem:[%s200 + $0xe0] sm:$0xff]
        %v788 = vld [vmem:[%s200 + $0xe8] sm:$0xff]
        %v789 = vld [vmem:[%s200 + $0xf0] sm:$0xff]
        %v790 = vld [vmem:[%s200 + $0xf8] sm:$0xff]
        %v791 = vld [vmem:[%s200 + $0x100] sm:$0xff]
        %v792 = vld [vmem:[%s200 + $0x108] sm:$0xff]
        %v793 = vld [vmem:[%s200 + $0x110] sm:$0xff]
        %v794 = vld [vmem:[%s200 + $0x118] sm:$0xff]
        %v795 = vld [vmem:[%s200 + $0x120] sm:$0xff]
        %v796 = vld [vmem:[%s200 + $0x128] sm:$0xff]
        %v797 = vld [vmem:[%s200 + $0x130] sm:$0xff]
        %v798 = vld [vmem:[%s200 + $0x138] sm:$0xff]
        %v799 = vld [vmem:[%s200 + $0x140] sm:$0xff]
        %v800 = vld [vmem:[%s200 + $0x148] sm:$0xff]
        %v801 = vld [vmem:[%s200 + $0x150] sm:$0xff]
        %v802 = vld [vmem:[%s200 + $0x158] sm:$0xff]
        %v803 = vld [vmem:[%s200 + $0x160] sm:$0xff]
        %v804 = vld [vmem:[%s200 + $0x168] sm:$0xff]
        %v805 = vld [vmem:[%s200 + $0x170] sm:$0xff]
        %v806 = vld [vmem:[%s200 + $0x178] sm:$0xff]
        %v807 = vld [vmem:[%s200 + $0x180] sm:$0xff]
        %v808 = vld [vmem:[%s200 + $0x188] sm:$0xff]
        %v809 = vld [vmem:[%s200 + $0x190] sm:$0xff]
        %v810 = vld [vmem:[%s200 + $0x198] sm:$0xff]
        %v811 = vld [vmem:[%s200 + $0x1a0] sm:$0xff]
        %v812 = vld [vmem:[%s200 + $0x1a8] sm:$0xff]
        %v813 = vld [vmem:[%s200 + $0x1b0] sm:$0xff]
        %v814 = vld [vmem:[%s200 + $0x1b8] sm:$0xff]
        %v815 = vld [vmem:[%s200 + $0x1c0] sm:$0xff]
        %v816 = vld [vmem:[%s200 + $0x1c8] sm:$0xff]
        %v817 = vld [vmem:[%s200 + $0x1d0] sm:$0xff]
        %v818 = vld [vmem:[%s200 + $0x1d8] sm:$0xff]
        %v819 = vld [vmem:[%s200 + $0x1e0] sm:$0xff]
        %v820 = vld [vmem:[%s200 + $0x1e8] sm:$0xff]
        %v821 = vld [vmem:[%s200 + $0x1f0] sm:$0xff]
        %v822 = vld [vmem:[%s200 + $0x1f8] sm:$0xff]
        %v823 = vld [vmem:[%s210] sm:$0xff]
        %v824 = vld [vmem:[%s210 + $0x8] sm:$0xff]
        %v825 = vld [vmem:[%s210 + $0x10] sm:$0xff]
        %v826 = vld [vmem:[%s210 + $0x18] sm:$0xff]
        %v827 = vld [vmem:[%s210 + $0x20] sm:$0xff]
        %v828 = vld [vmem:[%s210 + $0x28] sm:$0xff]
        %v829 = vld [vmem:[%s210 + $0x30] sm:$0xff]
        %v830 = vld [vmem:[%s210 + $0x38] sm:$0xff]
        %v831 = vld [vmem:[%s210 + $0x40] sm:$0xff]
        %v832 = vld [vmem:[%s210 + $0x48] sm:$0xff]
        %v833 = vld [vmem:[%s210 + $0x50] sm:$0xff]
        %v834 = vld [vmem:[%s210 + $0x58] sm:$0xff]
        %v835 = vld [vmem:[%s210 + $0x60] sm:$0xff]
        %v836 = vld [vmem:[%s210 + $0x68] sm:$0xff]
        %v837 = vld [vmem:[%s210 + $0x70] sm:$0xff]
        %v838 = vld [vmem:[%s210 + $0x78] sm:$0xff]
        %v839 = vld [vmem:[%s210 + $0x80] sm:$0xff]
        %v840 = vld [vmem:[%s210 + $0x88] sm:$0xff]
        %v841 = vld [vmem:[%s210 + $0x90] sm:$0xff]
        %v842 = vld [vmem:[%s210 + $0x98] sm:$0xff]
        %v843 = vld [vmem:[%s210 + $0xa0] sm:$0xff]
        %v844 = vld [vmem:[%s210 + $0xa8] sm:$0xff]
        %v845 = vld [vmem:[%s210 + $0xb0] sm:$0xff]
        %v846 = vld [vmem:[%s210 + $0xb8] sm:$0xff]
        %v847 = vld [vmem:[%s210 + $0xc0] sm:$0xff]
        %v848 = vld [vmem:[%s210 + $0xc8] sm:$0xff]
        %v849 = vld [vmem:[%s210 + $0xd0] sm:$0xff]
        %v850 = vld [vmem:[%s210 + $0xd8] sm:$0xff]
        %v851 = vld [vmem:[%s210 + $0xe0] sm:$0xff]
        %v852 = vld [vmem:[%s210 + $0xe8] sm:$0xff]
        %v853 = vld [vmem:[%s210 + $0xf0] sm:$0xff]
        %v854 = vld [vmem:[%s210 + $0xf8] sm:$0xff]
        %v855 = vld [vmem:[%s210 + $0x100] sm:$0xff]
        %v856 = vld [vmem:[%s210 + $0x108] sm:$0xff]
        %v857 = vld [vmem:[%s210 + $0x110] sm:$0xff]
        %v858 = vld [vmem:[%s210 + $0x118] sm:$0xff]
        %v859 = vld [vmem:[%s210 + $0x120] sm:$0xff]
        %v860 = vld [vmem:[%s210 + $0x128] sm:$0xff]
        %v861 = vld [vmem:[%s210 + $0x130] sm:$0xff]
        %v862 = vld [vmem:[%s210 + $0x138] sm:$0xff]
        %v863 = vld [vmem:[%s210 + $0x140] sm:$0xff]
        %v864 = vld [vmem:[%s210 + $0x148] sm:$0xff]
        %v865 = vld [vmem:[%s210 + $0x150] sm:$0xff]
        %v866 = vld [vmem:[%s210 + $0x158] sm:$0xff]
        %v867 = vld [vmem:[%s210 + $0x160] sm:$0xff]
        %v868 = vld [vmem:[%s210 + $0x168] sm:$0xff]
        %v869 = vld [vmem:[%s210 + $0x170] sm:$0xff]
        %v870 = vld [vmem:[%s210 + $0x178] sm:$0xff]
        %v871 = vld [vmem:[%s210 + $0x180] sm:$0xff]
        %v872 = vld [vmem:[%s210 + $0x188] sm:$0xff]
        %v873 = vld [vmem:[%s210 + $0x190] sm:$0xff]
        %v874 = vld [vmem:[%s210 + $0x198] sm:$0xff]
        %v875 = vld [vmem:[%s210 + $0x1a0] sm:$0xff]
        %v876 = vld [vmem:[%s210 + $0x1a8] sm:$0xff]
        %v877 = vld [vmem:[%s210 + $0x1b0] sm:$0xff]
        %v878 = vld [vmem:[%s210 + $0x1b8] sm:$0xff]
        %v879 = vld [vmem:[%s210 + $0x1c0] sm:$0xff]
        %v880 = vld [vmem:[%s210 + $0x1c8] sm:$0xff]
        %v881 = vld [vmem:[%s210 + $0x1d0] sm:$0xff]
        %v882 = vld [vmem:[%s210 + $0x1d8] sm:$0xff]
        %v883 = vld [vmem:[%s210 + $0x1e0] sm:$0xff]
        %v884 = vld [vmem:[%s210 + $0x1e8] sm:$0xff]
        %v885 = vld [vmem:[%s210 + $0x1f0] sm:$0xff]
        %v886 = vld [vmem:[%s210 + $0x1f8] sm:$0xff]
        %v951 = vunpack.c.l.b16 %v759
        %v952 = vunpack.c.h.b16 %v759
        %v953 = vunpack.c.l.b16 %v760
        %v954 = vunpack.c.h.b16 %v760
        %v955 = vunpack.c.l.b16 %v761
        %v956 = vunpack.c.h.b16 %v761
        %v957 = vunpack.c.l.b16 %v762
        %v958 = vunpack.c.h.b16 %v762
        %v959 = vunpack.c.l.b16 %v763
        %v960 = vunpack.c.h.b16 %v763
        %v961 = vunpack.c.l.b16 %v764
        %v962 = vunpack.c.h.b16 %v764
        %v963 = vunpack.c.l.b16 %v765
        %v964 = vunpack.c.h.b16 %v765
        %v965 = vunpack.c.l.b16 %v766
        %v966 = vunpack.c.h.b16 %v766
        %v967 = vunpack.c.l.b16 %v767
        %v968 = vunpack.c.h.b16 %v767
        %v969 = vunpack.c.l.b16 %v768
        %v970 = vunpack.c.h.b16 %v768
        %v971 = vunpack.c.l.b16 %v769
        %v972 = vunpack.c.h.b16 %v769
        %v973 = vunpack.c.l.b16 %v770
        %v974 = vunpack.c.h.b16 %v770
        %v975 = vunpack.c.l.b16 %v771
        %v976 = vunpack.c.h.b16 %v771
        %v977 = vunpack.c.l.b16 %v772
        %v978 = vunpack.c.h.b16 %v772
        %v979 = vunpack.c.l.b16 %v773
        %v980 = vunpack.c.h.b16 %v773
        %v981 = vunpack.c.l.b16 %v774
        %v982 = vunpack.c.h.b16 %v774
        %v983 = vunpack.c.l.b16 %v775
        %v984 = vunpack.c.h.b16 %v775
        %v985 = vunpack.c.l.b16 %v776
        %v986 = vunpack.c.h.b16 %v776
        %v987 = vunpack.c.l.b16 %v777
        %v988 = vunpack.c.h.b16 %v777
        %v989 = vunpack.c.l.b16 %v778
        %v990 = vunpack.c.h.b16 %v778
        %v991 = vunpack.c.l.b16 %v779
        %v992 = vunpack.c.h.b16 %v779
        %v993 = vunpack.c.l.b16 %v780
        %v994 = vunpack.c.h.b16 %v780
        %v995 = vunpack.c.l.b16 %v781
        %v996 = vunpack.c.h.b16 %v781
        %v997 = vunpack.c.l.b16 %v782
        %v998 = vunpack.c.h.b16 %v782
        %v999 = vunpack.c.l.b16 %v783
        %v1000 = vunpack.c.h.b16 %v783
        %v1001 = vunpack.c.l.b16 %v784
        %v1002 = vunpack.c.h.b16 %v784
        %v1003 = vunpack.c.l.b16 %v785
        %v1004 = vunpack.c.h.b16 %v785
        %v1005 = vunpack.c.l.b16 %v786
        %v1006 = vunpack.c.h.b16 %v786
        %v1007 = vunpack.c.l.b16 %v787
        %v1008 = vunpack.c.h.b16 %v787
        %v1009 = vunpack.c.l.b16 %v788
        %v1010 = vunpack.c.h.b16 %v788
        %v1011 = vunpack.c.l.b16 %v789
        %v1012 = vunpack.c.h.b16 %v789
        %v1013 = vunpack.c.l.b16 %v790
        %v1014 = vunpack.c.h.b16 %v790
        %v1015 = vunpack.c.l.b16 %v791
        %v1016 = vunpack.c.h.b16 %v791
        %v1017 = vunpack.c.l.b16 %v792
        %v1018 = vunpack.c.h.b16 %v792
        %v1019 = vunpack.c.l.b16 %v793
        %v1020 = vunpack.c.h.b16 %v793
        %v1021 = vunpack.c.l.b16 %v794
        %v1022 = vunpack.c.h.b16 %v794
        %v1023 = vunpack.c.l.b16 %v795
        %v1024 = vunpack.c.h.b16 %v795
        %v1025 = vunpack.c.l.b16 %v796
        %v1026 = vunpack.c.h.b16 %v796
        %v1027 = vunpack.c.l.b16 %v797
        %v1028 = vunpack.c.h.b16 %v797
        %v1029 = vunpack.c.l.b16 %v798
        %v1030 = vunpack.c.h.b16 %v798
        %v1031 = vunpack.c.l.b16 %v799
        %v1032 = vunpack.c.h.b16 %v799
        %v1033 = vunpack.c.l.b16 %v800
        %v1034 = vunpack.c.h.b16 %v800
        %v1035 = vunpack.c.l.b16 %v801
        %v1036 = vunpack.c.h.b16 %v801
        %v1037 = vunpack.c.l.b16 %v802
        %v1038 = vunpack.c.h.b16 %v802
        %v1039 = vunpack.c.l.b16 %v803
        %v1040 = vunpack.c.h.b16 %v803
        %v1041 = vunpack.c.l.b16 %v804
        %v1042 = vunpack.c.h.b16 %v804
        %v1043 = vunpack.c.l.b16 %v805
        %v1044 = vunpack.c.h.b16 %v805
        %v1045 = vunpack.c.l.b16 %v806
        %v1046 = vunpack.c.h.b16 %v806
        %v1047 = vunpack.c.l.b16 %v807
        %v1048 = vunpack.c.h.b16 %v807
        %v1049 = vunpack.c.l.b16 %v808
        %v1050 = vunpack.c.h.b16 %v808
        %v1051 = vunpack.c.l.b16 %v809
        %v1052 = vunpack.c.h.b16 %v809
        %v1053 = vunpack.c.l.b16 %v810
        %v1054 = vunpack.c.h.b16 %v810
        %v1055 = vunpack.c.l.b16 %v811
        %v1056 = vunpack.c.h.b16 %v811
        %v1057 = vunpack.c.l.b16 %v812
        %v1058 = vunpack.c.h.b16 %v812
        %v1059 = vunpack.c.l.b16 %v813
        %v1060 = vunpack.c.h.b16 %v813
        %v1061 = vunpack.c.l.b16 %v814
        %v1062 = vunpack.c.h.b16 %v814
        %v1063 = vunpack.c.l.b16 %v815
        %v1064 = vunpack.c.h.b16 %v815
        %v1065 = vunpack.c.l.b16 %v816
        %v1066 = vunpack.c.h.b16 %v816
        %v1067 = vunpack.c.l.b16 %v817
        %v1068 = vunpack.c.h.b16 %v817
        %v1069 = vunpack.c.l.b16 %v818
        %v1070 = vunpack.c.h.b16 %v818
        %v1071 = vunpack.c.l.b16 %v819
        %v1072 = vunpack.c.h.b16 %v819
        %v1073 = vunpack.c.l.b16 %v820
        %v1074 = vunpack.c.h.b16 %v820
        %v1075 = vunpack.c.l.b16 %v821
        %v1076 = vunpack.c.h.b16 %v821
        %v1077 = vunpack.c.l.b16 %v822
        %v1078 = vunpack.c.h.b16 %v822
        %v1079 = vpack.c.b16 %v953, %v951
        %v1080 = vpack.c.b16 %v954, %v952
        %v1081 = vpack.c.b16 %v957, %v955
        %v1082 = vpack.c.b16 %v958, %v956
        %v1083 = vpack.c.b16 %v961, %v959
        %v1084 = vpack.c.b16 %v962, %v960
        %v1085 = vpack.c.b16 %v965, %v963
        %v1086 = vpack.c.b16 %v966, %v964
        %v1087 = vpack.c.b16 %v969, %v967
        %v1088 = vpack.c.b16 %v970, %v968
        %v1089 = vpack.c.b16 %v973, %v971
        %v1090 = vpack.c.b16 %v974, %v972
        %v1091 = vpack.c.b16 %v977, %v975
        %v1092 = vpack.c.b16 %v978, %v976
        %v1093 = vpack.c.b16 %v981, %v979
        %v1094 = vpack.c.b16 %v982, %v980
        %v1095 = vpack.c.b16 %v985, %v983
        %v1096 = vpack.c.b16 %v986, %v984
        %v1097 = vpack.c.b16 %v989, %v987
        %v1098 = vpack.c.b16 %v990, %v988
        %v1099 = vpack.c.b16 %v993, %v991
        %v1100 = vpack.c.b16 %v994, %v992
        %v1101 = vpack.c.b16 %v997, %v995
        %v1102 = vpack.c.b16 %v998, %v996
        %v1103 = vpack.c.b16 %v1001, %v999
        %v1104 = vpack.c.b16 %v1002, %v1000
        %v1105 = vpack.c.b16 %v1005, %v1003
        %v1106 = vpack.c.b16 %v1006, %v1004
        %v1107 = vpack.c.b16 %v1009, %v1007
        %v1108 = vpack.c.b16 %v1010, %v1008
        %v1109 = vpack.c.b16 %v1013, %v1011
        %v1110 = vpack.c.b16 %v1014, %v1012
        %v1111 = vpack.c.b16 %v1017, %v1015
        %v1112 = vpack.c.b16 %v1018, %v1016
        %v1113 = vpack.c.b16 %v1021, %v1019
        %v1114 = vpack.c.b16 %v1022, %v1020
        %v1115 = vpack.c.b16 %v1025, %v1023
        %v1116 = vpack.c.b16 %v1026, %v1024
        %v1117 = vpack.c.b16 %v1029, %v1027
        %v1118 = vpack.c.b16 %v1030, %v1028
        %v1119 = vpack.c.b16 %v1033, %v1031
        %v1120 = vpack.c.b16 %v1034, %v1032
        %v1121 = vpack.c.b16 %v1037, %v1035
        %v1122 = vpack.c.b16 %v1038, %v1036
        %v1123 = vpack.c.b16 %v1041, %v1039
        %v1124 = vpack.c.b16 %v1042, %v1040
        %v1125 = vpack.c.b16 %v1045, %v1043
        %v1126 = vpack.c.b16 %v1046, %v1044
        %v1127 = vpack.c.b16 %v1049, %v1047
        %v1128 = vpack.c.b16 %v1050, %v1048
        %v1129 = vpack.c.b16 %v1053, %v1051
        %v1130 = vpack.c.b16 %v1054, %v1052
        %v1131 = vpack.c.b16 %v1057, %v1055
        %v1132 = vpack.c.b16 %v1058, %v1056
        %v1133 = vpack.c.b16 %v1061, %v1059
        %v1134 = vpack.c.b16 %v1062, %v1060
        %v1135 = vpack.c.b16 %v1065, %v1063
        %v1136 = vpack.c.b16 %v1066, %v1064
        %v1137 = vpack.c.b16 %v1069, %v1067
        %v1138 = vpack.c.b16 %v1070, %v1068
        %v1139 = vpack.c.b16 %v1073, %v1071
        %v1140 = vpack.c.b16 %v1074, %v1072
        %v1141 = vpack.c.b16 %v1077, %v1075
        %v1142 = vpack.c.b16 %v1078, %v1076
        %v1271 = vunpack.c.l.b16 %v823
        %v1272 = vunpack.c.h.b16 %v823
        %v1273 = vunpack.c.l.b16 %v824
        %v1274 = vunpack.c.h.b16 %v824
        %v1275 = vunpack.c.l.b16 %v825
        %v1276 = vunpack.c.h.b16 %v825
        %v1277 = vunpack.c.l.b16 %v826
        %v1278 = vunpack.c.h.b16 %v826
        %v1279 = vunpack.c.l.b16 %v827
        %v1280 = vunpack.c.h.b16 %v827
        %v1281 = vunpack.c.l.b16 %v828
        %v1282 = vunpack.c.h.b16 %v828
        %v1283 = vunpack.c.l.b16 %v829
        %v1284 = vunpack.c.h.b16 %v829
        %v1285 = vunpack.c.l.b16 %v830
        %v1286 = vunpack.c.h.b16 %v830
        %v1287 = vunpack.c.l.b16 %v831
        %v1288 = vunpack.c.h.b16 %v831
        %v1289 = vunpack.c.l.b16 %v832
        %v1290 = vunpack.c.h.b16 %v832
        %v1291 = vunpack.c.l.b16 %v833
        %v1292 = vunpack.c.h.b16 %v833
        %v1293 = vunpack.c.l.b16 %v834
        %v1294 = vunpack.c.h.b16 %v834
        %v1295 = vunpack.c.l.b16 %v835
        %v1296 = vunpack.c.h.b16 %v835
        %v1297 = vunpack.c.l.b16 %v836
        %v1298 = vunpack.c.h.b16 %v836
        %v1299 = vunpack.c.l.b16 %v837
        %v1300 = vunpack.c.h.b16 %v837
        %v1301 = vunpack.c.l.b16 %v838
        %v1302 = vunpack.c.h.b16 %v838
        %v1303 = vunpack.c.l.b16 %v839
        %v1304 = vunpack.c.h.b16 %v839
        %v1305 = vunpack.c.l.b16 %v840
        %v1306 = vunpack.c.h.b16 %v840
        %v1307 = vunpack.c.l.b16 %v841
        %v1308 = vunpack.c.h.b16 %v841
        %v1309 = vunpack.c.l.b16 %v842
        %v1310 = vunpack.c.h.b16 %v842
        %v1311 = vunpack.c.l.b16 %v843
        %v1312 = vunpack.c.h.b16 %v843
        %v1313 = vunpack.c.l.b16 %v844
        %v1314 = vunpack.c.h.b16 %v844
        %v1315 = vunpack.c.l.b16 %v845
        %v1316 = vunpack.c.h.b16 %v845
        %v1317 = vunpack.c.l.b16 %v846
        %v1318 = vunpack.c.h.b16 %v846
        %v1319 = vunpack.c.l.b16 %v847
        %v1320 = vunpack.c.h.b16 %v847
        %v1321 = vunpack.c.l.b16 %v848
        %v1322 = vunpack.c.h.b16 %v848
        %v1323 = vunpack.c.l.b16 %v849
        %v1324 = vunpack.c.h.b16 %v849
        %v1325 = vunpack.c.l.b16 %v850
        %v1326 = vunpack.c.h.b16 %v850
        %v1327 = vunpack.c.l.b16 %v851
        %v1328 = vunpack.c.h.b16 %v851
        %v1329 = vunpack.c.l.b16 %v852
        %v1330 = vunpack.c.h.b16 %v852
        %v1331 = vunpack.c.l.b16 %v853
        %v1332 = vunpack.c.h.b16 %v853
        %v1333 = vunpack.c.l.b16 %v854
        %v1334 = vunpack.c.h.b16 %v854
        %v1335 = vunpack.c.l.b16 %v855
        %v1336 = vunpack.c.h.b16 %v855
        %v1337 = vunpack.c.l.b16 %v856
        %v1338 = vunpack.c.h.b16 %v856
        %v1339 = vunpack.c.l.b16 %v857
        %v1340 = vunpack.c.h.b16 %v857
        %v1341 = vunpack.c.l.b16 %v858
        %v1342 = vunpack.c.h.b16 %v858
        %v1343 = vunpack.c.l.b16 %v859
        %v1344 = vunpack.c.h.b16 %v859
        %v1345 = vunpack.c.l.b16 %v860
        %v1346 = vunpack.c.h.b16 %v860
        %v1347 = vunpack.c.l.b16 %v861
        %v1348 = vunpack.c.h.b16 %v861
        %v1349 = vunpack.c.l.b16 %v862
        %v1350 = vunpack.c.h.b16 %v862
        %v1351 = vunpack.c.l.b16 %v863
        %v1352 = vunpack.c.h.b16 %v863
        %v1353 = vunpack.c.l.b16 %v864
        %v1354 = vunpack.c.h.b16 %v864
        %v1355 = vunpack.c.l.b16 %v865
        %v1356 = vunpack.c.h.b16 %v865
        %v1357 = vunpack.c.l.b16 %v866
        %v1358 = vunpack.c.h.b16 %v866
        %v1359 = vunpack.c.l.b16 %v867
        %v1360 = vunpack.c.h.b16 %v867
        %v1361 = vunpack.c.l.b16 %v868
        %v1362 = vunpack.c.h.b16 %v868
        %v1363 = vunpack.c.l.b16 %v869
        %v1364 = vunpack.c.h.b16 %v869
        %v1365 = vunpack.c.l.b16 %v870
        %v1366 = vunpack.c.h.b16 %v870
        %v1367 = vunpack.c.l.b16 %v871
        %v1368 = vunpack.c.h.b16 %v871
        %v1369 = vunpack.c.l.b16 %v872
        %v1370 = vunpack.c.h.b16 %v872
        %v1371 = vunpack.c.l.b16 %v873
        %v1372 = vunpack.c.h.b16 %v873
        %v1373 = vunpack.c.l.b16 %v874
        %v1374 = vunpack.c.h.b16 %v874
        %v1375 = vunpack.c.l.b16 %v875
        %v1376 = vunpack.c.h.b16 %v875
        %v1377 = vunpack.c.l.b16 %v876
        %v1378 = vunpack.c.h.b16 %v876
        %v1379 = vunpack.c.l.b16 %v877
        %v1380 = vunpack.c.h.b16 %v877
        %v1381 = vunpack.c.l.b16 %v878
        %v1382 = vunpack.c.h.b16 %v878
        %v1383 = vunpack.c.l.b16 %v879
        %v1384 = vunpack.c.h.b16 %v879
        %v1385 = vunpack.c.l.b16 %v880
        %v1386 = vunpack.c.h.b16 %v880
        %v1387 = vunpack.c.l.b16 %v881
        %v1388 = vunpack.c.h.b16 %v881
        %v1389 = vunpack.c.l.b16 %v882
        %v1390 = vunpack.c.h.b16 %v882
        %v1391 = vunpack.c.l.b16 %v883
        %v1392 = vunpack.c.h.b16 %v883
        %v1393 = vunpack.c.l.b16 %v884
        %v1394 = vunpack.c.h.b16 %v884
        %v1395 = vunpack.c.l.b16 %v885
        %v1396 = vunpack.c.h.b16 %v885
        %v1397 = vunpack.c.l.b16 %v886
        %v1398 = vunpack.c.h.b16 %v886
        %v1399 = vpack.c.b16 %v1275, %v1271
        %v1400 = vpack.c.b16 %v1276, %v1272
        %v1401 = vpack.c.b16 %v1277, %v1273
        %v1402 = vpack.c.b16 %v1278, %v1274
        %v1403 = vpack.c.b16 %v1283, %v1279
        %v1404 = vpack.c.b16 %v1284, %v1280
        %v1405 = vpack.c.b16 %v1285, %v1281
        %v1406 = vpack.c.b16 %v1286, %v1282
        %v1407 = vpack.c.b16 %v1291, %v1287
        %v1408 = vpack.c.b16 %v1292, %v1288
        %v1409 = vpack.c.b16 %v1293, %v1289
        %v1410 = vpack.c.b16 %v1294, %v1290
        %v1411 = vpack.c.b16 %v1299, %v1295
        %v1412 = vpack.c.b16 %v1300, %v1296
        %v1413 = vpack.c.b16 %v1301, %v1297
        %v1414 = vpack.c.b16 %v1302, %v1298
        %v1415 = vpack.c.b16 %v1307, %v1303
        %v1416 = vpack.c.b16 %v1308, %v1304
        %v1417 = vpack.c.b16 %v1309, %v1305
        %v1418 = vpack.c.b16 %v1310, %v1306
        %v1419 = vpack.c.b16 %v1315, %v1311
        %v1420 = vpack.c.b16 %v1316, %v1312
        %v1421 = vpack.c.b16 %v1317, %v1313
        %v1422 = vpack.c.b16 %v1318, %v1314
        %v1423 = vpack.c.b16 %v1323, %v1319
        %v1424 = vpack.c.b16 %v1324, %v1320
        %v1425 = vpack.c.b16 %v1325, %v1321
        %v1426 = vpack.c.b16 %v1326, %v1322
        %v1427 = vpack.c.b16 %v1331, %v1327
        %v1428 = vpack.c.b16 %v1332, %v1328
        %v1429 = vpack.c.b16 %v1333, %v1329
        %v1430 = vpack.c.b16 %v1334, %v1330
        %v1431 = vpack.c.b16 %v1339, %v1335
        %v1432 = vpack.c.b16 %v1340, %v1336
        %v1433 = vpack.c.b16 %v1341, %v1337
        %v1434 = vpack.c.b16 %v1342, %v1338
        %v1435 = vpack.c.b16 %v1347, %v1343
        %v1436 = vpack.c.b16 %v1348, %v1344
        %v1437 = vpack.c.b16 %v1349, %v1345
        %v1438 = vpack.c.b16 %v1350, %v1346
        %v1439 = vpack.c.b16 %v1355, %v1351
        %v1440 = vpack.c.b16 %v1356, %v1352
        %v1441 = vpack.c.b16 %v1357, %v1353
        %v1442 = vpack.c.b16 %v1358, %v1354
        %v1443 = vpack.c.b16 %v1363, %v1359
        %v1444 = vpack.c.b16 %v1364, %v1360
        %v1445 = vpack.c.b16 %v1365, %v1361
        %v1446 = vpack.c.b16 %v1366, %v1362
        %v1447 = vpack.c.b16 %v1371, %v1367
        %v1448 = vpack.c.b16 %v1372, %v1368
        %v1449 = vpack.c.b16 %v1373, %v1369
        %v1450 = vpack.c.b16 %v1374, %v1370
        %v1451 = vpack.c.b16 %v1379, %v1375
        %v1452 = vpack.c.b16 %v1380, %v1376
        %v1453 = vpack.c.b16 %v1381, %v1377
        %v1454 = vpack.c.b16 %v1382, %v1378
        %v1455 = vpack.c.b16 %v1387, %v1383
        %v1456 = vpack.c.b16 %v1388, %v1384
        %v1457 = vpack.c.b16 %v1389, %v1385
        %v1458 = vpack.c.b16 %v1390, %v1386
        %v1459 = vpack.c.b16 %v1395, %v1391
        %v1460 = vpack.c.b16 %v1396, %v1392
        %v1461 = vpack.c.b16 %v1397, %v1393
        %v1462 = vpack.c.b16 %v1398, %v1394
        %1527 = vmatpush.bf16.msra.mxu0 %v1427
        %1528 = vmatpush.bf16.msra.mxu0 %v1423
        %1529 = vmatpush.bf16.msra.mxu0 %v1419
        %1530 = vmatpush.bf16.msra.mxu0 %v1415
        %1531 = vmatpush.bf16.msra.mxu0 %v1411
        %1532 = vmatpush.bf16.msra.mxu0 %v1407
        %1533 = vmatpush.bf16.msra.mxu0 %v1403
        %1534 = vmatpush.bf16.msra.mxu0 %v1399
        %1535 = vmatmul.bf16.gmra.mxu0 %v1079
        %v1536 = vpop.f32.mrf.mxu0
        %v1537 = vadd.f32 0.0, %v1536
        %v1538 = vpop.f32.mrf.mxu0
        %v1539 = vadd.f32 0.0, %v1538
        %1540 = vmatmul.bf16.gmra.mxu0 %v1081
        %v1541 = vpop.f32.mrf.mxu0
        %v1542 = vadd.f32 0.0, %v1541
        %v1543 = vpop.f32.mrf.mxu0
        %v1544 = vadd.f32 0.0, %v1543
        %1545 = vmatmul.bf16.gmra.mxu0 %v1083
        %v1546 = vpop.f32.mrf.mxu0
        %v1547 = vadd.f32 0.0, %v1546
        %v1548 = vpop.f32.mrf.mxu0
        %v1549 = vadd.f32 0.0, %v1548
        %1550 = vmatmul.bf16.gmra.mxu0 %v1085
        %v1551 = vpop.f32.mrf.mxu0
        %v1552 = vadd.f32 0.0, %v1551
        %v1553 = vpop.f32.mrf.mxu0
        %v1554 = vadd.f32 0.0, %v1553
        %1555 = vmatmul.bf16.gmra.mxu0 %v1087
        %v1556 = vpop.f32.mrf.mxu0
        %v1557 = vadd.f32 0.0, %v1556
        %v1558 = vpop.f32.mrf.mxu0
        %v1559 = vadd.f32 0.0, %v1558
        %1560 = vmatmul.bf16.gmra.mxu0 %v1089
        %v1561 = vpop.f32.mrf.mxu0
        %v1562 = vadd.f32 0.0, %v1561
        %v1563 = vpop.f32.mrf.mxu0
        %v1564 = vadd.f32 0.0, %v1563
        %1565 = vmatmul.bf16.gmra.mxu0 %v1091
        %v1566 = vpop.f32.mrf.mxu0
        %v1567 = vadd.f32 0.0, %v1566
        %v1568 = vpop.f32.mrf.mxu0
        %v1569 = vadd.f32 0.0, %v1568
        %1570 = vmatmul.bf16.gmra.mxu0 %v1093
        %v1571 = vpop.f32.mrf.mxu0
        %v1572 = vadd.f32 0.0, %v1571
        %v1573 = vpop.f32.mrf.mxu0
        %v1574 = vadd.f32 0.0, %v1573
        %1575 = vmatmul.bf16.gmra.mxu0 %v1095
        %v1576 = vpop.f32.mrf.mxu0
        %v1577 = vadd.f32 0.0, %v1576
        %v1578 = vpop.f32.mrf.mxu0
        %v1579 = vadd.f32 0.0, %v1578
        %1580 = vmatmul.bf16.gmra.mxu0 %v1097
        %v1581 = vpop.f32.mrf.mxu0
        %v1582 = vadd.f32 0.0, %v1581
        %v1583 = vpop.f32.mrf.mxu0
        %v1584 = vadd.f32 0.0, %v1583
        %1585 = vmatmul.bf16.gmra.mxu0 %v1099
        %v1586 = vpop.f32.mrf.mxu0
        %v1587 = vadd.f32 0.0, %v1586
        %v1588 = vpop.f32.mrf.mxu0
        %v1589 = vadd.f32 0.0, %v1588
        %1590 = vmatmul.bf16.gmra.mxu0 %v1101
        %v1591 = vpop.f32.mrf.mxu0
        %v1592 = vadd.f32 0.0, %v1591
        %v1593 = vpop.f32.mrf.mxu0
        %v1594 = vadd.f32 0.0, %v1593
        %1595 = vmatmul.bf16.gmra.mxu0 %v1103
        %v1596 = vpop.f32.mrf.mxu0
        %v1597 = vadd.f32 0.0, %v1596
        %v1598 = vpop.f32.mrf.mxu0
        %v1599 = vadd.f32 0.0, %v1598
        %1600 = vmatmul.bf16.gmra.mxu0 %v1105
        %v1601 = vpop.f32.mrf.mxu0
        %v1602 = vadd.f32 0.0, %v1601
        %v1603 = vpop.f32.mrf.mxu0
        %v1604 = vadd.f32 0.0, %v1603
        %1605 = vmatmul.bf16.gmra.mxu0 %v1107
        %v1606 = vpop.f32.mrf.mxu0
        %v1607 = vadd.f32 0.0, %v1606
        %v1608 = vpop.f32.mrf.mxu0
        %v1609 = vadd.f32 0.0, %v1608
        %1610 = vmatmul.bf16.gmra.mxu0 %v1109
        %v1611 = vpop.f32.mrf.mxu0
        %v1612 = vadd.f32 0.0, %v1611
        %v1613 = vpop.f32.mrf.mxu0
        %v1614 = vadd.f32 0.0, %v1613
        %1615 = vmatmul.bf16.gmra.mxu0 %v1111
        %v1616 = vpop.f32.mrf.mxu0
        %v1617 = vadd.f32 0.0, %v1616
        %v1618 = vpop.f32.mrf.mxu0
        %v1619 = vadd.f32 0.0, %v1618
        %1620 = vmatmul.bf16.gmra.mxu0 %v1113
        %v1621 = vpop.f32.mrf.mxu0
        %v1622 = vadd.f32 0.0, %v1621
        %v1623 = vpop.f32.mrf.mxu0
        %v1624 = vadd.f32 0.0, %v1623
        %1625 = vmatmul.bf16.gmra.mxu0 %v1115
        %v1626 = vpop.f32.mrf.mxu0
        %v1627 = vadd.f32 0.0, %v1626
        %v1628 = vpop.f32.mrf.mxu0
        %v1629 = vadd.f32 0.0, %v1628
        %1630 = vmatmul.bf16.gmra.mxu0 %v1117
        %v1631 = vpop.f32.mrf.mxu0
        %v1632 = vadd.f32 0.0, %v1631
        %v1633 = vpop.f32.mrf.mxu0
        %v1634 = vadd.f32 0.0, %v1633
        %1635 = vmatmul.bf16.gmra.mxu0 %v1119
        %v1636 = vpop.f32.mrf.mxu0
        %v1637 = vadd.f32 0.0, %v1636
        %v1638 = vpop.f32.mrf.mxu0
        %v1639 = vadd.f32 0.0, %v1638
        %1640 = vmatmul.bf16.gmra.mxu0 %v1121
        %v1641 = vpop.f32.mrf.mxu0
        %v1642 = vadd.f32 0.0, %v1641
        %v1643 = vpop.f32.mrf.mxu0
        %v1644 = vadd.f32 0.0, %v1643
        %1645 = vmatmul.bf16.gmra.mxu0 %v1123
        %v1646 = vpop.f32.mrf.mxu0
        %v1647 = vadd.f32 0.0, %v1646
        %v1648 = vpop.f32.mrf.mxu0
        %v1649 = vadd.f32 0.0, %v1648
        %1650 = vmatmul.bf16.gmra.mxu0 %v1125
        %v1651 = vpop.f32.mrf.mxu0
        %v1652 = vadd.f32 0.0, %v1651
        %v1653 = vpop.f32.mrf.mxu0
        %v1654 = vadd.f32 0.0, %v1653
        %1655 = vmatmul.bf16.gmra.mxu0 %v1127
        %v1656 = vpop.f32.mrf.mxu0
        %v1657 = vadd.f32 0.0, %v1656
        %v1658 = vpop.f32.mrf.mxu0
        %v1659 = vadd.f32 0.0, %v1658
        %1660 = vmatmul.bf16.gmra.mxu0 %v1129
        %v1661 = vpop.f32.mrf.mxu0
        %v1662 = vadd.f32 0.0, %v1661
        %v1663 = vpop.f32.mrf.mxu0
        %v1664 = vadd.f32 0.0, %v1663
        %1665 = vmatmul.bf16.gmra.mxu0 %v1131
        %v1666 = vpop.f32.mrf.mxu0
        %v1667 = vadd.f32 0.0, %v1666
        %v1668 = vpop.f32.mrf.mxu0
        %v1669 = vadd.f32 0.0, %v1668
        %1670 = vmatmul.bf16.gmra.mxu0 %v1133
        %v1671 = vpop.f32.mrf.mxu0
        %v1672 = vadd.f32 0.0, %v1671
        %v1673 = vpop.f32.mrf.mxu0
        %v1674 = vadd.f32 0.0, %v1673
        %1675 = vmatmul.bf16.gmra.mxu0 %v1135
        %v1676 = vpop.f32.mrf.mxu0
        %v1677 = vadd.f32 0.0, %v1676
        %v1678 = vpop.f32.mrf.mxu0
        %v1679 = vadd.f32 0.0, %v1678
        %1680 = vmatmul.bf16.gmra.mxu0 %v1137
        %v1681 = vpop.f32.mrf.mxu0
        %v1682 = vadd.f32 0.0, %v1681
        %v1683 = vpop.f32.mrf.mxu0
        %v1684 = vadd.f32 0.0, %v1683
        %1685 = vmatmul.bf16.gmra.mxu0 %v1139
        %v1686 = vpop.f32.mrf.mxu0
        %v1687 = vadd.f32 0.0, %v1686
        %v1688 = vpop.f32.mrf.mxu0
        %v1689 = vadd.f32 0.0, %v1688
        %1690 = vmatmul.bf16.gmra.mxu0 %v1141
        %v1691 = vpop.f32.mrf.mxu0
        %v1692 = vadd.f32 0.0, %v1691
        %v1693 = vpop.f32.mrf.mxu0
        %v1694 = vadd.f32 0.0, %v1693
        %1695 = vdwg.mxu0
        %1696 = vmatpush.bf16.msra.mxu0 %v1459
        %1697 = vmatpush.bf16.msra.mxu0 %v1455
        %1698 = vmatpush.bf16.msra.mxu0 %v1451
        %1699 = vmatpush.bf16.msra.mxu0 %v1447
        %1700 = vmatpush.bf16.msra.mxu0 %v1443
        %1701 = vmatpush.bf16.msra.mxu0 %v1439
        %1702 = vmatpush.bf16.msra.mxu0 %v1435
        %1703 = vmatpush.bf16.msra.mxu0 %v1431
        %1704 = vmatmul.bf16.gmra.mxu0 %v1080
        %v1705 = vpop.f32.mrf.mxu0
        %v1706 = vadd.f32 %v1537, %v1705
        %v1707 = vpop.f32.mrf.mxu0
        %v1708 = vadd.f32 %v1539, %v1707
        %1709 = vmatmul.bf16.gmra.mxu0 %v1082
        %v1710 = vpop.f32.mrf.mxu0
        %v1711 = vadd.f32 %v1542, %v1710
        %v1712 = vpop.f32.mrf.mxu0
        %v1713 = vadd.f32 %v1544, %v1712
        %1714 = vmatmul.bf16.gmra.mxu0 %v1084
        %v1715 = vpop.f32.mrf.mxu0
        %v1716 = vadd.f32 %v1547, %v1715
        %v1717 = vpop.f32.mrf.mxu0
        %v1718 = vadd.f32 %v1549, %v1717
        %1719 = vmatmul.bf16.gmra.mxu0 %v1086
        %v1720 = vpop.f32.mrf.mxu0
        %v1721 = vadd.f32 %v1552, %v1720
        %v1722 = vpop.f32.mrf.mxu0
        %v1723 = vadd.f32 %v1554, %v1722
        %1724 = vmatmul.bf16.gmra.mxu0 %v1088
        %v1725 = vpop.f32.mrf.mxu0
        %v1726 = vadd.f32 %v1557, %v1725
        %v1727 = vpop.f32.mrf.mxu0
        %v1728 = vadd.f32 %v1559, %v1727
        %1729 = vmatmul.bf16.gmra.mxu0 %v1090
        %v1730 = vpop.f32.mrf.mxu0
        %v1731 = vadd.f32 %v1562, %v1730
        %v1732 = vpop.f32.mrf.mxu0
        %v1733 = vadd.f32 %v1564, %v1732
        %1734 = vmatmul.bf16.gmra.mxu0 %v1092
        %v1735 = vpop.f32.mrf.mxu0
        %v1736 = vadd.f32 %v1567, %v1735
        %v1737 = vpop.f32.mrf.mxu0
        %v1738 = vadd.f32 %v1569, %v1737
        %1739 = vmatmul.bf16.gmra.mxu0 %v1094
        %v1740 = vpop.f32.mrf.mxu0
        %v1741 = vadd.f32 %v1572, %v1740
        %v1742 = vpop.f32.mrf.mxu0
        %v1743 = vadd.f32 %v1574, %v1742
        %1744 = vmatmul.bf16.gmra.mxu0 %v1096
        %v1745 = vpop.f32.mrf.mxu0
        %v1746 = vadd.f32 %v1577, %v1745
        %v1747 = vpop.f32.mrf.mxu0
        %v1748 = vadd.f32 %v1579, %v1747
        %1749 = vmatmul.bf16.gmra.mxu0 %v1098
        %v1750 = vpop.f32.mrf.mxu0
        %v1751 = vadd.f32 %v1582, %v1750
        %v1752 = vpop.f32.mrf.mxu0
        %v1753 = vadd.f32 %v1584, %v1752
        %1754 = vmatmul.bf16.gmra.mxu0 %v1100
        %v1755 = vpop.f32.mrf.mxu0
        %v1756 = vadd.f32 %v1587, %v1755
        %v1757 = vpop.f32.mrf.mxu0
        %v1758 = vadd.f32 %v1589, %v1757
        %1759 = vmatmul.bf16.gmra.mxu0 %v1102
        %v1760 = vpop.f32.mrf.mxu0
        %v1761 = vadd.f32 %v1592, %v1760
        %v1762 = vpop.f32.mrf.mxu0
        %v1763 = vadd.f32 %v1594, %v1762
        %1764 = vmatmul.bf16.gmra.mxu0 %v1104
        %v1765 = vpop.f32.mrf.mxu0
        %v1766 = vadd.f32 %v1597, %v1765
        %v1767 = vpop.f32.mrf.mxu0
        %v1768 = vadd.f32 %v1599, %v1767
        %1769 = vmatmul.bf16.gmra.mxu0 %v1106
        %v1770 = vpop.f32.mrf.mxu0
        %v1771 = vadd.f32 %v1602, %v1770
        %v1772 = vpop.f32.mrf.mxu0
        %v1773 = vadd.f32 %v1604, %v1772
        %1774 = vmatmul.bf16.gmra.mxu0 %v1108
        %v1775 = vpop.f32.mrf.mxu0
        %v1776 = vadd.f32 %v1607, %v1775
        %v1777 = vpop.f32.mrf.mxu0
        %v1778 = vadd.f32 %v1609, %v1777
        %1779 = vmatmul.bf16.gmra.mxu0 %v1110
        %v1780 = vpop.f32.mrf.mxu0
        %v1781 = vadd.f32 %v1612, %v1780
        %v1782 = vpop.f32.mrf.mxu0
        %v1783 = vadd.f32 %v1614, %v1782
        %1784 = vmatmul.bf16.gmra.mxu0 %v1112
        %v1785 = vpop.f32.mrf.mxu0
        %v1786 = vadd.f32 %v1617, %v1785
        %v1787 = vpop.f32.mrf.mxu0
        %v1788 = vadd.f32 %v1619, %v1787
        %1789 = vmatmul.bf16.gmra.mxu0 %v1114
        %v1790 = vpop.f32.mrf.mxu0
        %v1791 = vadd.f32 %v1622, %v1790
        %v1792 = vpop.f32.mrf.mxu0
        %v1793 = vadd.f32 %v1624, %v1792
        %1794 = vmatmul.bf16.gmra.mxu0 %v1116
        %v1795 = vpop.f32.mrf.mxu0
        %v1796 = vadd.f32 %v1627, %v1795
        %v1797 = vpop.f32.mrf.mxu0
        %v1798 = vadd.f32 %v1629, %v1797
        %1799 = vmatmul.bf16.gmra.mxu0 %v1118
        %v1800 = vpop.f32.mrf.mxu0
        %v1801 = vadd.f32 %v1632, %v1800
        %v1802 = vpop.f32.mrf.mxu0
        %v1803 = vadd.f32 %v1634, %v1802
        %1804 = vmatmul.bf16.gmra.mxu0 %v1120
        %v1805 = vpop.f32.mrf.mxu0
        %v1806 = vadd.f32 %v1637, %v1805
        %v1807 = vpop.f32.mrf.mxu0
        %v1808 = vadd.f32 %v1639, %v1807
        %1809 = vmatmul.bf16.gmra.mxu0 %v1122
        %v1810 = vpop.f32.mrf.mxu0
        %v1811 = vadd.f32 %v1642, %v1810
        %v1812 = vpop.f32.mrf.mxu0
        %v1813 = vadd.f32 %v1644, %v1812
        %1814 = vmatmul.bf16.gmra.mxu0 %v1124
        %v1815 = vpop.f32.mrf.mxu0
        %v1816 = vadd.f32 %v1647, %v1815
        %v1817 = vpop.f32.mrf.mxu0
        %v1818 = vadd.f32 %v1649, %v1817
        %1819 = vmatmul.bf16.gmra.mxu0 %v1126
        %v1820 = vpop.f32.mrf.mxu0
        %v1821 = vadd.f32 %v1652, %v1820
        %v1822 = vpop.f32.mrf.mxu0
        %v1823 = vadd.f32 %v1654, %v1822
        %1824 = vmatmul.bf16.gmra.mxu0 %v1128
        %v1825 = vpop.f32.mrf.mxu0
        %v1826 = vadd.f32 %v1657, %v1825
        %v1827 = vpop.f32.mrf.mxu0
        %v1828 = vadd.f32 %v1659, %v1827
        %1829 = vmatmul.bf16.gmra.mxu0 %v1130
        %v1830 = vpop.f32.mrf.mxu0
        %v1831 = vadd.f32 %v1662, %v1830
        %v1832 = vpop.f32.mrf.mxu0
        %v1833 = vadd.f32 %v1664, %v1832
        %1834 = vmatmul.bf16.gmra.mxu0 %v1132
        %v1835 = vpop.f32.mrf.mxu0
        %v1836 = vadd.f32 %v1667, %v1835
        %v1837 = vpop.f32.mrf.mxu0
        %v1838 = vadd.f32 %v1669, %v1837
        %1839 = vmatmul.bf16.gmra.mxu0 %v1134
        %v1840 = vpop.f32.mrf.mxu0
        %v1841 = vadd.f32 %v1672, %v1840
        %v1842 = vpop.f32.mrf.mxu0
        %v1843 = vadd.f32 %v1674, %v1842
        %1844 = vmatmul.bf16.gmra.mxu0 %v1136
        %v1845 = vpop.f32.mrf.mxu0
        %v1846 = vadd.f32 %v1677, %v1845
        %v1847 = vpop.f32.mrf.mxu0
        %v1848 = vadd.f32 %v1679, %v1847
        %1849 = vmatmul.bf16.gmra.mxu0 %v1138
        %v1850 = vpop.f32.mrf.mxu0
        %v1851 = vadd.f32 %v1682, %v1850
        %v1852 = vpop.f32.mrf.mxu0
        %v1853 = vadd.f32 %v1684, %v1852
        %1854 = vmatmul.bf16.gmra.mxu0 %v1140
        %v1855 = vpop.f32.mrf.mxu0
        %v1856 = vadd.f32 %v1687, %v1855
        %v1857 = vpop.f32.mrf.mxu0
        %v1858 = vadd.f32 %v1689, %v1857
        %1859 = vmatmul.bf16.gmra.mxu0 %v1142
        %v1860 = vpop.f32.mrf.mxu0
        %v1861 = vadd.f32 %v1692, %v1860
        %v1862 = vpop.f32.mrf.mxu0
        %v1863 = vadd.f32 %v1694, %v1862
        %1864 = vdwg.mxu0
        %1865 = vmatpush.bf16.msra.mxu0 %v1428
        %1866 = vmatpush.bf16.msra.mxu0 %v1424
        %1867 = vmatpush.bf16.msra.mxu0 %v1420
        %1868 = vmatpush.bf16.msra.mxu0 %v1416
        %1869 = vmatpush.bf16.msra.mxu0 %v1412
        %1870 = vmatpush.bf16.msra.mxu0 %v1408
        %1871 = vmatpush.bf16.msra.mxu0 %v1404
        %1872 = vmatpush.bf16.msra.mxu0 %v1400
        %1873 = vmatmul.bf16.gmra.mxu0 %v1079
        %v1874 = vpop.f32.mrf.mxu0
        %v1875 = vadd.f32 0.0, %v1874
        %v1876 = vpop.f32.mrf.mxu0
        %v1877 = vadd.f32 0.0, %v1876
        %1878 = vmatmul.bf16.gmra.mxu0 %v1081
        %v1879 = vpop.f32.mrf.mxu0
        %v1880 = vadd.f32 0.0, %v1879
        %v1881 = vpop.f32.mrf.mxu0
        %v1882 = vadd.f32 0.0, %v1881
        %1883 = vmatmul.bf16.gmra.mxu0 %v1083
        %v1884 = vpop.f32.mrf.mxu0
        %v1885 = vadd.f32 0.0, %v1884
        %v1886 = vpop.f32.mrf.mxu0
        %v1887 = vadd.f32 0.0, %v1886
        %1888 = vmatmul.bf16.gmra.mxu0 %v1085
        %v1889 = vpop.f32.mrf.mxu0
        %v1890 = vadd.f32 0.0, %v1889
        %v1891 = vpop.f32.mrf.mxu0
        %v1892 = vadd.f32 0.0, %v1891
        %1893 = vmatmul.bf16.gmra.mxu0 %v1087
        %v1894 = vpop.f32.mrf.mxu0
        %v1895 = vadd.f32 0.0, %v1894
        %v1896 = vpop.f32.mrf.mxu0
        %v1897 = vadd.f32 0.0, %v1896
        %1898 = vmatmul.bf16.gmra.mxu0 %v1089
        %v1899 = vpop.f32.mrf.mxu0
        %v1900 = vadd.f32 0.0, %v1899
        %v1901 = vpop.f32.mrf.mxu0
        %v1902 = vadd.f32 0.0, %v1901
        %1903 = vmatmul.bf16.gmra.mxu0 %v1091
        %v1904 = vpop.f32.mrf.mxu0
        %v1905 = vadd.f32 0.0, %v1904
        %v1906 = vpop.f32.mrf.mxu0
        %v1907 = vadd.f32 0.0, %v1906
        %1908 = vmatmul.bf16.gmra.mxu0 %v1093
        %v1909 = vpop.f32.mrf.mxu0
        %v1910 = vadd.f32 0.0, %v1909
        %v1911 = vpop.f32.mrf.mxu0
        %v1912 = vadd.f32 0.0, %v1911
        %1913 = vmatmul.bf16.gmra.mxu0 %v1095
        %v1914 = vpop.f32.mrf.mxu0
        %v1915 = vadd.f32 0.0, %v1914
        %v1916 = vpop.f32.mrf.mxu0
        %v1917 = vadd.f32 0.0, %v1916
        %1918 = vmatmul.bf16.gmra.mxu0 %v1097
        %v1919 = vpop.f32.mrf.mxu0
        %v1920 = vadd.f32 0.0, %v1919
        %v1921 = vpop.f32.mrf.mxu0
        %v1922 = vadd.f32 0.0, %v1921
        %1923 = vmatmul.bf16.gmra.mxu0 %v1099
        %v1924 = vpop.f32.mrf.mxu0
        %v1925 = vadd.f32 0.0, %v1924
        %v1926 = vpop.f32.mrf.mxu0
        %v1927 = vadd.f32 0.0, %v1926
        %1928 = vmatmul.bf16.gmra.mxu0 %v1101
        %v1929 = vpop.f32.mrf.mxu0
        %v1930 = vadd.f32 0.0, %v1929
        %v1931 = vpop.f32.mrf.mxu0
        %v1932 = vadd.f32 0.0, %v1931
        %1933 = vmatmul.bf16.gmra.mxu0 %v1103
        %v1934 = vpop.f32.mrf.mxu0
        %v1935 = vadd.f32 0.0, %v1934
        %v1936 = vpop.f32.mrf.mxu0
        %v1937 = vadd.f32 0.0, %v1936
        %1938 = vmatmul.bf16.gmra.mxu0 %v1105
        %v1939 = vpop.f32.mrf.mxu0
        %v1940 = vadd.f32 0.0, %v1939
        %v1941 = vpop.f32.mrf.mxu0
        %v1942 = vadd.f32 0.0, %v1941
        %1943 = vmatmul.bf16.gmra.mxu0 %v1107
        %v1944 = vpop.f32.mrf.mxu0
        %v1945 = vadd.f32 0.0, %v1944
        %v1946 = vpop.f32.mrf.mxu0
        %v1947 = vadd.f32 0.0, %v1946
        %1948 = vmatmul.bf16.gmra.mxu0 %v1109
        %v1949 = vpop.f32.mrf.mxu0
        %v1950 = vadd.f32 0.0, %v1949
        %v1951 = vpop.f32.mrf.mxu0
        %v1952 = vadd.f32 0.0, %v1951
        %1953 = vmatmul.bf16.gmra.mxu0 %v1111
        %v1954 = vpop.f32.mrf.mxu0
        %v1955 = vadd.f32 0.0, %v1954
        %v1956 = vpop.f32.mrf.mxu0
        %v1957 = vadd.f32 0.0, %v1956
        %1958 = vmatmul.bf16.gmra.mxu0 %v1113
        %v1959 = vpop.f32.mrf.mxu0
        %v1960 = vadd.f32 0.0, %v1959
        %v1961 = vpop.f32.mrf.mxu0
        %v1962 = vadd.f32 0.0, %v1961
        %1963 = vmatmul.bf16.gmra.mxu0 %v1115
        %v1964 = vpop.f32.mrf.mxu0
        %v1965 = vadd.f32 0.0, %v1964
        %v1966 = vpop.f32.mrf.mxu0
        %v1967 = vadd.f32 0.0, %v1966
        %1968 = vmatmul.bf16.gmra.mxu0 %v1117
        %v1969 = vpop.f32.mrf.mxu0
        %v1970 = vadd.f32 0.0, %v1969
        %v1971 = vpop.f32.mrf.mxu0
        %v1972 = vadd.f32 0.0, %v1971
        %1973 = vmatmul.bf16.gmra.mxu0 %v1119
        %v1974 = vpop.f32.mrf.mxu0
        %v1975 = vadd.f32 0.0, %v1974
        %v1976 = vpop.f32.mrf.mxu0
        %v1977 = vadd.f32 0.0, %v1976
        %1978 = vmatmul.bf16.gmra.mxu0 %v1121
        %v1979 = vpop.f32.mrf.mxu0
        %v1980 = vadd.f32 0.0, %v1979
        %v1981 = vpop.f32.mrf.mxu0
        %v1982 = vadd.f32 0.0, %v1981
        %1983 = vmatmul.bf16.gmra.mxu0 %v1123
        %v1984 = vpop.f32.mrf.mxu0
        %v1985 = vadd.f32 0.0, %v1984
        %v1986 = vpop.f32.mrf.mxu0
        %v1987 = vadd.f32 0.0, %v1986
        %1988 = vmatmul.bf16.gmra.mxu0 %v1125
        %v1989 = vpop.f32.mrf.mxu0
        %v1990 = vadd.f32 0.0, %v1989
        %v1991 = vpop.f32.mrf.mxu0
        %v1992 = vadd.f32 0.0, %v1991
        %1993 = vmatmul.bf16.gmra.mxu0 %v1127
        %v1994 = vpop.f32.mrf.mxu0
        %v1995 = vadd.f32 0.0, %v1994
        %v1996 = vpop.f32.mrf.mxu0
        %v1997 = vadd.f32 0.0, %v1996
        %1998 = vmatmul.bf16.gmra.mxu0 %v1129
        %v1999 = vpop.f32.mrf.mxu0
        %v2000 = vadd.f32 0.0, %v1999
        %v2001 = vpop.f32.mrf.mxu0
        %v2002 = vadd.f32 0.0, %v2001
        %2003 = vmatmul.bf16.gmra.mxu0 %v1131
        %v2004 = vpop.f32.mrf.mxu0
        %v2005 = vadd.f32 0.0, %v2004
        %v2006 = vpop.f32.mrf.mxu0
        %v2007 = vadd.f32 0.0, %v2006
        %2008 = vmatmul.bf16.gmra.mxu0 %v1133
        %v2009 = vpop.f32.mrf.mxu0
        %v2010 = vadd.f32 0.0, %v2009
        %v2011 = vpop.f32.mrf.mxu0
        %v2012 = vadd.f32 0.0, %v2011
        %2013 = vmatmul.bf16.gmra.mxu0 %v1135
        %v2014 = vpop.f32.mrf.mxu0
        %v2015 = vadd.f32 0.0, %v2014
        %v2016 = vpop.f32.mrf.mxu0
        %v2017 = vadd.f32 0.0, %v2016
        %2018 = vmatmul.bf16.gmra.mxu0 %v1137
        %v2019 = vpop.f32.mrf.mxu0
        %v2020 = vadd.f32 0.0, %v2019
        %v2021 = vpop.f32.mrf.mxu0
        %v2022 = vadd.f32 0.0, %v2021
        %2023 = vmatmul.bf16.gmra.mxu0 %v1139
        %v2024 = vpop.f32.mrf.mxu0
        %v2025 = vadd.f32 0.0, %v2024
        %v2026 = vpop.f32.mrf.mxu0
        %v2027 = vadd.f32 0.0, %v2026
        %2028 = vmatmul.bf16.gmra.mxu0 %v1141
        %v2029 = vpop.f32.mrf.mxu0
        %v2030 = vadd.f32 0.0, %v2029
        %v2031 = vpop.f32.mrf.mxu0
        %v2032 = vadd.f32 0.0, %v2031
        %2033 = vdwg.mxu0
        %2034 = vmatpush.bf16.msra.mxu0 %v1460
        %2035 = vmatpush.bf16.msra.mxu0 %v1456
        %2036 = vmatpush.bf16.msra.mxu0 %v1452
        %2037 = vmatpush.bf16.msra.mxu0 %v1448
        %2038 = vmatpush.bf16.msra.mxu0 %v1444
        %2039 = vmatpush.bf16.msra.mxu0 %v1440
        %2040 = vmatpush.bf16.msra.mxu0 %v1436
        %2041 = vmatpush.bf16.msra.mxu0 %v1432
        %2042 = vmatmul.bf16.gmra.mxu0 %v1080
        %v2043 = vpop.f32.mrf.mxu0
        %v2044 = vadd.f32 %v1875, %v2043
        %v2045 = vpop.f32.mrf.mxu0
        %v2046 = vadd.f32 %v1877, %v2045
        %2047 = vmatmul.bf16.gmra.mxu0 %v1082
        %v2048 = vpop.f32.mrf.mxu0
        %v2049 = vadd.f32 %v1880, %v2048
        %v2050 = vpop.f32.mrf.mxu0
        %v2051 = vadd.f32 %v1882, %v2050
        %2052 = vmatmul.bf16.gmra.mxu0 %v1084
        %v2053 = vpop.f32.mrf.mxu0
        %v2054 = vadd.f32 %v1885, %v2053
        %v2055 = vpop.f32.mrf.mxu0
        %v2056 = vadd.f32 %v1887, %v2055
        %2057 = vmatmul.bf16.gmra.mxu0 %v1086
        %v2058 = vpop.f32.mrf.mxu0
        %v2059 = vadd.f32 %v1890, %v2058
        %v2060 = vpop.f32.mrf.mxu0
        %v2061 = vadd.f32 %v1892, %v2060
        %2062 = vmatmul.bf16.gmra.mxu0 %v1088
        %v2063 = vpop.f32.mrf.mxu0
        %v2064 = vadd.f32 %v1895, %v2063
        %v2065 = vpop.f32.mrf.mxu0
        %v2066 = vadd.f32 %v1897, %v2065
        %2067 = vmatmul.bf16.gmra.mxu0 %v1090
        %v2068 = vpop.f32.mrf.mxu0
        %v2069 = vadd.f32 %v1900, %v2068
        %v2070 = vpop.f32.mrf.mxu0
        %v2071 = vadd.f32 %v1902, %v2070
        %2072 = vmatmul.bf16.gmra.mxu0 %v1092
        %v2073 = vpop.f32.mrf.mxu0
        %v2074 = vadd.f32 %v1905, %v2073
        %v2075 = vpop.f32.mrf.mxu0
        %v2076 = vadd.f32 %v1907, %v2075
        %2077 = vmatmul.bf16.gmra.mxu0 %v1094
        %v2078 = vpop.f32.mrf.mxu0
        %v2079 = vadd.f32 %v1910, %v2078
        %v2080 = vpop.f32.mrf.mxu0
        %v2081 = vadd.f32 %v1912, %v2080
        %2082 = vmatmul.bf16.gmra.mxu0 %v1096
        %v2083 = vpop.f32.mrf.mxu0
        %v2084 = vadd.f32 %v1915, %v2083
        %v2085 = vpop.f32.mrf.mxu0
        %v2086 = vadd.f32 %v1917, %v2085
        %2087 = vmatmul.bf16.gmra.mxu0 %v1098
        %v2088 = vpop.f32.mrf.mxu0
        %v2089 = vadd.f32 %v1920, %v2088
        %v2090 = vpop.f32.mrf.mxu0
        %v2091 = vadd.f32 %v1922, %v2090
        %2092 = vmatmul.bf16.gmra.mxu0 %v1100
        %v2093 = vpop.f32.mrf.mxu0
        %v2094 = vadd.f32 %v1925, %v2093
        %v2095 = vpop.f32.mrf.mxu0
        %v2096 = vadd.f32 %v1927, %v2095
        %2097 = vmatmul.bf16.gmra.mxu0 %v1102
        %v2098 = vpop.f32.mrf.mxu0
        %v2099 = vadd.f32 %v1930, %v2098
        %v2100 = vpop.f32.mrf.mxu0
        %v2101 = vadd.f32 %v1932, %v2100
        %2102 = vmatmul.bf16.gmra.mxu0 %v1104
        %v2103 = vpop.f32.mrf.mxu0
        %v2104 = vadd.f32 %v1935, %v2103
        %v2105 = vpop.f32.mrf.mxu0
        %v2106 = vadd.f32 %v1937, %v2105
        %2107 = vmatmul.bf16.gmra.mxu0 %v1106
        %v2108 = vpop.f32.mrf.mxu0
        %v2109 = vadd.f32 %v1940, %v2108
        %v2110 = vpop.f32.mrf.mxu0
        %v2111 = vadd.f32 %v1942, %v2110
        %2112 = vmatmul.bf16.gmra.mxu0 %v1108
        %v2113 = vpop.f32.mrf.mxu0
        %v2114 = vadd.f32 %v1945, %v2113
        %v2115 = vpop.f32.mrf.mxu0
        %v2116 = vadd.f32 %v1947, %v2115
        %2117 = vmatmul.bf16.gmra.mxu0 %v1110
        %v2118 = vpop.f32.mrf.mxu0
        %v2119 = vadd.f32 %v1950, %v2118
        %v2120 = vpop.f32.mrf.mxu0
        %v2121 = vadd.f32 %v1952, %v2120
        %2122 = vmatmul.bf16.gmra.mxu0 %v1112
        %v2123 = vpop.f32.mrf.mxu0
        %v2124 = vadd.f32 %v1955, %v2123
        %v2125 = vpop.f32.mrf.mxu0
        %v2126 = vadd.f32 %v1957, %v2125
        %2127 = vmatmul.bf16.gmra.mxu0 %v1114
        %v2128 = vpop.f32.mrf.mxu0
        %v2129 = vadd.f32 %v1960, %v2128
        %v2130 = vpop.f32.mrf.mxu0
        %v2131 = vadd.f32 %v1962, %v2130
        %2132 = vmatmul.bf16.gmra.mxu0 %v1116
        %v2133 = vpop.f32.mrf.mxu0
        %v2134 = vadd.f32 %v1965, %v2133
        %v2135 = vpop.f32.mrf.mxu0
        %v2136 = vadd.f32 %v1967, %v2135
        %2137 = vmatmul.bf16.gmra.mxu0 %v1118
        %v2138 = vpop.f32.mrf.mxu0
        %v2139 = vadd.f32 %v1970, %v2138
        %v2140 = vpop.f32.mrf.mxu0
        %v2141 = vadd.f32 %v1972, %v2140
        %2142 = vmatmul.bf16.gmra.mxu0 %v1120
        %v2143 = vpop.f32.mrf.mxu0
        %v2144 = vadd.f32 %v1975, %v2143
        %v2145 = vpop.f32.mrf.mxu0
        %v2146 = vadd.f32 %v1977, %v2145
        %2147 = vmatmul.bf16.gmra.mxu0 %v1122
        %v2148 = vpop.f32.mrf.mxu0
        %v2149 = vadd.f32 %v1980, %v2148
        %v2150 = vpop.f32.mrf.mxu0
        %v2151 = vadd.f32 %v1982, %v2150
        %2152 = vmatmul.bf16.gmra.mxu0 %v1124
        %v2153 = vpop.f32.mrf.mxu0
        %v2154 = vadd.f32 %v1985, %v2153
        %v2155 = vpop.f32.mrf.mxu0
        %v2156 = vadd.f32 %v1987, %v2155
        %2157 = vmatmul.bf16.gmra.mxu0 %v1126
        %v2158 = vpop.f32.mrf.mxu0
        %v2159 = vadd.f32 %v1990, %v2158
        %v2160 = vpop.f32.mrf.mxu0
        %v2161 = vadd.f32 %v1992, %v2160
        %2162 = vmatmul.bf16.gmra.mxu0 %v1128
        %v2163 = vpop.f32.mrf.mxu0
        %v2164 = vadd.f32 %v1995, %v2163
        %v2165 = vpop.f32.mrf.mxu0
        %v2166 = vadd.f32 %v1997, %v2165
        %2167 = vmatmul.bf16.gmra.mxu0 %v1130
        %v2168 = vpop.f32.mrf.mxu0
        %v2169 = vadd.f32 %v2000, %v2168
        %v2170 = vpop.f32.mrf.mxu0
        %v2171 = vadd.f32 %v2002, %v2170
        %2172 = vmatmul.bf16.gmra.mxu0 %v1132
        %v2173 = vpop.f32.mrf.mxu0
        %v2174 = vadd.f32 %v2005, %v2173
        %v2175 = vpop.f32.mrf.mxu0
        %v2176 = vadd.f32 %v2007, %v2175
        %2177 = vmatmul.bf16.gmra.mxu0 %v1134
        %v2178 = vpop.f32.mrf.mxu0
        %v2179 = vadd.f32 %v2010, %v2178
        %v2180 = vpop.f32.mrf.mxu0
        %v2181 = vadd.f32 %v2012, %v2180
        %2182 = vmatmul.bf16.gmra.mxu0 %v1136
        %v2183 = vpop.f32.mrf.mxu0
        %v2184 = vadd.f32 %v2015, %v2183
        %v2185 = vpop.f32.mrf.mxu0
        %v2186 = vadd.f32 %v2017, %v2185
        %2187 = vmatmul.bf16.gmra.mxu0 %v1138
        %v2188 = vpop.f32.mrf.mxu0
        %v2189 = vadd.f32 %v2020, %v2188
        %v2190 = vpop.f32.mrf.mxu0
        %v2191 = vadd.f32 %v2022, %v2190
        %2192 = vmatmul.bf16.gmra.mxu0 %v1140
        %v2193 = vpop.f32.mrf.mxu0
        %v2194 = vadd.f32 %v2025, %v2193
        %v2195 = vpop.f32.mrf.mxu0
        %v2196 = vadd.f32 %v2027, %v2195
        %2197 = vmatmul.bf16.gmra.mxu0 %v1142
        %v2198 = vpop.f32.mrf.mxu0
        %v2199 = vadd.f32 %v2030, %v2198
        %v2200 = vpop.f32.mrf.mxu0
        %v2201 = vadd.f32 %v2032, %v2200
        %2202 = vdwg.mxu0
        %2203 = vmatpush.bf16.msra.mxu0 %v1429
        %2204 = vmatpush.bf16.msra.mxu0 %v1425
        %2205 = vmatpush.bf16.msra.mxu0 %v1421
        %2206 = vmatpush.bf16.msra.mxu0 %v1417
        %2207 = vmatpush.bf16.msra.mxu0 %v1413
        %2208 = vmatpush.bf16.msra.mxu0 %v1409
        %2209 = vmatpush.bf16.msra.mxu0 %v1405
        %2210 = vmatpush.bf16.msra.mxu0 %v1401
        %2211 = vmatmul.bf16.gmra.mxu0 %v1079
        %v2212 = vpop.f32.mrf.mxu0
        %v2213 = vadd.f32 0.0, %v2212
        %v2214 = vpop.f32.mrf.mxu0
        %v2215 = vadd.f32 0.0, %v2214
        %2216 = vmatmul.bf16.gmra.mxu0 %v1081
        %v2217 = vpop.f32.mrf.mxu0
        %v2218 = vadd.f32 0.0, %v2217
        %v2219 = vpop.f32.mrf.mxu0
        %v2220 = vadd.f32 0.0, %v2219
        %2221 = vmatmul.bf16.gmra.mxu0 %v1083
        %v2222 = vpop.f32.mrf.mxu0
        %v2223 = vadd.f32 0.0, %v2222
        %v2224 = vpop.f32.mrf.mxu0
        %v2225 = vadd.f32 0.0, %v2224
        %2226 = vmatmul.bf16.gmra.mxu0 %v1085
        %v2227 = vpop.f32.mrf.mxu0
        %v2228 = vadd.f32 0.0, %v2227
        %v2229 = vpop.f32.mrf.mxu0
        %v2230 = vadd.f32 0.0, %v2229
        %2231 = vmatmul.bf16.gmra.mxu0 %v1087
        %v2232 = vpop.f32.mrf.mxu0
        %v2233 = vadd.f32 0.0, %v2232
        %v2234 = vpop.f32.mrf.mxu0
        %v2235 = vadd.f32 0.0, %v2234
        %2236 = vmatmul.bf16.gmra.mxu0 %v1089
        %v2237 = vpop.f32.mrf.mxu0
        %v2238 = vadd.f32 0.0, %v2237
        %v2239 = vpop.f32.mrf.mxu0
        %v2240 = vadd.f32 0.0, %v2239
        %2241 = vmatmul.bf16.gmra.mxu0 %v1091
        %v2242 = vpop.f32.mrf.mxu0
        %v2243 = vadd.f32 0.0, %v2242
        %v2244 = vpop.f32.mrf.mxu0
        %v2245 = vadd.f32 0.0, %v2244
        %2246 = vmatmul.bf16.gmra.mxu0 %v1093
        %v2247 = vpop.f32.mrf.mxu0
        %v2248 = vadd.f32 0.0, %v2247
        %v2249 = vpop.f32.mrf.mxu0
        %v2250 = vadd.f32 0.0, %v2249
        %2251 = vmatmul.bf16.gmra.mxu0 %v1095
        %v2252 = vpop.f32.mrf.mxu0
        %v2253 = vadd.f32 0.0, %v2252
        %v2254 = vpop.f32.mrf.mxu0
        %v2255 = vadd.f32 0.0, %v2254
        %2256 = vmatmul.bf16.gmra.mxu0 %v1097
        %v2257 = vpop.f32.mrf.mxu0
        %v2258 = vadd.f32 0.0, %v2257
        %v2259 = vpop.f32.mrf.mxu0
        %v2260 = vadd.f32 0.0, %v2259
        %2261 = vmatmul.bf16.gmra.mxu0 %v1099
        %v2262 = vpop.f32.mrf.mxu0
        %v2263 = vadd.f32 0.0, %v2262
        %v2264 = vpop.f32.mrf.mxu0
        %v2265 = vadd.f32 0.0, %v2264
        %2266 = vmatmul.bf16.gmra.mxu0 %v1101
        %v2267 = vpop.f32.mrf.mxu0
        %v2268 = vadd.f32 0.0, %v2267
        %v2269 = vpop.f32.mrf.mxu0
        %v2270 = vadd.f32 0.0, %v2269
        %2271 = vmatmul.bf16.gmra.mxu0 %v1103
        %v2272 = vpop.f32.mrf.mxu0
        %v2273 = vadd.f32 0.0, %v2272
        %v2274 = vpop.f32.mrf.mxu0
        %v2275 = vadd.f32 0.0, %v2274
        %2276 = vmatmul.bf16.gmra.mxu0 %v1105
        %v2277 = vpop.f32.mrf.mxu0
        %v2278 = vadd.f32 0.0, %v2277
        %v2279 = vpop.f32.mrf.mxu0
        %v2280 = vadd.f32 0.0, %v2279
        %2281 = vmatmul.bf16.gmra.mxu0 %v1107
        %v2282 = vpop.f32.mrf.mxu0
        %v2283 = vadd.f32 0.0, %v2282
        %v2284 = vpop.f32.mrf.mxu0
        %v2285 = vadd.f32 0.0, %v2284
        %2286 = vmatmul.bf16.gmra.mxu0 %v1109
        %v2287 = vpop.f32.mrf.mxu0
        %v2288 = vadd.f32 0.0, %v2287
        %v2289 = vpop.f32.mrf.mxu0
        %v2290 = vadd.f32 0.0, %v2289
        %2291 = vmatmul.bf16.gmra.mxu0 %v1111
        %v2292 = vpop.f32.mrf.mxu0
        %v2293 = vadd.f32 0.0, %v2292
        %v2294 = vpop.f32.mrf.mxu0
        %v2295 = vadd.f32 0.0, %v2294
        %2296 = vmatmul.bf16.gmra.mxu0 %v1113
        %v2297 = vpop.f32.mrf.mxu0
        %v2298 = vadd.f32 0.0, %v2297
        %v2299 = vpop.f32.mrf.mxu0
        %v2300 = vadd.f32 0.0, %v2299
        %2301 = vmatmul.bf16.gmra.mxu0 %v1115
        %v2302 = vpop.f32.mrf.mxu0
        %v2303 = vadd.f32 0.0, %v2302
        %v2304 = vpop.f32.mrf.mxu0
        %v2305 = vadd.f32 0.0, %v2304
        %2306 = vmatmul.bf16.gmra.mxu0 %v1117
        %v2307 = vpop.f32.mrf.mxu0
        %v2308 = vadd.f32 0.0, %v2307
        %v2309 = vpop.f32.mrf.mxu0
        %v2310 = vadd.f32 0.0, %v2309
        %2311 = vmatmul.bf16.gmra.mxu0 %v1119
        %v2312 = vpop.f32.mrf.mxu0
        %v2313 = vadd.f32 0.0, %v2312
        %v2314 = vpop.f32.mrf.mxu0
        %v2315 = vadd.f32 0.0, %v2314
        %2316 = vmatmul.bf16.gmra.mxu0 %v1121
        %v2317 = vpop.f32.mrf.mxu0
        %v2318 = vadd.f32 0.0, %v2317
        %v2319 = vpop.f32.mrf.mxu0
        %v2320 = vadd.f32 0.0, %v2319
        %2321 = vmatmul.bf16.gmra.mxu0 %v1123
        %v2322 = vpop.f32.mrf.mxu0
        %v2323 = vadd.f32 0.0, %v2322
        %v2324 = vpop.f32.mrf.mxu0
        %v2325 = vadd.f32 0.0, %v2324
        %2326 = vmatmul.bf16.gmra.mxu0 %v1125
        %v2327 = vpop.f32.mrf.mxu0
        %v2328 = vadd.f32 0.0, %v2327
        %v2329 = vpop.f32.mrf.mxu0
        %v2330 = vadd.f32 0.0, %v2329
        %2331 = vmatmul.bf16.gmra.mxu0 %v1127
        %v2332 = vpop.f32.mrf.mxu0
        %v2333 = vadd.f32 0.0, %v2332
        %v2334 = vpop.f32.mrf.mxu0
        %v2335 = vadd.f32 0.0, %v2334
        %2336 = vmatmul.bf16.gmra.mxu0 %v1129
        %v2337 = vpop.f32.mrf.mxu0
        %v2338 = vadd.f32 0.0, %v2337
        %v2339 = vpop.f32.mrf.mxu0
        %v2340 = vadd.f32 0.0, %v2339
        %2341 = vmatmul.bf16.gmra.mxu0 %v1131
        %v2342 = vpop.f32.mrf.mxu0
        %v2343 = vadd.f32 0.0, %v2342
        %v2344 = vpop.f32.mrf.mxu0
        %v2345 = vadd.f32 0.0, %v2344
        %2346 = vmatmul.bf16.gmra.mxu0 %v1133
        %v2347 = vpop.f32.mrf.mxu0
        %v2348 = vadd.f32 0.0, %v2347
        %v2349 = vpop.f32.mrf.mxu0
        %v2350 = vadd.f32 0.0, %v2349
        %2351 = vmatmul.bf16.gmra.mxu0 %v1135
        %v2352 = vpop.f32.mrf.mxu0
        %v2353 = vadd.f32 0.0, %v2352
        %v2354 = vpop.f32.mrf.mxu0
        %v2355 = vadd.f32 0.0, %v2354
        %2356 = vmatmul.bf16.gmra.mxu0 %v1137
        %v2357 = vpop.f32.mrf.mxu0
        %v2358 = vadd.f32 0.0, %v2357
        %v2359 = vpop.f32.mrf.mxu0
        %v2360 = vadd.f32 0.0, %v2359
        %2361 = vmatmul.bf16.gmra.mxu0 %v1139
        %v2362 = vpop.f32.mrf.mxu0
        %v2363 = vadd.f32 0.0, %v2362
        %v2364 = vpop.f32.mrf.mxu0
        %v2365 = vadd.f32 0.0, %v2364
        %2366 = vmatmul.bf16.gmra.mxu0 %v1141
        %v2367 = vpop.f32.mrf.mxu0
        %v2368 = vadd.f32 0.0, %v2367
        %v2369 = vpop.f32.mrf.mxu0
        %v2370 = vadd.f32 0.0, %v2369
        %2371 = vdwg.mxu0
        %2372 = vmatpush.bf16.msra.mxu0 %v1461
        %2373 = vmatpush.bf16.msra.mxu0 %v1457
        %2374 = vmatpush.bf16.msra.mxu0 %v1453
        %2375 = vmatpush.bf16.msra.mxu0 %v1449
        %2376 = vmatpush.bf16.msra.mxu0 %v1445
        %2377 = vmatpush.bf16.msra.mxu0 %v1441
        %2378 = vmatpush.bf16.msra.mxu0 %v1437
        %2379 = vmatpush.bf16.msra.mxu0 %v1433
        %2380 = vmatmul.bf16.gmra.mxu0 %v1080
        %v2381 = vpop.f32.mrf.mxu0
        %v2382 = vadd.f32 %v2213, %v2381
        %v2383 = vpop.f32.mrf.mxu0
        %v2384 = vadd.f32 %v2215, %v2383
        %2385 = vmatmul.bf16.gmra.mxu0 %v1082
        %v2386 = vpop.f32.mrf.mxu0
        %v2387 = vadd.f32 %v2218, %v2386
        %v2388 = vpop.f32.mrf.mxu0
        %v2389 = vadd.f32 %v2220, %v2388
        %2390 = vmatmul.bf16.gmra.mxu0 %v1084
        %v2391 = vpop.f32.mrf.mxu0
        %v2392 = vadd.f32 %v2223, %v2391
        %v2393 = vpop.f32.mrf.mxu0
        %v2394 = vadd.f32 %v2225, %v2393
        %2395 = vmatmul.bf16.gmra.mxu0 %v1086
        %v2396 = vpop.f32.mrf.mxu0
        %v2397 = vadd.f32 %v2228, %v2396
        %v2398 = vpop.f32.mrf.mxu0
        %v2399 = vadd.f32 %v2230, %v2398
        %2400 = vmatmul.bf16.gmra.mxu0 %v1088
        %v2401 = vpop.f32.mrf.mxu0
        %v2402 = vadd.f32 %v2233, %v2401
        %v2403 = vpop.f32.mrf.mxu0
        %v2404 = vadd.f32 %v2235, %v2403
        %2405 = vmatmul.bf16.gmra.mxu0 %v1090
        %v2406 = vpop.f32.mrf.mxu0
        %v2407 = vadd.f32 %v2238, %v2406
        %v2408 = vpop.f32.mrf.mxu0
        %v2409 = vadd.f32 %v2240, %v2408
        %2410 = vmatmul.bf16.gmra.mxu0 %v1092
        %v2411 = vpop.f32.mrf.mxu0
        %v2412 = vadd.f32 %v2243, %v2411
        %v2413 = vpop.f32.mrf.mxu0
        %v2414 = vadd.f32 %v2245, %v2413
        %2415 = vmatmul.bf16.gmra.mxu0 %v1094
        %v2416 = vpop.f32.mrf.mxu0
        %v2417 = vadd.f32 %v2248, %v2416
        %v2418 = vpop.f32.mrf.mxu0
        %v2419 = vadd.f32 %v2250, %v2418
        %2420 = vmatmul.bf16.gmra.mxu0 %v1096
        %v2421 = vpop.f32.mrf.mxu0
        %v2422 = vadd.f32 %v2253, %v2421
        %v2423 = vpop.f32.mrf.mxu0
        %v2424 = vadd.f32 %v2255, %v2423
        %2425 = vmatmul.bf16.gmra.mxu0 %v1098
        %v2426 = vpop.f32.mrf.mxu0
        %v2427 = vadd.f32 %v2258, %v2426
        %v2428 = vpop.f32.mrf.mxu0
        %v2429 = vadd.f32 %v2260, %v2428
        %2430 = vmatmul.bf16.gmra.mxu0 %v1100
        %v2431 = vpop.f32.mrf.mxu0
        %v2432 = vadd.f32 %v2263, %v2431
        %v2433 = vpop.f32.mrf.mxu0
        %v2434 = vadd.f32 %v2265, %v2433
        %2435 = vmatmul.bf16.gmra.mxu0 %v1102
        %v2436 = vpop.f32.mrf.mxu0
        %v2437 = vadd.f32 %v2268, %v2436
        %v2438 = vpop.f32.mrf.mxu0
        %v2439 = vadd.f32 %v2270, %v2438
        %2440 = vmatmul.bf16.gmra.mxu0 %v1104
        %v2441 = vpop.f32.mrf.mxu0
        %v2442 = vadd.f32 %v2273, %v2441
        %v2443 = vpop.f32.mrf.mxu0
        %v2444 = vadd.f32 %v2275, %v2443
        %2445 = vmatmul.bf16.gmra.mxu0 %v1106
        %v2446 = vpop.f32.mrf.mxu0
        %v2447 = vadd.f32 %v2278, %v2446
        %v2448 = vpop.f32.mrf.mxu0
        %v2449 = vadd.f32 %v2280, %v2448
        %2450 = vmatmul.bf16.gmra.mxu0 %v1108
        %v2451 = vpop.f32.mrf.mxu0
        %v2452 = vadd.f32 %v2283, %v2451
        %v2453 = vpop.f32.mrf.mxu0
        %v2454 = vadd.f32 %v2285, %v2453
        %2455 = vmatmul.bf16.gmra.mxu0 %v1110
        %v2456 = vpop.f32.mrf.mxu0
        %v2457 = vadd.f32 %v2288, %v2456
        %v2458 = vpop.f32.mrf.mxu0
        %v2459 = vadd.f32 %v2290, %v2458
        %2460 = vmatmul.bf16.gmra.mxu0 %v1112
        %v2461 = vpop.f32.mrf.mxu0
        %v2462 = vadd.f32 %v2293, %v2461
        %v2463 = vpop.f32.mrf.mxu0
        %v2464 = vadd.f32 %v2295, %v2463
        %2465 = vmatmul.bf16.gmra.mxu0 %v1114
        %v2466 = vpop.f32.mrf.mxu0
        %v2467 = vadd.f32 %v2298, %v2466
        %v2468 = vpop.f32.mrf.mxu0
        %v2469 = vadd.f32 %v2300, %v2468
        %2470 = vmatmul.bf16.gmra.mxu0 %v1116
        %v2471 = vpop.f32.mrf.mxu0
        %v2472 = vadd.f32 %v2303, %v2471
        %v2473 = vpop.f32.mrf.mxu0
        %v2474 = vadd.f32 %v2305, %v2473
        %2475 = vmatmul.bf16.gmra.mxu0 %v1118
        %v2476 = vpop.f32.mrf.mxu0
        %v2477 = vadd.f32 %v2308, %v2476
        %v2478 = vpop.f32.mrf.mxu0
        %v2479 = vadd.f32 %v2310, %v2478
        %2480 = vmatmul.bf16.gmra.mxu0 %v1120
        %v2481 = vpop.f32.mrf.mxu0
        %v2482 = vadd.f32 %v2313, %v2481
        %v2483 = vpop.f32.mrf.mxu0
        %v2484 = vadd.f32 %v2315, %v2483
        %2485 = vmatmul.bf16.gmra.mxu0 %v1122
        %v2486 = vpop.f32.mrf.mxu0
        %v2487 = vadd.f32 %v2318, %v2486
        %v2488 = vpop.f32.mrf.mxu0
        %v2489 = vadd.f32 %v2320, %v2488
        %2490 = vmatmul.bf16.gmra.mxu0 %v1124
        %v2491 = vpop.f32.mrf.mxu0
        %v2492 = vadd.f32 %v2323, %v2491
        %v2493 = vpop.f32.mrf.mxu0
        %v2494 = vadd.f32 %v2325, %v2493
        %2495 = vmatmul.bf16.gmra.mxu0 %v1126
        %v2496 = vpop.f32.mrf.mxu0
        %v2497 = vadd.f32 %v2328, %v2496
        %v2498 = vpop.f32.mrf.mxu0
        %v2499 = vadd.f32 %v2330, %v2498
        %2500 = vmatmul.bf16.gmra.mxu0 %v1128
        %v2501 = vpop.f32.mrf.mxu0
        %v2502 = vadd.f32 %v2333, %v2501
        %v2503 = vpop.f32.mrf.mxu0
        %v2504 = vadd.f32 %v2335, %v2503
        %2505 = vmatmul.bf16.gmra.mxu0 %v1130
        %v2506 = vpop.f32.mrf.mxu0
        %v2507 = vadd.f32 %v2338, %v2506
        %v2508 = vpop.f32.mrf.mxu0
        %v2509 = vadd.f32 %v2340, %v2508
        %2510 = vmatmul.bf16.gmra.mxu0 %v1132
        %v2511 = vpop.f32.mrf.mxu0
        %v2512 = vadd.f32 %v2343, %v2511
        %v2513 = vpop.f32.mrf.mxu0
        %v2514 = vadd.f32 %v2345, %v2513
        %2515 = vmatmul.bf16.gmra.mxu0 %v1134
        %v2516 = vpop.f32.mrf.mxu0
        %v2517 = vadd.f32 %v2348, %v2516
        %v2518 = vpop.f32.mrf.mxu0
        %v2519 = vadd.f32 %v2350, %v2518
        %2520 = vmatmul.bf16.gmra.mxu0 %v1136
        %v2521 = vpop.f32.mrf.mxu0
        %v2522 = vadd.f32 %v2353, %v2521
        %v2523 = vpop.f32.mrf.mxu0
        %v2524 = vadd.f32 %v2355, %v2523
        %2525 = vmatmul.bf16.gmra.mxu0 %v1138
        %v2526 = vpop.f32.mrf.mxu0
        %v2527 = vadd.f32 %v2358, %v2526
        %v2528 = vpop.f32.mrf.mxu0
        %v2529 = vadd.f32 %v2360, %v2528
        %2530 = vmatmul.bf16.gmra.mxu0 %v1140
        %v2531 = vpop.f32.mrf.mxu0
        %v2532 = vadd.f32 %v2363, %v2531
        %v2533 = vpop.f32.mrf.mxu0
        %v2534 = vadd.f32 %v2365, %v2533
        %2535 = vmatmul.bf16.gmra.mxu0 %v1142
        %v2536 = vpop.f32.mrf.mxu0
        %v2537 = vadd.f32 %v2368, %v2536
        %v2538 = vpop.f32.mrf.mxu0
        %v2539 = vadd.f32 %v2370, %v2538
        %2540 = vdwg.mxu0
        %2541 = vmatpush.bf16.msra.mxu0 %v1430
        %2542 = vmatpush.bf16.msra.mxu0 %v1426
        %2543 = vmatpush.bf16.msra.mxu0 %v1422
        %2544 = vmatpush.bf16.msra.mxu0 %v1418
        %2545 = vmatpush.bf16.msra.mxu0 %v1414
        %2546 = vmatpush.bf16.msra.mxu0 %v1410
        %2547 = vmatpush.bf16.msra.mxu0 %v1406
        %2548 = vmatpush.bf16.msra.mxu0 %v1402
        %2549 = vmatmul.bf16.gmra.mxu0 %v1079
        %v2550 = vpop.f32.mrf.mxu0
        %v2551 = vadd.f32 0.0, %v2550
        %v2552 = vpop.f32.mrf.mxu0
        %v2553 = vadd.f32 0.0, %v2552
        %2554 = vmatmul.bf16.gmra.mxu0 %v1081
        %v2555 = vpop.f32.mrf.mxu0
        %v2556 = vadd.f32 0.0, %v2555
        %v2557 = vpop.f32.mrf.mxu0
        %v2558 = vadd.f32 0.0, %v2557
        %2559 = vmatmul.bf16.gmra.mxu0 %v1083
        %v2560 = vpop.f32.mrf.mxu0
        %v2561 = vadd.f32 0.0, %v2560
        %v2562 = vpop.f32.mrf.mxu0
        %v2563 = vadd.f32 0.0, %v2562
        %2564 = vmatmul.bf16.gmra.mxu0 %v1085
        %v2565 = vpop.f32.mrf.mxu0
        %v2566 = vadd.f32 0.0, %v2565
        %v2567 = vpop.f32.mrf.mxu0
        %v2568 = vadd.f32 0.0, %v2567
        %2569 = vmatmul.bf16.gmra.mxu0 %v1087
        %v2570 = vpop.f32.mrf.mxu0
        %v2571 = vadd.f32 0.0, %v2570
        %v2572 = vpop.f32.mrf.mxu0
        %v2573 = vadd.f32 0.0, %v2572
        %2574 = vmatmul.bf16.gmra.mxu0 %v1089
        %v2575 = vpop.f32.mrf.mxu0
        %v2576 = vadd.f32 0.0, %v2575
        %v2577 = vpop.f32.mrf.mxu0
        %v2578 = vadd.f32 0.0, %v2577
        %2579 = vmatmul.bf16.gmra.mxu0 %v1091
        %v2580 = vpop.f32.mrf.mxu0
        %v2581 = vadd.f32 0.0, %v2580
        %v2582 = vpop.f32.mrf.mxu0
        %v2583 = vadd.f32 0.0, %v2582
        %2584 = vmatmul.bf16.gmra.mxu0 %v1093
        %v2585 = vpop.f32.mrf.mxu0
        %v2586 = vadd.f32 0.0, %v2585
        %v2587 = vpop.f32.mrf.mxu0
        %v2588 = vadd.f32 0.0, %v2587
        %2589 = vmatmul.bf16.gmra.mxu0 %v1095
        %v2590 = vpop.f32.mrf.mxu0
        %v2591 = vadd.f32 0.0, %v2590
        %v2592 = vpop.f32.mrf.mxu0
        %v2593 = vadd.f32 0.0, %v2592
        %2594 = vmatmul.bf16.gmra.mxu0 %v1097
        %v2595 = vpop.f32.mrf.mxu0
        %v2596 = vadd.f32 0.0, %v2595
        %v2597 = vpop.f32.mrf.mxu0
        %v2598 = vadd.f32 0.0, %v2597
        %2599 = vmatmul.bf16.gmra.mxu0 %v1099
        %v2600 = vpop.f32.mrf.mxu0
        %v2601 = vadd.f32 0.0, %v2600
        %v2602 = vpop.f32.mrf.mxu0
        %v2603 = vadd.f32 0.0, %v2602
        %2604 = vmatmul.bf16.gmra.mxu0 %v1101
        %v2605 = vpop.f32.mrf.mxu0
        %v2606 = vadd.f32 0.0, %v2605
        %v2607 = vpop.f32.mrf.mxu0
        %v2608 = vadd.f32 0.0, %v2607
        %2609 = vmatmul.bf16.gmra.mxu0 %v1103
        %v2610 = vpop.f32.mrf.mxu0
        %v2611 = vadd.f32 0.0, %v2610
        %v2612 = vpop.f32.mrf.mxu0
        %v2613 = vadd.f32 0.0, %v2612
        %2614 = vmatmul.bf16.gmra.mxu0 %v1105
        %v2615 = vpop.f32.mrf.mxu0
        %v2616 = vadd.f32 0.0, %v2615
        %v2617 = vpop.f32.mrf.mxu0
        %v2618 = vadd.f32 0.0, %v2617
        %2619 = vmatmul.bf16.gmra.mxu0 %v1107
        %v2620 = vpop.f32.mrf.mxu0
        %v2621 = vadd.f32 0.0, %v2620
        %v2622 = vpop.f32.mrf.mxu0
        %v2623 = vadd.f32 0.0, %v2622
        %2624 = vmatmul.bf16.gmra.mxu0 %v1109
        %v2625 = vpop.f32.mrf.mxu0
        %v2626 = vadd.f32 0.0, %v2625
        %v2627 = vpop.f32.mrf.mxu0
        %v2628 = vadd.f32 0.0, %v2627
        %2629 = vmatmul.bf16.gmra.mxu0 %v1111
        %v2630 = vpop.f32.mrf.mxu0
        %v2631 = vadd.f32 0.0, %v2630
        %v2632 = vpop.f32.mrf.mxu0
        %v2633 = vadd.f32 0.0, %v2632
        %2634 = vmatmul.bf16.gmra.mxu0 %v1113
        %v2635 = vpop.f32.mrf.mxu0
        %v2636 = vadd.f32 0.0, %v2635
        %v2637 = vpop.f32.mrf.mxu0
        %v2638 = vadd.f32 0.0, %v2637
        %2639 = vmatmul.bf16.gmra.mxu0 %v1115
        %v2640 = vpop.f32.mrf.mxu0
        %v2641 = vadd.f32 0.0, %v2640
        %v2642 = vpop.f32.mrf.mxu0
        %v2643 = vadd.f32 0.0, %v2642
        %2644 = vmatmul.bf16.gmra.mxu0 %v1117
        %v2645 = vpop.f32.mrf.mxu0
        %v2646 = vadd.f32 0.0, %v2645
        %v2647 = vpop.f32.mrf.mxu0
        %v2648 = vadd.f32 0.0, %v2647
        %2649 = vmatmul.bf16.gmra.mxu0 %v1119
        %v2650 = vpop.f32.mrf.mxu0
        %v2651 = vadd.f32 0.0, %v2650
        %v2652 = vpop.f32.mrf.mxu0
        %v2653 = vadd.f32 0.0, %v2652
        %2654 = vmatmul.bf16.gmra.mxu0 %v1121
        %v2655 = vpop.f32.mrf.mxu0
        %v2656 = vadd.f32 0.0, %v2655
        %v2657 = vpop.f32.mrf.mxu0
        %v2658 = vadd.f32 0.0, %v2657
        %2659 = vmatmul.bf16.gmra.mxu0 %v1123
        %v2660 = vpop.f32.mrf.mxu0
        %v2661 = vadd.f32 0.0, %v2660
        %v2662 = vpop.f32.mrf.mxu0
        %v2663 = vadd.f32 0.0, %v2662
        %2664 = vmatmul.bf16.gmra.mxu0 %v1125
        %v2665 = vpop.f32.mrf.mxu0
        %v2666 = vadd.f32 0.0, %v2665
        %v2667 = vpop.f32.mrf.mxu0
        %v2668 = vadd.f32 0.0, %v2667
        %2669 = vmatmul.bf16.gmra.mxu0 %v1127
        %v2670 = vpop.f32.mrf.mxu0
        %v2671 = vadd.f32 0.0, %v2670
        %v2672 = vpop.f32.mrf.mxu0
        %v2673 = vadd.f32 0.0, %v2672
        %2674 = vmatmul.bf16.gmra.mxu0 %v1129
        %v2675 = vpop.f32.mrf.mxu0
        %v2676 = vadd.f32 0.0, %v2675
        %v2677 = vpop.f32.mrf.mxu0
        %v2678 = vadd.f32 0.0, %v2677
        %2679 = vmatmul.bf16.gmra.mxu0 %v1131
        %v2680 = vpop.f32.mrf.mxu0
        %v2681 = vadd.f32 0.0, %v2680
        %v2682 = vpop.f32.mrf.mxu0
        %v2683 = vadd.f32 0.0, %v2682
        %2684 = vmatmul.bf16.gmra.mxu0 %v1133
        %v2685 = vpop.f32.mrf.mxu0
        %v2686 = vadd.f32 0.0, %v2685
        %v2687 = vpop.f32.mrf.mxu0
        %v2688 = vadd.f32 0.0, %v2687
        %2689 = vmatmul.bf16.gmra.mxu0 %v1135
        %v2690 = vpop.f32.mrf.mxu0
        %v2691 = vadd.f32 0.0, %v2690
        %v2692 = vpop.f32.mrf.mxu0
        %v2693 = vadd.f32 0.0, %v2692
        %2694 = vmatmul.bf16.gmra.mxu0 %v1137
        %v2695 = vpop.f32.mrf.mxu0
        %v2696 = vadd.f32 0.0, %v2695
        %v2697 = vpop.f32.mrf.mxu0
        %v2698 = vadd.f32 0.0, %v2697
        %2699 = vmatmul.bf16.gmra.mxu0 %v1139
        %v2700 = vpop.f32.mrf.mxu0
        %v2701 = vadd.f32 0.0, %v2700
        %v2702 = vpop.f32.mrf.mxu0
        %v2703 = vadd.f32 0.0, %v2702
        %2704 = vmatmul.bf16.gmra.mxu0 %v1141
        %v2705 = vpop.f32.mrf.mxu0
        %v2706 = vadd.f32 0.0, %v2705
        %v2707 = vpop.f32.mrf.mxu0
        %v2708 = vadd.f32 0.0, %v2707
        %2709 = vdwg.mxu0
        %2710 = vmatpush.bf16.msra.mxu0 %v1462
        %2711 = vmatpush.bf16.msra.mxu0 %v1458
        %2712 = vmatpush.bf16.msra.mxu0 %v1454
        %2713 = vmatpush.bf16.msra.mxu0 %v1450
        %2714 = vmatpush.bf16.msra.mxu0 %v1446
        %2715 = vmatpush.bf16.msra.mxu0 %v1442
        %2716 = vmatpush.bf16.msra.mxu0 %v1438
        %2717 = vmatpush.bf16.msra.mxu0 %v1434
        %2718 = vmatmul.bf16.gmra.mxu0 %v1080
        %v2719 = vpop.f32.mrf.mxu0
        %v2720 = vadd.f32 %v2551, %v2719
        %v2721 = vpop.f32.mrf.mxu0
        %v2722 = vadd.f32 %v2553, %v2721
        %2723 = vmatmul.bf16.gmra.mxu0 %v1082
        %v2724 = vpop.f32.mrf.mxu0
        %v2725 = vadd.f32 %v2556, %v2724
        %v2726 = vpop.f32.mrf.mxu0
        %v2727 = vadd.f32 %v2558, %v2726
        %2728 = vmatmul.bf16.gmra.mxu0 %v1084
        %v2729 = vpop.f32.mrf.mxu0
        %v2730 = vadd.f32 %v2561, %v2729
        %v2731 = vpop.f32.mrf.mxu0
        %v2732 = vadd.f32 %v2563, %v2731
        %2733 = vmatmul.bf16.gmra.mxu0 %v1086
        %v2734 = vpop.f32.mrf.mxu0
        %v2735 = vadd.f32 %v2566, %v2734
        %v2736 = vpop.f32.mrf.mxu0
        %v2737 = vadd.f32 %v2568, %v2736
        %2738 = vmatmul.bf16.gmra.mxu0 %v1088
        %v2739 = vpop.f32.mrf.mxu0
        %v2740 = vadd.f32 %v2571, %v2739
        %v2741 = vpop.f32.mrf.mxu0
        %v2742 = vadd.f32 %v2573, %v2741
        %2743 = vmatmul.bf16.gmra.mxu0 %v1090
        %v2744 = vpop.f32.mrf.mxu0
        %v2745 = vadd.f32 %v2576, %v2744
        %v2746 = vpop.f32.mrf.mxu0
        %v2747 = vadd.f32 %v2578, %v2746
        %2748 = vmatmul.bf16.gmra.mxu0 %v1092
        %v2749 = vpop.f32.mrf.mxu0
        %v2750 = vadd.f32 %v2581, %v2749
        %v2751 = vpop.f32.mrf.mxu0
        %v2752 = vadd.f32 %v2583, %v2751
        %2753 = vmatmul.bf16.gmra.mxu0 %v1094
        %v2754 = vpop.f32.mrf.mxu0
        %v2755 = vadd.f32 %v2586, %v2754
        %v2756 = vpop.f32.mrf.mxu0
        %v2757 = vadd.f32 %v2588, %v2756
        %2758 = vmatmul.bf16.gmra.mxu0 %v1096
        %v2759 = vpop.f32.mrf.mxu0
        %v2760 = vadd.f32 %v2591, %v2759
        %v2761 = vpop.f32.mrf.mxu0
        %v2762 = vadd.f32 %v2593, %v2761
        %2763 = vmatmul.bf16.gmra.mxu0 %v1098
        %v2764 = vpop.f32.mrf.mxu0
        %v2765 = vadd.f32 %v2596, %v2764
        %v2766 = vpop.f32.mrf.mxu0
        %v2767 = vadd.f32 %v2598, %v2766
        %2768 = vmatmul.bf16.gmra.mxu0 %v1100
        %v2769 = vpop.f32.mrf.mxu0
        %v2770 = vadd.f32 %v2601, %v2769
        %v2771 = vpop.f32.mrf.mxu0
        %v2772 = vadd.f32 %v2603, %v2771
        %2773 = vmatmul.bf16.gmra.mxu0 %v1102
        %v2774 = vpop.f32.mrf.mxu0
        %v2775 = vadd.f32 %v2606, %v2774
        %v2776 = vpop.f32.mrf.mxu0
        %v2777 = vadd.f32 %v2608, %v2776
        %2778 = vmatmul.bf16.gmra.mxu0 %v1104
        %v2779 = vpop.f32.mrf.mxu0
        %v2780 = vadd.f32 %v2611, %v2779
        %v2781 = vpop.f32.mrf.mxu0
        %v2782 = vadd.f32 %v2613, %v2781
        %2783 = vmatmul.bf16.gmra.mxu0 %v1106
        %v2784 = vpop.f32.mrf.mxu0
        %v2785 = vadd.f32 %v2616, %v2784
        %v2786 = vpop.f32.mrf.mxu0
        %v2787 = vadd.f32 %v2618, %v2786
        %2788 = vmatmul.bf16.gmra.mxu0 %v1108
        %v2789 = vpop.f32.mrf.mxu0
        %v2790 = vadd.f32 %v2621, %v2789
        %v2791 = vpop.f32.mrf.mxu0
        %v2792 = vadd.f32 %v2623, %v2791
        %2793 = vmatmul.bf16.gmra.mxu0 %v1110
        %v2794 = vpop.f32.mrf.mxu0
        %v2795 = vadd.f32 %v2626, %v2794
        %v2796 = vpop.f32.mrf.mxu0
        %v2797 = vadd.f32 %v2628, %v2796
        %2798 = vmatmul.bf16.gmra.mxu0 %v1112
        %v2799 = vpop.f32.mrf.mxu0
        %v2800 = vadd.f32 %v2631, %v2799
        %v2801 = vpop.f32.mrf.mxu0
        %v2802 = vadd.f32 %v2633, %v2801
        %2803 = vmatmul.bf16.gmra.mxu0 %v1114
        %v2804 = vpop.f32.mrf.mxu0
        %v2805 = vadd.f32 %v2636, %v2804
        %v2806 = vpop.f32.mrf.mxu0
        %v2807 = vadd.f32 %v2638, %v2806
        %2808 = vmatmul.bf16.gmra.mxu0 %v1116
        %v2809 = vpop.f32.mrf.mxu0
        %v2810 = vadd.f32 %v2641, %v2809
        %v2811 = vpop.f32.mrf.mxu0
        %v2812 = vadd.f32 %v2643, %v2811
        %2813 = vmatmul.bf16.gmra.mxu0 %v1118
        %v2814 = vpop.f32.mrf.mxu0
        %v2815 = vadd.f32 %v2646, %v2814
        %v2816 = vpop.f32.mrf.mxu0
        %v2817 = vadd.f32 %v2648, %v2816
        %2818 = vmatmul.bf16.gmra.mxu0 %v1120
        %v2819 = vpop.f32.mrf.mxu0
        %v2820 = vadd.f32 %v2651, %v2819
        %v2821 = vpop.f32.mrf.mxu0
        %v2822 = vadd.f32 %v2653, %v2821
        %2823 = vmatmul.bf16.gmra.mxu0 %v1122
        %v2824 = vpop.f32.mrf.mxu0
        %v2825 = vadd.f32 %v2656, %v2824
        %v2826 = vpop.f32.mrf.mxu0
        %v2827 = vadd.f32 %v2658, %v2826
        %2828 = vmatmul.bf16.gmra.mxu0 %v1124
        %v2829 = vpop.f32.mrf.mxu0
        %v2830 = vadd.f32 %v2661, %v2829
        %v2831 = vpop.f32.mrf.mxu0
        %v2832 = vadd.f32 %v2663, %v2831
        %2833 = vmatmul.bf16.gmra.mxu0 %v1126
        %v2834 = vpop.f32.mrf.mxu0
        %v2835 = vadd.f32 %v2666, %v2834
        %v2836 = vpop.f32.mrf.mxu0
        %v2837 = vadd.f32 %v2668, %v2836
        %2838 = vmatmul.bf16.gmra.mxu0 %v1128
        %v2839 = vpop.f32.mrf.mxu0
        %v2840 = vadd.f32 %v2671, %v2839
        %v2841 = vpop.f32.mrf.mxu0
        %v2842 = vadd.f32 %v2673, %v2841
        %2843 = vmatmul.bf16.gmra.mxu0 %v1130
        %v2844 = vpop.f32.mrf.mxu0
        %v2845 = vadd.f32 %v2676, %v2844
        %v2846 = vpop.f32.mrf.mxu0
        %v2847 = vadd.f32 %v2678, %v2846
        %2848 = vmatmul.bf16.gmra.mxu0 %v1132
        %v2849 = vpop.f32.mrf.mxu0
        %v2850 = vadd.f32 %v2681, %v2849
        %v2851 = vpop.f32.mrf.mxu0
        %v2852 = vadd.f32 %v2683, %v2851
        %2853 = vmatmul.bf16.gmra.mxu0 %v1134
        %v2854 = vpop.f32.mrf.mxu0
        %v2855 = vadd.f32 %v2686, %v2854
        %v2856 = vpop.f32.mrf.mxu0
        %v2857 = vadd.f32 %v2688, %v2856
        %2858 = vmatmul.bf16.gmra.mxu0 %v1136
        %v2859 = vpop.f32.mrf.mxu0
        %v2860 = vadd.f32 %v2691, %v2859
        %v2861 = vpop.f32.mrf.mxu0
        %v2862 = vadd.f32 %v2693, %v2861
        %2863 = vmatmul.bf16.gmra.mxu0 %v1138
        %v2864 = vpop.f32.mrf.mxu0
        %v2865 = vadd.f32 %v2696, %v2864
        %v2866 = vpop.f32.mrf.mxu0
        %v2867 = vadd.f32 %v2698, %v2866
        %2868 = vmatmul.bf16.gmra.mxu0 %v1140
        %v2869 = vpop.f32.mrf.mxu0
        %v2870 = vadd.f32 %v2701, %v2869
        %v2871 = vpop.f32.mrf.mxu0
        %v2872 = vadd.f32 %v2703, %v2871
        %2873 = vmatmul.bf16.gmra.mxu0 %v1142
        %v2874 = vpop.f32.mrf.mxu0
        %v2875 = vadd.f32 %v2706, %v2874
        %v2876 = vpop.f32.mrf.mxu0
        %v2877 = vadd.f32 %v2708, %v2876
        %2878 = vdwg.mxu0
        %v2879 = vadd.f32 %v503, %v1706
        %v2880 = vadd.f32 %v504, %v2044
        %v2881 = vadd.f32 %v505, %v2382
        %v2882 = vadd.f32 %v506, %v2720
        %v2883 = vadd.f32 %v507, %v1708
        %v2884 = vadd.f32 %v508, %v2046
        %v2885 = vadd.f32 %v509, %v2384
        %v2886 = vadd.f32 %v510, %v2722
        %v2887 = vadd.f32 %v511, %v1711
        %v2888 = vadd.f32 %v512, %v2049
        %v2889 = vadd.f32 %v513, %v2387
        %v2890 = vadd.f32 %v514, %v2725
        %v2891 = vadd.f32 %v515, %v1713
        %v2892 = vadd.f32 %v516, %v2051
        %v2893 = vadd.f32 %v517, %v2389
        %v2894 = vadd.f32 %v518, %v2727
        %v2895 = vadd.f32 %v519, %v1716
        %v2896 = vadd.f32 %v520, %v2054
        %v2897 = vadd.f32 %v521, %v2392
        %v2898 = vadd.f32 %v522, %v2730
        %v2899 = vadd.f32 %v523, %v1718
        %v2900 = vadd.f32 %v524, %v2056
        %v2901 = vadd.f32 %v525, %v2394
        %v2902 = vadd.f32 %v526, %v2732
        %v2903 = vadd.f32 %v527, %v1721
        %v2904 = vadd.f32 %v528, %v2059
        %v2905 = vadd.f32 %v529, %v2397
        %v2906 = vadd.f32 %v530, %v2735
        %v2907 = vadd.f32 %v531, %v1723
        %v2908 = vadd.f32 %v532, %v2061
        %v2909 = vadd.f32 %v533, %v2399
        %v2910 = vadd.f32 %v534, %v2737
        %v2911 = vadd.f32 %v535, %v1726
        %v2912 = vadd.f32 %v536, %v2064
        %v2913 = vadd.f32 %v537, %v2402
        %v2914 = vadd.f32 %v538, %v2740
        %v2915 = vadd.f32 %v539, %v1728
        %v2916 = vadd.f32 %v540, %v2066
        %v2917 = vadd.f32 %v541, %v2404
        %v2918 = vadd.f32 %v542, %v2742
        %v2919 = vadd.f32 %v543, %v1731
        %v2920 = vadd.f32 %v544, %v2069
        %v2921 = vadd.f32 %v545, %v2407
        %v2922 = vadd.f32 %v546, %v2745
        %v2923 = vadd.f32 %v547, %v1733
        %v2924 = vadd.f32 %v548, %v2071
        %v2925 = vadd.f32 %v549, %v2409
        %v2926 = vadd.f32 %v550, %v2747
        %v2927 = vadd.f32 %v551, %v1736
        %v2928 = vadd.f32 %v552, %v2074
        %v2929 = vadd.f32 %v553, %v2412
        %v2930 = vadd.f32 %v554, %v2750
        %v2931 = vadd.f32 %v555, %v1738
        %v2932 = vadd.f32 %v556, %v2076
        %v2933 = vadd.f32 %v557, %v2414
        %v2934 = vadd.f32 %v558, %v2752
        %v2935 = vadd.f32 %v559, %v1741
        %v2936 = vadd.f32 %v560, %v2079
        %v2937 = vadd.f32 %v561, %v2417
        %v2938 = vadd.f32 %v562, %v2755
        %v2939 = vadd.f32 %v563, %v1743
        %v2940 = vadd.f32 %v564, %v2081
        %v2941 = vadd.f32 %v565, %v2419
        %v2942 = vadd.f32 %v566, %v2757
        %v2943 = vadd.f32 %v567, %v1746
        %v2944 = vadd.f32 %v568, %v2084
        %v2945 = vadd.f32 %v569, %v2422
        %v2946 = vadd.f32 %v570, %v2760
        %v2947 = vadd.f32 %v571, %v1748
        %v2948 = vadd.f32 %v572, %v2086
        %v2949 = vadd.f32 %v573, %v2424
        %v2950 = vadd.f32 %v574, %v2762
        %v2951 = vadd.f32 %v575, %v1751
        %v2952 = vadd.f32 %v576, %v2089
        %v2953 = vadd.f32 %v577, %v2427
        %v2954 = vadd.f32 %v578, %v2765
        %v2955 = vadd.f32 %v579, %v1753
        %v2956 = vadd.f32 %v580, %v2091
        %v2957 = vadd.f32 %v581, %v2429
        %v2958 = vadd.f32 %v582, %v2767
        %v2959 = vadd.f32 %v583, %v1756
        %v2960 = vadd.f32 %v584, %v2094
        %v2961 = vadd.f32 %v585, %v2432
        %v2962 = vadd.f32 %v586, %v2770
        %v2963 = vadd.f32 %v587, %v1758
        %v2964 = vadd.f32 %v588, %v2096
        %v2965 = vadd.f32 %v589, %v2434
        %v2966 = vadd.f32 %v590, %v2772
        %v2967 = vadd.f32 %v591, %v1761
        %v2968 = vadd.f32 %v592, %v2099
        %v2969 = vadd.f32 %v593, %v2437
        %v2970 = vadd.f32 %v594, %v2775
        %v2971 = vadd.f32 %v595, %v1763
        %v2972 = vadd.f32 %v596, %v2101
        %v2973 = vadd.f32 %v597, %v2439
        %v2974 = vadd.f32 %v598, %v2777
        %v2975 = vadd.f32 %v599, %v1766
        %v2976 = vadd.f32 %v600, %v2104
        %v2977 = vadd.f32 %v601, %v2442
        %v2978 = vadd.f32 %v602, %v2780
        %v2979 = vadd.f32 %v603, %v1768
        %v2980 = vadd.f32 %v604, %v2106
        %v2981 = vadd.f32 %v605, %v2444
        %v2982 = vadd.f32 %v606, %v2782
        %v2983 = vadd.f32 %v607, %v1771
        %v2984 = vadd.f32 %v608, %v2109
        %v2985 = vadd.f32 %v609, %v2447
        %v2986 = vadd.f32 %v610, %v2785
        %v2987 = vadd.f32 %v611, %v1773
        %v2988 = vadd.f32 %v612, %v2111
        %v2989 = vadd.f32 %v613, %v2449
        %v2990 = vadd.f32 %v614, %v2787
        %v2991 = vadd.f32 %v615, %v1776
        %v2992 = vadd.f32 %v616, %v2114
        %v2993 = vadd.f32 %v617, %v2452
        %v2994 = vadd.f32 %v618, %v2790
        %v2995 = vadd.f32 %v619, %v1778
        %v2996 = vadd.f32 %v620, %v2116
        %v2997 = vadd.f32 %v621, %v2454
        %v2998 = vadd.f32 %v622, %v2792
        %v2999 = vadd.f32 %v623, %v1781
        %v3000 = vadd.f32 %v624, %v2119
        %v3001 = vadd.f32 %v625, %v2457
        %v3002 = vadd.f32 %v626, %v2795
        %v3003 = vadd.f32 %v627, %v1783
        %v3004 = vadd.f32 %v628, %v2121
        %v3005 = vadd.f32 %v629, %v2459
        %v3006 = vadd.f32 %v630, %v2797
        %v3007 = vadd.f32 %v631, %v1786
        %v3008 = vadd.f32 %v632, %v2124
        %v3009 = vadd.f32 %v633, %v2462
        %v3010 = vadd.f32 %v634, %v2800
        %v3011 = vadd.f32 %v635, %v1788
        %v3012 = vadd.f32 %v636, %v2126
        %v3013 = vadd.f32 %v637, %v2464
        %v3014 = vadd.f32 %v638, %v2802
        %v3015 = vadd.f32 %v639, %v1791
        %v3016 = vadd.f32 %v640, %v2129
        %v3017 = vadd.f32 %v641, %v2467
        %v3018 = vadd.f32 %v642, %v2805
        %v3019 = vadd.f32 %v643, %v1793
        %v3020 = vadd.f32 %v644, %v2131
        %v3021 = vadd.f32 %v645, %v2469
        %v3022 = vadd.f32 %v646, %v2807
        %v3023 = vadd.f32 %v647, %v1796
        %v3024 = vadd.f32 %v648, %v2134
        %v3025 = vadd.f32 %v649, %v2472
        %v3026 = vadd.f32 %v650, %v2810
        %v3027 = vadd.f32 %v651, %v1798
        %v3028 = vadd.f32 %v652, %v2136
        %v3029 = vadd.f32 %v653, %v2474
        %v3030 = vadd.f32 %v654, %v2812
        %v3031 = vadd.f32 %v655, %v1801
        %v3032 = vadd.f32 %v656, %v2139
        %v3033 = vadd.f32 %v657, %v2477
        %v3034 = vadd.f32 %v658, %v2815
        %v3035 = vadd.f32 %v659, %v1803
        %v3036 = vadd.f32 %v660, %v2141
        %v3037 = vadd.f32 %v661, %v2479
        %v3038 = vadd.f32 %v662, %v2817
        %v3039 = vadd.f32 %v663, %v1806
        %v3040 = vadd.f32 %v664, %v2144
        %v3041 = vadd.f32 %v665, %v2482
        %v3042 = vadd.f32 %v666, %v2820
        %v3043 = vadd.f32 %v667, %v1808
        %v3044 = vadd.f32 %v668, %v2146
        %v3045 = vadd.f32 %v669, %v2484
        %v3046 = vadd.f32 %v670, %v2822
        %v3047 = vadd.f32 %v671, %v1811
        %v3048 = vadd.f32 %v672, %v2149
        %v3049 = vadd.f32 %v673, %v2487
        %v3050 = vadd.f32 %v674, %v2825
        %v3051 = vadd.f32 %v675, %v1813
        %v3052 = vadd.f32 %v676, %v2151
        %v3053 = vadd.f32 %v677, %v2489
        %v3054 = vadd.f32 %v678, %v2827
        %v3055 = vadd.f32 %v679, %v1816
        %v3056 = vadd.f32 %v680, %v2154
        %v3057 = vadd.f32 %v681, %v2492
        %v3058 = vadd.f32 %v682, %v2830
        %v3059 = vadd.f32 %v683, %v1818
        %v3060 = vadd.f32 %v684, %v2156
        %v3061 = vadd.f32 %v685, %v2494
        %v3062 = vadd.f32 %v686, %v2832
        %v3063 = vadd.f32 %v687, %v1821
        %v3064 = vadd.f32 %v688, %v2159
        %v3065 = vadd.f32 %v689, %v2497
        %v3066 = vadd.f32 %v690, %v2835
        %v3067 = vadd.f32 %v691, %v1823
        %v3068 = vadd.f32 %v692, %v2161
        %v3069 = vadd.f32 %v693, %v2499
        %v3070 = vadd.f32 %v694, %v2837
        %v3071 = vadd.f32 %v695, %v1826
        %v3072 = vadd.f32 %v696, %v2164
        %v3073 = vadd.f32 %v697, %v2502
        %v3074 = vadd.f32 %v698, %v2840
        %v3075 = vadd.f32 %v699, %v1828
        %v3076 = vadd.f32 %v700, %v2166
        %v3077 = vadd.f32 %v701, %v2504
        %v3078 = vadd.f32 %v702, %v2842
        %v3079 = vadd.f32 %v703, %v1831
        %v3080 = vadd.f32 %v704, %v2169
        %v3081 = vadd.f32 %v705, %v2507
        %v3082 = vadd.f32 %v706, %v2845
        %v3083 = vadd.f32 %v707, %v1833
        %v3084 = vadd.f32 %v708, %v2171
        %v3085 = vadd.f32 %v709, %v2509
        %v3086 = vadd.f32 %v710, %v2847
        %v3087 = vadd.f32 %v711, %v1836
        %v3088 = vadd.f32 %v712, %v2174
        %v3089 = vadd.f32 %v713, %v2512
        %v3090 = vadd.f32 %v714, %v2850
        %v3091 = vadd.f32 %v715, %v1838
        %v3092 = vadd.f32 %v716, %v2176
        %v3093 = vadd.f32 %v717, %v2514
        %v3094 = vadd.f32 %v718, %v2852
        %v3095 = vadd.f32 %v719, %v1841
        %v3096 = vadd.f32 %v720, %v2179
        %v3097 = vadd.f32 %v721, %v2517
        %v3098 = vadd.f32 %v722, %v2855
        %v3099 = vadd.f32 %v723, %v1843
        %v3100 = vadd.f32 %v724, %v2181
        %v3101 = vadd.f32 %v725, %v2519
        %v3102 = vadd.f32 %v726, %v2857
        %v3103 = vadd.f32 %v727, %v1846
        %v3104 = vadd.f32 %v728, %v2184
        %v3105 = vadd.f32 %v729, %v2522
        %v3106 = vadd.f32 %v730, %v2860
        %v3107 = vadd.f32 %v731, %v1848
        %v3108 = vadd.f32 %v732, %v2186
        %v3109 = vadd.f32 %v733, %v2524
        %v3110 = vadd.f32 %v734, %v2862
        %v3111 = vadd.f32 %v735, %v1851
        %v3112 = vadd.f32 %v736, %v2189
        %v3113 = vadd.f32 %v737, %v2527
        %v3114 = vadd.f32 %v738, %v2865
        %v3115 = vadd.f32 %v739, %v1853
        %v3116 = vadd.f32 %v740, %v2191
        %v3117 = vadd.f32 %v741, %v2529
        %v3118 = vadd.f32 %v742, %v2867
        %v3119 = vadd.f32 %v743, %v1856
        %v3120 = vadd.f32 %v744, %v2194
        %v3121 = vadd.f32 %v745, %v2532
        %v3122 = vadd.f32 %v746, %v2870
        %v3123 = vadd.f32 %v747, %v1858
        %v3124 = vadd.f32 %v748, %v2196
        %v3125 = vadd.f32 %v749, %v2534
        %v3126 = vadd.f32 %v750, %v2872
        %v3127 = vadd.f32 %v751, %v1861
        %v3128 = vadd.f32 %v752, %v2199
        %v3129 = vadd.f32 %v753, %v2537
        %v3130 = vadd.f32 %v754, %v2875
        %v3131 = vadd.f32 %v755, %v1863
        %v3132 = vadd.f32 %v756, %v2201
        %v3133 = vadd.f32 %v757, %v2539
        %v3134 = vadd.f32 %v758, %v2877
        %3135 = vst [vmem:[#allocation2] sm:$0xff] %v2879
        %3136 = vst [vmem:[#allocation2 + $0x8] sm:$0xff] %v2880
        %3137 = vst [vmem:[#allocation2 + $0x10] sm:$0xff] %v2881
        %3138 = vst [vmem:[#allocation2 + $0x18] sm:$0xff] %v2882
        %3139 = vst [vmem:[#allocation2 + $0x20] sm:$0xff] %v2883
        %3140 = vst [vmem:[#allocation2 + $0x28] sm:$0xff] %v2884
        %3141 = vst [vmem:[#allocation2 + $0x30] sm:$0xff] %v2885
        %3142 = vst [vmem:[#allocation2 + $0x38] sm:$0xff] %v2886
        %3143 = vst [vmem:[#allocation2 + $0x40] sm:$0xff] %v2887
        %3144 = vst [vmem:[#allocation2 + $0x48] sm:$0xff] %v2888
        %3145 = vst [vmem:[#allocation2 + $0x50] sm:$0xff] %v2889
        %3146 = vst [vmem:[#allocation2 + $0x58] sm:$0xff] %v2890
        %3147 = vst [vmem:[#allocation2 + $0x60] sm:$0xff] %v2891
        %3148 = vst [vmem:[#allocation2 + $0x68] sm:$0xff] %v2892
        %3149 = vst [vmem:[#allocation2 + $0x70] sm:$0xff] %v2893
        %3150 = vst [vmem:[#allocation2 + $0x78] sm:$0xff] %v2894
        %3151 = vst [vmem:[#allocation2 + $0x80] sm:$0xff] %v2895
        %3152 = vst [vmem:[#allocation2 + $0x88] sm:$0xff] %v2896
        %3153 = vst [vmem:[#allocation2 + $0x90] sm:$0xff] %v2897
        %3154 = vst [vmem:[#allocation2 + $0x98] sm:$0xff] %v2898
        %3155 = vst [vmem:[#allocation2 + $0xa0] sm:$0xff] %v2899
        %3156 = vst [vmem:[#allocation2 + $0xa8] sm:$0xff] %v2900
        %3157 = vst [vmem:[#allocation2 + $0xb0] sm:$0xff] %v2901
        %3158 = vst [vmem:[#allocation2 + $0xb8] sm:$0xff] %v2902
        %3159 = vst [vmem:[#allocation2 + $0xc0] sm:$0xff] %v2903
        %3160 = vst [vmem:[#allocation2 + $0xc8] sm:$0xff] %v2904
        %3161 = vst [vmem:[#allocation2 + $0xd0] sm:$0xff] %v2905
        %3162 = vst [vmem:[#allocation2 + $0xd8] sm:$0xff] %v2906
        %3163 = vst [vmem:[#allocation2 + $0xe0] sm:$0xff] %v2907
        %3164 = vst [vmem:[#allocation2 + $0xe8] sm:$0xff] %v2908
        %3165 = vst [vmem:[#allocation2 + $0xf0] sm:$0xff] %v2909
        %3166 = vst [vmem:[#allocation2 + $0xf8] sm:$0xff] %v2910
        %3167 = vst [vmem:[#allocation2 + $0x100] sm:$0xff] %v2911
        %3168 = vst [vmem:[#allocation2 + $0x108] sm:$0xff] %v2912
        %3169 = vst [vmem:[#allocation2 + $0x110] sm:$0xff] %v2913
        %3170 = vst [vmem:[#allocation2 + $0x118] sm:$0xff] %v2914
        %3171 = vst [vmem:[#allocation2 + $0x120] sm:$0xff] %v2915
        %3172 = vst [vmem:[#allocation2 + $0x128] sm:$0xff] %v2916
        %3173 = vst [vmem:[#allocation2 + $0x130] sm:$0xff] %v2917
        %3174 = vst [vmem:[#allocation2 + $0x138] sm:$0xff] %v2918
        %3175 = vst [vmem:[#allocation2 + $0x140] sm:$0xff] %v2919
        %3176 = vst [vmem:[#allocation2 + $0x148] sm:$0xff] %v2920
        %3177 = vst [vmem:[#allocation2 + $0x150] sm:$0xff] %v2921
        %3178 = vst [vmem:[#allocation2 + $0x158] sm:$0xff] %v2922
        %3179 = vst [vmem:[#allocation2 + $0x160] sm:$0xff] %v2923
        %3180 = vst [vmem:[#allocation2 + $0x168] sm:$0xff] %v2924
        %3181 = vst [vmem:[#allocation2 + $0x170] sm:$0xff] %v2925
        %3182 = vst [vmem:[#allocation2 + $0x178] sm:$0xff] %v2926
        %3183 = vst [vmem:[#allocation2 + $0x180] sm:$0xff] %v2927
        %3184 = vst [vmem:[#allocation2 + $0x188] sm:$0xff] %v2928
        %3185 = vst [vmem:[#allocation2 + $0x190] sm:$0xff] %v2929
        %3186 = vst [vmem:[#allocation2 + $0x198] sm:$0xff] %v2930
        %3187 = vst [vmem:[#allocation2 + $0x1a0] sm:$0xff] %v2931
        %3188 = vst [vmem:[#allocation2 + $0x1a8] sm:$0xff] %v2932
        %3189 = vst [vmem:[#allocation2 + $0x1b0] sm:$0xff] %v2933
        %3190 = vst [vmem:[#allocation2 + $0x1b8] sm:$0xff] %v2934
        %3191 = vst [vmem:[#allocation2 + $0x1c0] sm:$0xff] %v2935
        %3192 = vst [vmem:[#allocation2 + $0x1c8] sm:$0xff] %v2936
        %3193 = vst [vmem:[#allocation2 + $0x1d0] sm:$0xff] %v2937
        %3194 = vst [vmem:[#allocation2 + $0x1d8] sm:$0xff] %v2938
        %3195 = vst [vmem:[#allocation2 + $0x1e0] sm:$0xff] %v2939
        %3196 = vst [vmem:[#allocation2 + $0x1e8] sm:$0xff] %v2940
        %3197 = vst [vmem:[#allocation2 + $0x1f0] sm:$0xff] %v2941
        %3198 = vst [vmem:[#allocation2 + $0x1f8] sm:$0xff] %v2942
        %3199 = vst [vmem:[#allocation2 + $0x200] sm:$0xff] %v2943
        %3200 = vst [vmem:[#allocation2 + $0x208] sm:$0xff] %v2944
        %3201 = vst [vmem:[#allocation2 + $0x210] sm:$0xff] %v2945
        %3202 = vst [vmem:[#allocation2 + $0x218] sm:$0xff] %v2946
        %3203 = vst [vmem:[#allocation2 + $0x220] sm:$0xff] %v2947
        %3204 = vst [vmem:[#allocation2 + $0x228] sm:$0xff] %v2948
        %3205 = vst [vmem:[#allocation2 + $0x230] sm:$0xff] %v2949
        %3206 = vst [vmem:[#allocation2 + $0x238] sm:$0xff] %v2950
        %3207 = vst [vmem:[#allocation2 + $0x240] sm:$0xff] %v2951
        %3208 = vst [vmem:[#allocation2 + $0x248] sm:$0xff] %v2952
        %3209 = vst [vmem:[#allocation2 + $0x250] sm:$0xff] %v2953
        %3210 = vst [vmem:[#allocation2 + $0x258] sm:$0xff] %v2954
        %3211 = vst [vmem:[#allocation2 + $0x260] sm:$0xff] %v2955
        %3212 = vst [vmem:[#allocation2 + $0x268] sm:$0xff] %v2956
        %3213 = vst [vmem:[#allocation2 + $0x270] sm:$0xff] %v2957
        %3214 = vst [vmem:[#allocation2 + $0x278] sm:$0xff] %v2958
        %3215 = vst [vmem:[#allocation2 + $0x280] sm:$0xff] %v2959
        %3216 = vst [vmem:[#allocation2 + $0x288] sm:$0xff] %v2960
        %3217 = vst [vmem:[#allocation2 + $0x290] sm:$0xff] %v2961
        %3218 = vst [vmem:[#allocation2 + $0x298] sm:$0xff] %v2962
        %3219 = vst [vmem:[#allocation2 + $0x2a0] sm:$0xff] %v2963
        %3220 = vst [vmem:[#allocation2 + $0x2a8] sm:$0xff] %v2964
        %3221 = vst [vmem:[#allocation2 + $0x2b0] sm:$0xff] %v2965
        %3222 = vst [vmem:[#allocation2 + $0x2b8] sm:$0xff] %v2966
        %3223 = vst [vmem:[#allocation2 + $0x2c0] sm:$0xff] %v2967
        %3224 = vst [vmem:[#allocation2 + $0x2c8] sm:$0xff] %v2968
        %3225 = vst [vmem:[#allocation2 + $0x2d0] sm:$0xff] %v2969
        %3226 = vst [vmem:[#allocation2 + $0x2d8] sm:$0xff] %v2970
        %3227 = vst [vmem:[#allocation2 + $0x2e0] sm:$0xff] %v2971
        %3228 = vst [vmem:[#allocation2 + $0x2e8] sm:$0xff] %v2972
        %3229 = vst [vmem:[#allocation2 + $0x2f0] sm:$0xff] %v2973
        %3230 = vst [vmem:[#allocation2 + $0x2f8] sm:$0xff] %v2974
        %3231 = vst [vmem:[#allocation2 + $0x300] sm:$0xff] %v2975
        %3232 = vst [vmem:[#allocation2 + $0x308] sm:$0xff] %v2976
        %3233 = vst [vmem:[#allocation2 + $0x310] sm:$0xff] %v2977
        %3234 = vst [vmem:[#allocation2 + $0x318] sm:$0xff] %v2978
        %3235 = vst [vmem:[#allocation2 + $0x320] sm:$0xff] %v2979
        %3236 = vst [vmem:[#allocation2 + $0x328] sm:$0xff] %v2980
        %3237 = vst [vmem:[#allocation2 + $0x330] sm:$0xff] %v2981
        %3238 = vst [vmem:[#allocation2 + $0x338] sm:$0xff] %v2982
        %3239 = vst [vmem:[#allocation2 + $0x340] sm:$0xff] %v2983
        %3240 = vst [vmem:[#allocation2 + $0x348] sm:$0xff] %v2984
        %3241 = vst [vmem:[#allocation2 + $0x350] sm:$0xff] %v2985
        %3242 = vst [vmem:[#allocation2 + $0x358] sm:$0xff] %v2986
        %3243 = vst [vmem:[#allocation2 + $0x360] sm:$0xff] %v2987
        %3244 = vst [vmem:[#allocation2 + $0x368] sm:$0xff] %v2988
        %3245 = vst [vmem:[#allocation2 + $0x370] sm:$0xff] %v2989
        %3246 = vst [vmem:[#allocation2 + $0x378] sm:$0xff] %v2990
        %3247 = vst [vmem:[#allocation2 + $0x380] sm:$0xff] %v2991
        %3248 = vst [vmem:[#allocation2 + $0x388] sm:$0xff] %v2992
        %3249 = vst [vmem:[#allocation2 + $0x390] sm:$0xff] %v2993
        %3250 = vst [vmem:[#allocation2 + $0x398] sm:$0xff] %v2994
        %3251 = vst [vmem:[#allocation2 + $0x3a0] sm:$0xff] %v2995
        %3252 = vst [vmem:[#allocation2 + $0x3a8] sm:$0xff] %v2996
        %3253 = vst [vmem:[#allocation2 + $0x3b0] sm:$0xff] %v2997
        %3254 = vst [vmem:[#allocation2 + $0x3b8] sm:$0xff] %v2998
        %3255 = vst [vmem:[#allocation2 + $0x3c0] sm:$0xff] %v2999
        %3256 = vst [vmem:[#allocation2 + $0x3c8] sm:$0xff] %v3000
        %3257 = vst [vmem:[#allocation2 + $0x3d0] sm:$0xff] %v3001
        %3258 = vst [vmem:[#allocation2 + $0x3d8] sm:$0xff] %v3002
        %3259 = vst [vmem:[#allocation2 + $0x3e0] sm:$0xff] %v3003
        %3260 = vst [vmem:[#allocation2 + $0x3e8] sm:$0xff] %v3004
        %3261 = vst [vmem:[#allocation2 + $0x3f0] sm:$0xff] %v3005
        %3262 = vst [vmem:[#allocation2 + $0x3f8] sm:$0xff] %v3006
        %3263 = vst [vmem:[#allocation2 + $0x400] sm:$0xff] %v3007
        %3264 = vst [vmem:[#allocation2 + $0x408] sm:$0xff] %v3008
        %3265 = vst [vmem:[#allocation2 + $0x410] sm:$0xff] %v3009
        %3266 = vst [vmem:[#allocation2 + $0x418] sm:$0xff] %v3010
        %3267 = vst [vmem:[#allocation2 + $0x420] sm:$0xff] %v3011
        %3268 = vst [vmem:[#allocation2 + $0x428] sm:$0xff] %v3012
        %3269 = vst [vmem:[#allocation2 + $0x430] sm:$0xff] %v3013
        %3270 = vst [vmem:[#allocation2 + $0x438] sm:$0xff] %v3014
        %3271 = vst [vmem:[#allocation2 + $0x440] sm:$0xff] %v3015
        %3272 = vst [vmem:[#allocation2 + $0x448] sm:$0xff] %v3016
        %3273 = vst [vmem:[#allocation2 + $0x450] sm:$0xff] %v3017
        %3274 = vst [vmem:[#allocation2 + $0x458] sm:$0xff] %v3018
        %3275 = vst [vmem:[#allocation2 + $0x460] sm:$0xff] %v3019
        %3276 = vst [vmem:[#allocation2 + $0x468] sm:$0xff] %v3020
        %3277 = vst [vmem:[#allocation2 + $0x470] sm:$0xff] %v3021
        %3278 = vst [vmem:[#allocation2 + $0x478] sm:$0xff] %v3022
        %3279 = vst [vmem:[#allocation2 + $0x480] sm:$0xff] %v3023
        %3280 = vst [vmem:[#allocation2 + $0x488] sm:$0xff] %v3024
        %3281 = vst [vmem:[#allocation2 + $0x490] sm:$0xff] %v3025
        %3282 = vst [vmem:[#allocation2 + $0x498] sm:$0xff] %v3026
        %3283 = vst [vmem:[#allocation2 + $0x4a0] sm:$0xff] %v3027
        %3284 = vst [vmem:[#allocation2 + $0x4a8] sm:$0xff] %v3028
        %3285 = vst [vmem:[#allocation2 + $0x4b0] sm:$0xff] %v3029
        %3286 = vst [vmem:[#allocation2 + $0x4b8] sm:$0xff] %v3030
        %3287 = vst [vmem:[#allocation2 + $0x4c0] sm:$0xff] %v3031
        %3288 = vst [vmem:[#allocation2 + $0x4c8] sm:$0xff] %v3032
        %3289 = vst [vmem:[#allocation2 + $0x4d0] sm:$0xff] %v3033
        %3290 = vst [vmem:[#allocation2 + $0x4d8] sm:$0xff] %v3034
        %3291 = vst [vmem:[#allocation2 + $0x4e0] sm:$0xff] %v3035
        %3292 = vst [vmem:[#allocation2 + $0x4e8] sm:$0xff] %v3036
        %3293 = vst [vmem:[#allocation2 + $0x4f0] sm:$0xff] %v3037
        %3294 = vst [vmem:[#allocation2 + $0x4f8] sm:$0xff] %v3038
        %3295 = vst [vmem:[#allocation2 + $0x500] sm:$0xff] %v3039
        %3296 = vst [vmem:[#allocation2 + $0x508] sm:$0xff] %v3040
        %3297 = vst [vmem:[#allocation2 + $0x510] sm:$0xff] %v3041
        %3298 = vst [vmem:[#allocation2 + $0x518] sm:$0xff] %v3042
        %3299 = vst [vmem:[#allocation2 + $0x520] sm:$0xff] %v3043
        %3300 = vst [vmem:[#allocation2 + $0x528] sm:$0xff] %v3044
        %3301 = vst [vmem:[#allocation2 + $0x530] sm:$0xff] %v3045
        %3302 = vst [vmem:[#allocation2 + $0x538] sm:$0xff] %v3046
        %3303 = vst [vmem:[#allocation2 + $0x540] sm:$0xff] %v3047
        %3304 = vst [vmem:[#allocation2 + $0x548] sm:$0xff] %v3048
        %3305 = vst [vmem:[#allocation2 + $0x550] sm:$0xff] %v3049
        %3306 = vst [vmem:[#allocation2 + $0x558] sm:$0xff] %v3050
        %3307 = vst [vmem:[#allocation2 + $0x560] sm:$0xff] %v3051
        %3308 = vst [vmem:[#allocation2 + $0x568] sm:$0xff] %v3052
        %3309 = vst [vmem:[#allocation2 + $0x570] sm:$0xff] %v3053
        %3310 = vst [vmem:[#allocation2 + $0x578] sm:$0xff] %v3054
        %3311 = vst [vmem:[#allocation2 + $0x580] sm:$0xff] %v3055
        %3312 = vst [vmem:[#allocation2 + $0x588] sm:$0xff] %v3056
        %3313 = vst [vmem:[#allocation2 + $0x590] sm:$0xff] %v3057
        %3314 = vst [vmem:[#allocation2 + $0x598] sm:$0xff] %v3058
        %3315 = vst [vmem:[#allocation2 + $0x5a0] sm:$0xff] %v3059
        %3316 = vst [vmem:[#allocation2 + $0x5a8] sm:$0xff] %v3060
        %3317 = vst [vmem:[#allocation2 + $0x5b0] sm:$0xff] %v3061
        %3318 = vst [vmem:[#allocation2 + $0x5b8] sm:$0xff] %v3062
        %3319 = vst [vmem:[#allocation2 + $0x5c0] sm:$0xff] %v3063
        %3320 = vst [vmem:[#allocation2 + $0x5c8] sm:$0xff] %v3064
        %3321 = vst [vmem:[#allocation2 + $0x5d0] sm:$0xff] %v3065
        %3322 = vst [vmem:[#allocation2 + $0x5d8] sm:$0xff] %v3066
        %3323 = vst [vmem:[#allocation2 + $0x5e0] sm:$0xff] %v3067
        %3324 = vst [vmem:[#allocation2 + $0x5e8] sm:$0xff] %v3068
        %3325 = vst [vmem:[#allocation2 + $0x5f0] sm:$0xff] %v3069
        %3326 = vst [vmem:[#allocation2 + $0x5f8] sm:$0xff] %v3070
        %3327 = vst [vmem:[#allocation2 + $0x600] sm:$0xff] %v3071
        %3328 = vst [vmem:[#allocation2 + $0x608] sm:$0xff] %v3072
        %3329 = vst [vmem:[#allocation2 + $0x610] sm:$0xff] %v3073
        %3330 = vst [vmem:[#allocation2 + $0x618] sm:$0xff] %v3074
        %3331 = vst [vmem:[#allocation2 + $0x620] sm:$0xff] %v3075
        %3332 = vst [vmem:[#allocation2 + $0x628] sm:$0xff] %v3076
        %3333 = vst [vmem:[#allocation2 + $0x630] sm:$0xff] %v3077
        %3334 = vst [vmem:[#allocation2 + $0x638] sm:$0xff] %v3078
        %3335 = vst [vmem:[#allocation2 + $0x640] sm:$0xff] %v3079
        %3336 = vst [vmem:[#allocation2 + $0x648] sm:$0xff] %v3080
        %3337 = vst [vmem:[#allocation2 + $0x650] sm:$0xff] %v3081
        %3338 = vst [vmem:[#allocation2 + $0x658] sm:$0xff] %v3082
        %3339 = vst [vmem:[#allocation2 + $0x660] sm:$0xff] %v3083
        %3340 = vst [vmem:[#allocation2 + $0x668] sm:$0xff] %v3084
        %3341 = vst [vmem:[#allocation2 + $0x670] sm:$0xff] %v3085
        %3342 = vst [vmem:[#allocation2 + $0x678] sm:$0xff] %v3086
        %3343 = vst [vmem:[#allocation2 + $0x680] sm:$0xff] %v3087
        %3344 = vst [vmem:[#allocation2 + $0x688] sm:$0xff] %v3088
        %3345 = vst [vmem:[#allocation2 + $0x690] sm:$0xff] %v3089
        %3346 = vst [vmem:[#allocation2 + $0x698] sm:$0xff] %v3090
        %3347 = vst [vmem:[#allocation2 + $0x6a0] sm:$0xff] %v3091
        %3348 = vst [vmem:[#allocation2 + $0x6a8] sm:$0xff] %v3092
        %3349 = vst [vmem:[#allocation2 + $0x6b0] sm:$0xff] %v3093
        %3350 = vst [vmem:[#allocation2 + $0x6b8] sm:$0xff] %v3094
        %3351 = vst [vmem:[#allocation2 + $0x6c0] sm:$0xff] %v3095
        %3352 = vst [vmem:[#allocation2 + $0x6c8] sm:$0xff] %v3096
        %3353 = vst [vmem:[#allocation2 + $0x6d0] sm:$0xff] %v3097
        %3354 = vst [vmem:[#allocation2 + $0x6d8] sm:$0xff] %v3098
        %3355 = vst [vmem:[#allocation2 + $0x6e0] sm:$0xff] %v3099
        %3356 = vst [vmem:[#allocation2 + $0x6e8] sm:$0xff] %v3100
        %3357 = vst [vmem:[#allocation2 + $0x6f0] sm:$0xff] %v3101
        %3358 = vst [vmem:[#allocation2 + $0x6f8] sm:$0xff] %v3102
        %3359 = vst [vmem:[#allocation2 + $0x700] sm:$0xff] %v3103
        %3360 = vst [vmem:[#allocation2 + $0x708] sm:$0xff] %v3104
        %3361 = vst [vmem:[#allocation2 + $0x710] sm:$0xff] %v3105
        %3362 = vst [vmem:[#allocation2 + $0x718] sm:$0xff] %v3106
        %3363 = vst [vmem:[#allocation2 + $0x720] sm:$0xff] %v3107
        %3364 = vst [vmem:[#allocation2 + $0x728] sm:$0xff] %v3108
        %3365 = vst [vmem:[#allocation2 + $0x730] sm:$0xff] %v3109
        %3366 = vst [vmem:[#allocation2 + $0x738] sm:$0xff] %v3110
        %3367 = vst [vmem:[#allocation2 + $0x740] sm:$0xff] %v3111
        %3368 = vst [vmem:[#allocation2 + $0x748] sm:$0xff] %v3112
        %3369 = vst [vmem:[#allocation2 + $0x750] sm:$0xff] %v3113
        %3370 = vst [vmem:[#allocation2 + $0x758] sm:$0xff] %v3114
        %3371 = vst [vmem:[#allocation2 + $0x760] sm:$0xff] %v3115
        %3372 = vst [vmem:[#allocation2 + $0x768] sm:$0xff] %v3116
        %3373 = vst [vmem:[#allocation2 + $0x770] sm:$0xff] %v3117
        %3374 = vst [vmem:[#allocation2 + $0x778] sm:$0xff] %v3118
        %3375 = vst [vmem:[#allocation2 + $0x780] sm:$0xff] %v3119
        %3376 = vst [vmem:[#allocation2 + $0x788] sm:$0xff] %v3120
        %3377 = vst [vmem:[#allocation2 + $0x790] sm:$0xff] %v3121
        %3378 = vst [vmem:[#allocation2 + $0x798] sm:$0xff] %v3122
        %3379 = vst [vmem:[#allocation2 + $0x7a0] sm:$0xff] %v3123
        %3380 = vst [vmem:[#allocation2 + $0x7a8] sm:$0xff] %v3124
        %3381 = vst [vmem:[#allocation2 + $0x7b0] sm:$0xff] %v3125
        %3382 = vst [vmem:[#allocation2 + $0x7b8] sm:$0xff] %v3126
        %3383 = vst [vmem:[#allocation2 + $0x7c0] sm:$0xff] %v3127
        %3384 = vst [vmem:[#allocation2 + $0x7c8] sm:$0xff] %v3128
        %3385 = vst [vmem:[#allocation2 + $0x7d0] sm:$0xff] %v3129
        %3386 = vst [vmem:[#allocation2 + $0x7d8] sm:$0xff] %v3130
        %3387 = vst [vmem:[#allocation2 + $0x7e0] sm:$0xff] %v3131
        %3388 = vst [vmem:[#allocation2 + $0x7e8] sm:$0xff] %v3132
        %3389 = vst [vmem:[#allocation2 + $0x7f0] sm:$0xff] %v3133
        %3390 = vst [vmem:[#allocation2 + $0x7f8] sm:$0xff] %v3134
        // Predicated region
        $region41: #{tpu_custom_call.1} parent=27 // pred_check
          %p3391 = pneg %p243
        $region42: #{tpu_custom_call.1} parent=27 // pred_check_branch
          %3393 = sbr.rel (%p3391) target = $region44
        $region43: #{tpu_custom_call.1} parent=27 // pred_region
          %v3394 = vld [vmem:[#allocation2] sm:$0xff]
          %v3395 = vld [vmem:[#allocation2 + $0x8] sm:$0xff]
          %v3396 = vld [vmem:[#allocation2 + $0x10] sm:$0xff]
          %v3397 = vld [vmem:[#allocation2 + $0x18] sm:$0xff]
          %v3398 = vld [vmem:[#allocation2 + $0x20] sm:$0xff]
          %v3399 = vld [vmem:[#allocation2 + $0x28] sm:$0xff]
          %v3400 = vld [vmem:[#allocation2 + $0x30] sm:$0xff]
          %v3401 = vld [vmem:[#allocation2 + $0x38] sm:$0xff]
          %v3402 = vld [vmem:[#allocation2 + $0x40] sm:$0xff]
          %v3403 = vld [vmem:[#allocation2 + $0x48] sm:$0xff]
          %v3404 = vld [vmem:[#allocation2 + $0x50] sm:$0xff]
          %v3405 = vld [vmem:[#allocation2 + $0x58] sm:$0xff]
          %v3406 = vld [vmem:[#allocation2 + $0x60] sm:$0xff]
          %v3407 = vld [vmem:[#allocation2 + $0x68] sm:$0xff]
          %v3408 = vld [vmem:[#allocation2 + $0x70] sm:$0xff]
          %v3409 = vld [vmem:[#allocation2 + $0x78] sm:$0xff]
          %v3410 = vld [vmem:[#allocation2 + $0x80] sm:$0xff]
          %v3411 = vld [vmem:[#allocation2 + $0x88] sm:$0xff]
          %v3412 = vld [vmem:[#allocation2 + $0x90] sm:$0xff]
          %v3413 = vld [vmem:[#allocation2 + $0x98] sm:$0xff]
          %v3414 = vld [vmem:[#allocation2 + $0xa0] sm:$0xff]
          %v3415 = vld [vmem:[#allocation2 + $0xa8] sm:$0xff]
          %v3416 = vld [vmem:[#allocation2 + $0xb0] sm:$0xff]
          %v3417 = vld [vmem:[#allocation2 + $0xb8] sm:$0xff]
          %v3418 = vld [vmem:[#allocation2 + $0xc0] sm:$0xff]
          %v3419 = vld [vmem:[#allocation2 + $0xc8] sm:$0xff]
          %v3420 = vld [vmem:[#allocation2 + $0xd0] sm:$0xff]
          %v3421 = vld [vmem:[#allocation2 + $0xd8] sm:$0xff]
          %v3422 = vld [vmem:[#allocation2 + $0xe0] sm:$0xff]
          %v3423 = vld [vmem:[#allocation2 + $0xe8] sm:$0xff]
          %v3424 = vld [vmem:[#allocation2 + $0xf0] sm:$0xff]
          %v3425 = vld [vmem:[#allocation2 + $0xf8] sm:$0xff]
          %v3426 = vld [vmem:[#allocation2 + $0x100] sm:$0xff]
          %v3427 = vld [vmem:[#allocation2 + $0x108] sm:$0xff]
          %v3428 = vld [vmem:[#allocation2 + $0x110] sm:$0xff]
          %v3429 = vld [vmem:[#allocation2 + $0x118] sm:$0xff]
          %v3430 = vld [vmem:[#allocation2 + $0x120] sm:$0xff]
          %v3431 = vld [vmem:[#allocation2 + $0x128] sm:$0xff]
          %v3432 = vld [vmem:[#allocation2 + $0x130] sm:$0xff]
          %v3433 = vld [vmem:[#allocation2 + $0x138] sm:$0xff]
          %v3434 = vld [vmem:[#allocation2 + $0x140] sm:$0xff]
          %v3435 = vld [vmem:[#allocation2 + $0x148] sm:$0xff]
          %v3436 = vld [vmem:[#allocation2 + $0x150] sm:$0xff]
          %v3437 = vld [vmem:[#allocation2 + $0x158] sm:$0xff]
          %v3438 = vld [vmem:[#allocation2 + $0x160] sm:$0xff]
          %v3439 = vld [vmem:[#allocation2 + $0x168] sm:$0xff]
          %v3440 = vld [vmem:[#allocation2 + $0x170] sm:$0xff]
          %v3441 = vld [vmem:[#allocation2 + $0x178] sm:$0xff]
          %v3442 = vld [vmem:[#allocation2 + $0x180] sm:$0xff]
          %v3443 = vld [vmem:[#allocation2 + $0x188] sm:$0xff]
          %v3444 = vld [vmem:[#allocation2 + $0x190] sm:$0xff]
          %v3445 = vld [vmem:[#allocation2 + $0x198] sm:$0xff]
          %v3446 = vld [vmem:[#allocation2 + $0x1a0] sm:$0xff]
          %v3447 = vld [vmem:[#allocation2 + $0x1a8] sm:$0xff]
          %v3448 = vld [vmem:[#allocation2 + $0x1b0] sm:$0xff]
          %v3449 = vld [vmem:[#allocation2 + $0x1b8] sm:$0xff]
          %v3450 = vld [vmem:[#allocation2 + $0x1c0] sm:$0xff]
          %v3451 = vld [vmem:[#allocation2 + $0x1c8] sm:$0xff]
          %v3452 = vld [vmem:[#allocation2 + $0x1d0] sm:$0xff]
          %v3453 = vld [vmem:[#allocation2 + $0x1d8] sm:$0xff]
          %v3454 = vld [vmem:[#allocation2 + $0x1e0] sm:$0xff]
          %v3455 = vld [vmem:[#allocation2 + $0x1e8] sm:$0xff]
          %v3456 = vld [vmem:[#allocation2 + $0x1f0] sm:$0xff]
          %v3457 = vld [vmem:[#allocation2 + $0x1f8] sm:$0xff]
          %v3458 = vld [vmem:[#allocation2 + $0x200] sm:$0xff]
          %v3459 = vld [vmem:[#allocation2 + $0x208] sm:$0xff]
          %v3460 = vld [vmem:[#allocation2 + $0x210] sm:$0xff]
          %v3461 = vld [vmem:[#allocation2 + $0x218] sm:$0xff]
          %v3462 = vld [vmem:[#allocation2 + $0x220] sm:$0xff]
          %v3463 = vld [vmem:[#allocation2 + $0x228] sm:$0xff]
          %v3464 = vld [vmem:[#allocation2 + $0x230] sm:$0xff]
          %v3465 = vld [vmem:[#allocation2 + $0x238] sm:$0xff]
          %v3466 = vld [vmem:[#allocation2 + $0x240] sm:$0xff]
          %v3467 = vld [vmem:[#allocation2 + $0x248] sm:$0xff]
          %v3468 = vld [vmem:[#allocation2 + $0x250] sm:$0xff]
          %v3469 = vld [vmem:[#allocation2 + $0x258] sm:$0xff]
          %v3470 = vld [vmem:[#allocation2 + $0x260] sm:$0xff]
          %v3471 = vld [vmem:[#allocation2 + $0x268] sm:$0xff]
          %v3472 = vld [vmem:[#allocation2 + $0x270] sm:$0xff]
          %v3473 = vld [vmem:[#allocation2 + $0x278] sm:$0xff]
          %v3474 = vld [vmem:[#allocation2 + $0x280] sm:$0xff]
          %v3475 = vld [vmem:[#allocation2 + $0x288] sm:$0xff]
          %v3476 = vld [vmem:[#allocation2 + $0x290] sm:$0xff]
          %v3477 = vld [vmem:[#allocation2 + $0x298] sm:$0xff]
          %v3478 = vld [vmem:[#allocation2 + $0x2a0] sm:$0xff]
          %v3479 = vld [vmem:[#allocation2 + $0x2a8] sm:$0xff]
          %v3480 = vld [vmem:[#allocation2 + $0x2b0] sm:$0xff]
          %v3481 = vld [vmem:[#allocation2 + $0x2b8] sm:$0xff]
          %v3482 = vld [vmem:[#allocation2 + $0x2c0] sm:$0xff]
          %v3483 = vld [vmem:[#allocation2 + $0x2c8] sm:$0xff]
          %v3484 = vld [vmem:[#allocation2 + $0x2d0] sm:$0xff]
          %v3485 = vld [vmem:[#allocation2 + $0x2d8] sm:$0xff]
          %v3486 = vld [vmem:[#allocation2 + $0x2e0] sm:$0xff]
          %v3487 = vld [vmem:[#allocation2 + $0x2e8] sm:$0xff]
          %v3488 = vld [vmem:[#allocation2 + $0x2f0] sm:$0xff]
          %v3489 = vld [vmem:[#allocation2 + $0x2f8] sm:$0xff]
          %v3490 = vld [vmem:[#allocation2 + $0x300] sm:$0xff]
          %v3491 = vld [vmem:[#allocation2 + $0x308] sm:$0xff]
          %v3492 = vld [vmem:[#allocation2 + $0x310] sm:$0xff]
          %v3493 = vld [vmem:[#allocation2 + $0x318] sm:$0xff]
          %v3494 = vld [vmem:[#allocation2 + $0x320] sm:$0xff]
          %v3495 = vld [vmem:[#allocation2 + $0x328] sm:$0xff]
          %v3496 = vld [vmem:[#allocation2 + $0x330] sm:$0xff]
          %v3497 = vld [vmem:[#allocation2 + $0x338] sm:$0xff]
          %v3498 = vld [vmem:[#allocation2 + $0x340] sm:$0xff]
          %v3499 = vld [vmem:[#allocation2 + $0x348] sm:$0xff]
          %v3500 = vld [vmem:[#allocation2 + $0x350] sm:$0xff]
          %v3501 = vld [vmem:[#allocation2 + $0x358] sm:$0xff]
          %v3502 = vld [vmem:[#allocation2 + $0x360] sm:$0xff]
          %v3503 = vld [vmem:[#allocation2 + $0x368] sm:$0xff]
          %v3504 = vld [vmem:[#allocation2 + $0x370] sm:$0xff]
          %v3505 = vld [vmem:[#allocation2 + $0x378] sm:$0xff]
          %v3506 = vld [vmem:[#allocation2 + $0x380] sm:$0xff]
          %v3507 = vld [vmem:[#allocation2 + $0x388] sm:$0xff]
          %v3508 = vld [vmem:[#allocation2 + $0x390] sm:$0xff]
          %v3509 = vld [vmem:[#allocation2 + $0x398] sm:$0xff]
          %v3510 = vld [vmem:[#allocation2 + $0x3a0] sm:$0xff]
          %v3511 = vld [vmem:[#allocation2 + $0x3a8] sm:$0xff]
          %v3512 = vld [vmem:[#allocation2 + $0x3b0] sm:$0xff]
          %v3513 = vld [vmem:[#allocation2 + $0x3b8] sm:$0xff]
          %v3514 = vld [vmem:[#allocation2 + $0x3c0] sm:$0xff]
          %v3515 = vld [vmem:[#allocation2 + $0x3c8] sm:$0xff]
          %v3516 = vld [vmem:[#allocation2 + $0x3d0] sm:$0xff]
          %v3517 = vld [vmem:[#allocation2 + $0x3d8] sm:$0xff]
          %v3518 = vld [vmem:[#allocation2 + $0x3e0] sm:$0xff]
          %v3519 = vld [vmem:[#allocation2 + $0x3e8] sm:$0xff]
          %v3520 = vld [vmem:[#allocation2 + $0x3f0] sm:$0xff]
          %v3521 = vld [vmem:[#allocation2 + $0x3f8] sm:$0xff]
          %v3522 = vld [vmem:[#allocation2 + $0x400] sm:$0xff]
          %v3523 = vld [vmem:[#allocation2 + $0x408] sm:$0xff]
          %v3524 = vld [vmem:[#allocation2 + $0x410] sm:$0xff]
          %v3525 = vld [vmem:[#allocation2 + $0x418] sm:$0xff]
          %v3526 = vld [vmem:[#allocation2 + $0x420] sm:$0xff]
          %v3527 = vld [vmem:[#allocation2 + $0x428] sm:$0xff]
          %v3528 = vld [vmem:[#allocation2 + $0x430] sm:$0xff]
          %v3529 = vld [vmem:[#allocation2 + $0x438] sm:$0xff]
          %v3530 = vld [vmem:[#allocation2 + $0x440] sm:$0xff]
          %v3531 = vld [vmem:[#allocation2 + $0x448] sm:$0xff]
          %v3532 = vld [vmem:[#allocation2 + $0x450] sm:$0xff]
          %v3533 = vld [vmem:[#allocation2 + $0x458] sm:$0xff]
          %v3534 = vld [vmem:[#allocation2 + $0x460] sm:$0xff]
          %v3535 = vld [vmem:[#allocation2 + $0x468] sm:$0xff]
          %v3536 = vld [vmem:[#allocation2 + $0x470] sm:$0xff]
          %v3537 = vld [vmem:[#allocation2 + $0x478] sm:$0xff]
          %v3538 = vld [vmem:[#allocation2 + $0x480] sm:$0xff]
          %v3539 = vld [vmem:[#allocation2 + $0x488] sm:$0xff]
          %v3540 = vld [vmem:[#allocation2 + $0x490] sm:$0xff]
          %v3541 = vld [vmem:[#allocation2 + $0x498] sm:$0xff]
          %v3542 = vld [vmem:[#allocation2 + $0x4a0] sm:$0xff]
          %v3543 = vld [vmem:[#allocation2 + $0x4a8] sm:$0xff]
          %v3544 = vld [vmem:[#allocation2 + $0x4b0] sm:$0xff]
          %v3545 = vld [vmem:[#allocation2 + $0x4b8] sm:$0xff]
          %v3546 = vld [vmem:[#allocation2 + $0x4c0] sm:$0xff]
          %v3547 = vld [vmem:[#allocation2 + $0x4c8] sm:$0xff]
          %v3548 = vld [vmem:[#allocation2 + $0x4d0] sm:$0xff]
          %v3549 = vld [vmem:[#allocation2 + $0x4d8] sm:$0xff]
          %v3550 = vld [vmem:[#allocation2 + $0x4e0] sm:$0xff]
          %v3551 = vld [vmem:[#allocation2 + $0x4e8] sm:$0xff]
          %v3552 = vld [vmem:[#allocation2 + $0x4f0] sm:$0xff]
          %v3553 = vld [vmem:[#allocation2 + $0x4f8] sm:$0xff]
          %v3554 = vld [vmem:[#allocation2 + $0x500] sm:$0xff]
          %v3555 = vld [vmem:[#allocation2 + $0x508] sm:$0xff]
          %v3556 = vld [vmem:[#allocation2 + $0x510] sm:$0xff]
          %v3557 = vld [vmem:[#allocation2 + $0x518] sm:$0xff]
          %v3558 = vld [vmem:[#allocation2 + $0x520] sm:$0xff]
          %v3559 = vld [vmem:[#allocation2 + $0x528] sm:$0xff]
          %v3560 = vld [vmem:[#allocation2 + $0x530] sm:$0xff]
          %v3561 = vld [vmem:[#allocation2 + $0x538] sm:$0xff]
          %v3562 = vld [vmem:[#allocation2 + $0x540] sm:$0xff]
          %v3563 = vld [vmem:[#allocation2 + $0x548] sm:$0xff]
          %v3564 = vld [vmem:[#allocation2 + $0x550] sm:$0xff]
          %v3565 = vld [vmem:[#allocation2 + $0x558] sm:$0xff]
          %v3566 = vld [vmem:[#allocation2 + $0x560] sm:$0xff]
          %v3567 = vld [vmem:[#allocation2 + $0x568] sm:$0xff]
          %v3568 = vld [vmem:[#allocation2 + $0x570] sm:$0xff]
          %v3569 = vld [vmem:[#allocation2 + $0x578] sm:$0xff]
          %v3570 = vld [vmem:[#allocation2 + $0x580] sm:$0xff]
          %v3571 = vld [vmem:[#allocation2 + $0x588] sm:$0xff]
          %v3572 = vld [vmem:[#allocation2 + $0x590] sm:$0xff]
          %v3573 = vld [vmem:[#allocation2 + $0x598] sm:$0xff]
          %v3574 = vld [vmem:[#allocation2 + $0x5a0] sm:$0xff]
          %v3575 = vld [vmem:[#allocation2 + $0x5a8] sm:$0xff]
          %v3576 = vld [vmem:[#allocation2 + $0x5b0] sm:$0xff]
          %v3577 = vld [vmem:[#allocation2 + $0x5b8] sm:$0xff]
          %v3578 = vld [vmem:[#allocation2 + $0x5c0] sm:$0xff]
          %v3579 = vld [vmem:[#allocation2 + $0x5c8] sm:$0xff]
          %v3580 = vld [vmem:[#allocation2 + $0x5d0] sm:$0xff]
          %v3581 = vld [vmem:[#allocation2 + $0x5d8] sm:$0xff]
          %v3582 = vld [vmem:[#allocation2 + $0x5e0] sm:$0xff]
          %v3583 = vld [vmem:[#allocation2 + $0x5e8] sm:$0xff]
          %v3584 = vld [vmem:[#allocation2 + $0x5f0] sm:$0xff]
          %v3585 = vld [vmem:[#allocation2 + $0x5f8] sm:$0xff]
          %v3586 = vld [vmem:[#allocation2 + $0x600] sm:$0xff]
          %v3587 = vld [vmem:[#allocation2 + $0x608] sm:$0xff]
          %v3588 = vld [vmem:[#allocation2 + $0x610] sm:$0xff]
          %v3589 = vld [vmem:[#allocation2 + $0x618] sm:$0xff]
          %v3590 = vld [vmem:[#allocation2 + $0x620] sm:$0xff]
          %v3591 = vld [vmem:[#allocation2 + $0x628] sm:$0xff]
          %v3592 = vld [vmem:[#allocation2 + $0x630] sm:$0xff]
          %v3593 = vld [vmem:[#allocation2 + $0x638] sm:$0xff]
          %v3594 = vld [vmem:[#allocation2 + $0x640] sm:$0xff]
          %v3595 = vld [vmem:[#allocation2 + $0x648] sm:$0xff]
          %v3596 = vld [vmem:[#allocation2 + $0x650] sm:$0xff]
          %v3597 = vld [vmem:[#allocation2 + $0x658] sm:$0xff]
          %v3598 = vld [vmem:[#allocation2 + $0x660] sm:$0xff]
          %v3599 = vld [vmem:[#allocation2 + $0x668] sm:$0xff]
          %v3600 = vld [vmem:[#allocation2 + $0x670] sm:$0xff]
          %v3601 = vld [vmem:[#allocation2 + $0x678] sm:$0xff]
          %v3602 = vld [vmem:[#allocation2 + $0x680] sm:$0xff]
          %v3603 = vld [vmem:[#allocation2 + $0x688] sm:$0xff]
          %v3604 = vld [vmem:[#allocation2 + $0x690] sm:$0xff]
          %v3605 = vld [vmem:[#allocation2 + $0x698] sm:$0xff]
          %v3606 = vld [vmem:[#allocation2 + $0x6a0] sm:$0xff]
          %v3607 = vld [vmem:[#allocation2 + $0x6a8] sm:$0xff]
          %v3608 = vld [vmem:[#allocation2 + $0x6b0] sm:$0xff]
          %v3609 = vld [vmem:[#allocation2 + $0x6b8] sm:$0xff]
          %v3610 = vld [vmem:[#allocation2 + $0x6c0] sm:$0xff]
          %v3611 = vld [vmem:[#allocation2 + $0x6c8] sm:$0xff]
          %v3612 = vld [vmem:[#allocation2 + $0x6d0] sm:$0xff]
          %v3613 = vld [vmem:[#allocation2 + $0x6d8] sm:$0xff]
          %v3614 = vld [vmem:[#allocation2 + $0x6e0] sm:$0xff]
          %v3615 = vld [vmem:[#allocation2 + $0x6e8] sm:$0xff]
          %v3616 = vld [vmem:[#allocation2 + $0x6f0] sm:$0xff]
          %v3617 = vld [vmem:[#allocation2 + $0x6f8] sm:$0xff]
          %v3618 = vld [vmem:[#allocation2 + $0x700] sm:$0xff]
          %v3619 = vld [vmem:[#allocation2 + $0x708] sm:$0xff]
          %v3620 = vld [vmem:[#allocation2 + $0x710] sm:$0xff]
          %v3621 = vld [vmem:[#allocation2 + $0x718] sm:$0xff]
          %v3622 = vld [vmem:[#allocation2 + $0x720] sm:$0xff]
          %v3623 = vld [vmem:[#allocation2 + $0x728] sm:$0xff]
          %v3624 = vld [vmem:[#allocation2 + $0x730] sm:$0xff]
          %v3625 = vld [vmem:[#allocation2 + $0x738] sm:$0xff]
          %v3626 = vld [vmem:[#allocation2 + $0x740] sm:$0xff]
          %v3627 = vld [vmem:[#allocation2 + $0x748] sm:$0xff]
          %v3628 = vld [vmem:[#allocation2 + $0x750] sm:$0xff]
          %v3629 = vld [vmem:[#allocation2 + $0x758] sm:$0xff]
          %v3630 = vld [vmem:[#allocation2 + $0x760] sm:$0xff]
          %v3631 = vld [vmem:[#allocation2 + $0x768] sm:$0xff]
          %v3632 = vld [vmem:[#allocation2 + $0x770] sm:$0xff]
          %v3633 = vld [vmem:[#allocation2 + $0x778] sm:$0xff]
          %v3634 = vld [vmem:[#allocation2 + $0x780] sm:$0xff]
          %v3635 = vld [vmem:[#allocation2 + $0x788] sm:$0xff]
          %v3636 = vld [vmem:[#allocation2 + $0x790] sm:$0xff]
          %v3637 = vld [vmem:[#allocation2 + $0x798] sm:$0xff]
          %v3638 = vld [vmem:[#allocation2 + $0x7a0] sm:$0xff]
          %v3639 = vld [vmem:[#allocation2 + $0x7a8] sm:$0xff]
          %v3640 = vld [vmem:[#allocation2 + $0x7b0] sm:$0xff]
          %v3641 = vld [vmem:[#allocation2 + $0x7b8] sm:$0xff]
          %v3642 = vld [vmem:[#allocation2 + $0x7c0] sm:$0xff]
          %v3643 = vld [vmem:[#allocation2 + $0x7c8] sm:$0xff]
          %v3644 = vld [vmem:[#allocation2 + $0x7d0] sm:$0xff]
          %v3645 = vld [vmem:[#allocation2 + $0x7d8] sm:$0xff]
          %v3646 = vld [vmem:[#allocation2 + $0x7e0] sm:$0xff]
          %v3647 = vld [vmem:[#allocation2 + $0x7e8] sm:$0xff]
          %v3648 = vld [vmem:[#allocation2 + $0x7f0] sm:$0xff]
          %v3649 = vld [vmem:[#allocation2 + $0x7f8] sm:$0xff]
          %v3650 = vpack.c.bf16 %v3395, %v3394
          %v3651 = vpack.c.bf16 %v3397, %v3396
          %v3652 = vpack.c.bf16 %v3399, %v3398
          %v3653 = vpack.c.bf16 %v3401, %v3400
          %v3654 = vpack.c.bf16 %v3403, %v3402
          %v3655 = vpack.c.bf16 %v3405, %v3404
          %v3656 = vpack.c.bf16 %v3407, %v3406
          %v3657 = vpack.c.bf16 %v3409, %v3408
          %v3658 = vpack.c.bf16 %v3411, %v3410
          %v3659 = vpack.c.bf16 %v3413, %v3412
          %v3660 = vpack.c.bf16 %v3415, %v3414
          %v3661 = vpack.c.bf16 %v3417, %v3416
          %v3662 = vpack.c.bf16 %v3419, %v3418
          %v3663 = vpack.c.bf16 %v3421, %v3420
          %v3664 = vpack.c.bf16 %v3423, %v3422
          %v3665 = vpack.c.bf16 %v3425, %v3424
          %v3666 = vpack.c.bf16 %v3427, %v3426
          %v3667 = vpack.c.bf16 %v3429, %v3428
          %v3668 = vpack.c.bf16 %v3431, %v3430
          %v3669 = vpack.c.bf16 %v3433, %v3432
          %v3670 = vpack.c.bf16 %v3435, %v3434
          %v3671 = vpack.c.bf16 %v3437, %v3436
          %v3672 = vpack.c.bf16 %v3439, %v3438
          %v3673 = vpack.c.bf16 %v3441, %v3440
          %v3674 = vpack.c.bf16 %v3443, %v3442
          %v3675 = vpack.c.bf16 %v3445, %v3444
          %v3676 = vpack.c.bf16 %v3447, %v3446
          %v3677 = vpack.c.bf16 %v3449, %v3448
          %v3678 = vpack.c.bf16 %v3451, %v3450
          %v3679 = vpack.c.bf16 %v3453, %v3452
          %v3680 = vpack.c.bf16 %v3455, %v3454
          %v3681 = vpack.c.bf16 %v3457, %v3456
          %v3682 = vpack.c.bf16 %v3459, %v3458
          %v3683 = vpack.c.bf16 %v3461, %v3460
          %v3684 = vpack.c.bf16 %v3463, %v3462
          %v3685 = vpack.c.bf16 %v3465, %v3464
          %v3686 = vpack.c.bf16 %v3467, %v3466
          %v3687 = vpack.c.bf16 %v3469, %v3468
          %v3688 = vpack.c.bf16 %v3471, %v3470
          %v3689 = vpack.c.bf16 %v3473, %v3472
          %v3690 = vpack.c.bf16 %v3475, %v3474
          %v3691 = vpack.c.bf16 %v3477, %v3476
          %v3692 = vpack.c.bf16 %v3479, %v3478
          %v3693 = vpack.c.bf16 %v3481, %v3480
          %v3694 = vpack.c.bf16 %v3483, %v3482
          %v3695 = vpack.c.bf16 %v3485, %v3484
          %v3696 = vpack.c.bf16 %v3487, %v3486
          %v3697 = vpack.c.bf16 %v3489, %v3488
          %v3698 = vpack.c.bf16 %v3491, %v3490
          %v3699 = vpack.c.bf16 %v3493, %v3492
          %v3700 = vpack.c.bf16 %v3495, %v3494
          %v3701 = vpack.c.bf16 %v3497, %v3496
          %v3702 = vpack.c.bf16 %v3499, %v3498
          %v3703 = vpack.c.bf16 %v3501, %v3500
          %v3704 = vpack.c.bf16 %v3503, %v3502
          %v3705 = vpack.c.bf16 %v3505, %v3504
          %v3706 = vpack.c.bf16 %v3507, %v3506
          %v3707 = vpack.c.bf16 %v3509, %v3508
          %v3708 = vpack.c.bf16 %v3511, %v3510
          %v3709 = vpack.c.bf16 %v3513, %v3512
          %v3710 = vpack.c.bf16 %v3515, %v3514
          %v3711 = vpack.c.bf16 %v3517, %v3516
          %v3712 = vpack.c.bf16 %v3519, %v3518
          %v3713 = vpack.c.bf16 %v3521, %v3520
          %v3714 = vpack.c.bf16 %v3523, %v3522
          %v3715 = vpack.c.bf16 %v3525, %v3524
          %v3716 = vpack.c.bf16 %v3527, %v3526
          %v3717 = vpack.c.bf16 %v3529, %v3528
          %v3718 = vpack.c.bf16 %v3531, %v3530
          %v3719 = vpack.c.bf16 %v3533, %v3532
          %v3720 = vpack.c.bf16 %v3535, %v3534
          %v3721 = vpack.c.bf16 %v3537, %v3536
          %v3722 = vpack.c.bf16 %v3539, %v3538
          %v3723 = vpack.c.bf16 %v3541, %v3540
          %v3724 = vpack.c.bf16 %v3543, %v3542
          %v3725 = vpack.c.bf16 %v3545, %v3544
          %v3726 = vpack.c.bf16 %v3547, %v3546
          %v3727 = vpack.c.bf16 %v3549, %v3548
          %v3728 = vpack.c.bf16 %v3551, %v3550
          %v3729 = vpack.c.bf16 %v3553, %v3552
          %v3730 = vpack.c.bf16 %v3555, %v3554
          %v3731 = vpack.c.bf16 %v3557, %v3556
          %v3732 = vpack.c.bf16 %v3559, %v3558
          %v3733 = vpack.c.bf16 %v3561, %v3560
          %v3734 = vpack.c.bf16 %v3563, %v3562
          %v3735 = vpack.c.bf16 %v3565, %v3564
          %v3736 = vpack.c.bf16 %v3567, %v3566
          %v3737 = vpack.c.bf16 %v3569, %v3568
          %v3738 = vpack.c.bf16 %v3571, %v3570
          %v3739 = vpack.c.bf16 %v3573, %v3572
          %v3740 = vpack.c.bf16 %v3575, %v3574
          %v3741 = vpack.c.bf16 %v3577, %v3576
          %v3742 = vpack.c.bf16 %v3579, %v3578
          %v3743 = vpack.c.bf16 %v3581, %v3580
          %v3744 = vpack.c.bf16 %v3583, %v3582
          %v3745 = vpack.c.bf16 %v3585, %v3584
          %v3746 = vpack.c.bf16 %v3587, %v3586
          %v3747 = vpack.c.bf16 %v3589, %v3588
          %v3748 = vpack.c.bf16 %v3591, %v3590
          %v3749 = vpack.c.bf16 %v3593, %v3592
          %v3750 = vpack.c.bf16 %v3595, %v3594
          %v3751 = vpack.c.bf16 %v3597, %v3596
          %v3752 = vpack.c.bf16 %v3599, %v3598
          %v3753 = vpack.c.bf16 %v3601, %v3600
          %v3754 = vpack.c.bf16 %v3603, %v3602
          %v3755 = vpack.c.bf16 %v3605, %v3604
          %v3756 = vpack.c.bf16 %v3607, %v3606
          %v3757 = vpack.c.bf16 %v3609, %v3608
          %v3758 = vpack.c.bf16 %v3611, %v3610
          %v3759 = vpack.c.bf16 %v3613, %v3612
          %v3760 = vpack.c.bf16 %v3615, %v3614
          %v3761 = vpack.c.bf16 %v3617, %v3616
          %v3762 = vpack.c.bf16 %v3619, %v3618
          %v3763 = vpack.c.bf16 %v3621, %v3620
          %v3764 = vpack.c.bf16 %v3623, %v3622
          %v3765 = vpack.c.bf16 %v3625, %v3624
          %v3766 = vpack.c.bf16 %v3627, %v3626
          %v3767 = vpack.c.bf16 %v3629, %v3628
          %v3768 = vpack.c.bf16 %v3631, %v3630
          %v3769 = vpack.c.bf16 %v3633, %v3632
          %v3770 = vpack.c.bf16 %v3635, %v3634
          %v3771 = vpack.c.bf16 %v3637, %v3636
          %v3772 = vpack.c.bf16 %v3639, %v3638
          %v3773 = vpack.c.bf16 %v3641, %v3640
          %v3774 = vpack.c.bf16 %v3643, %v3642
          %v3775 = vpack.c.bf16 %v3645, %v3644
          %v3776 = vpack.c.bf16 %v3647, %v3646
          %v3777 = vpack.c.bf16 %v3649, %v3648
          %3778 = vst [vmem:[%s236] sm:$0xff] %v3650
          %3779 = vst [vmem:[%s236 + $0x8] sm:$0xff] %v3651
          %3780 = vst [vmem:[%s236 + $0x10] sm:$0xff] %v3652
          %3781 = vst [vmem:[%s236 + $0x18] sm:$0xff] %v3653
          %3782 = vst [vmem:[%s236 + $0x20] sm:$0xff] %v3654
          %3783 = vst [vmem:[%s236 + $0x28] sm:$0xff] %v3655
          %3784 = vst [vmem:[%s236 + $0x30] sm:$0xff] %v3656
          %3785 = vst [vmem:[%s236 + $0x38] sm:$0xff] %v3657
          %3786 = vst [vmem:[%s236 + $0x40] sm:$0xff] %v3658
          %3787 = vst [vmem:[%s236 + $0x48] sm:$0xff] %v3659
          %3788 = vst [vmem:[%s236 + $0x50] sm:$0xff] %v3660
          %3789 = vst [vmem:[%s236 + $0x58] sm:$0xff] %v3661
          %3790 = vst [vmem:[%s236 + $0x60] sm:$0xff] %v3662
          %3791 = vst [vmem:[%s236 + $0x68] sm:$0xff] %v3663
          %3792 = vst [vmem:[%s236 + $0x70] sm:$0xff] %v3664
          %3793 = vst [vmem:[%s236 + $0x78] sm:$0xff] %v3665
          %3794 = vst [vmem:[%s236 + $0x80] sm:$0xff] %v3666
          %3795 = vst [vmem:[%s236 + $0x88] sm:$0xff] %v3667
          %3796 = vst [vmem:[%s236 + $0x90] sm:$0xff] %v3668
          %3797 = vst [vmem:[%s236 + $0x98] sm:$0xff] %v3669
          %3798 = vst [vmem:[%s236 + $0xa0] sm:$0xff] %v3670
          %3799 = vst [vmem:[%s236 + $0xa8] sm:$0xff] %v3671
          %3800 = vst [vmem:[%s236 + $0xb0] sm:$0xff] %v3672
          %3801 = vst [vmem:[%s236 + $0xb8] sm:$0xff] %v3673
          %3802 = vst [vmem:[%s236 + $0xc0] sm:$0xff] %v3674
          %3803 = vst [vmem:[%s236 + $0xc8] sm:$0xff] %v3675
          %3804 = vst [vmem:[%s236 + $0xd0] sm:$0xff] %v3676
          %3805 = vst [vmem:[%s236 + $0xd8] sm:$0xff] %v3677
          %3806 = vst [vmem:[%s236 + $0xe0] sm:$0xff] %v3678
          %3807 = vst [vmem:[%s236 + $0xe8] sm:$0xff] %v3679
          %3808 = vst [vmem:[%s236 + $0xf0] sm:$0xff] %v3680
          %3809 = vst [vmem:[%s236 + $0xf8] sm:$0xff] %v3681
          %3810 = vst [vmem:[%s236 + $0x100] sm:$0xff] %v3682
          %3811 = vst [vmem:[%s236 + $0x108] sm:$0xff] %v3683
          %3812 = vst [vmem:[%s236 + $0x110] sm:$0xff] %v3684
          %3813 = vst [vmem:[%s236 + $0x118] sm:$0xff] %v3685
          %3814 = vst [vmem:[%s236 + $0x120] sm:$0xff] %v3686
          %3815 = vst [vmem:[%s236 + $0x128] sm:$0xff] %v3687
          %3816 = vst [vmem:[%s236 + $0x130] sm:$0xff] %v3688
          %3817 = vst [vmem:[%s236 + $0x138] sm:$0xff] %v3689
          %3818 = vst [vmem:[%s236 + $0x140] sm:$0xff] %v3690
          %3819 = vst [vmem:[%s236 + $0x148] sm:$0xff] %v3691
          %3820 = vst [vmem:[%s236 + $0x150] sm:$0xff] %v3692
          %3821 = vst [vmem:[%s236 + $0x158] sm:$0xff] %v3693
          %3822 = vst [vmem:[%s236 + $0x160] sm:$0xff] %v3694
          %3823 = vst [vmem:[%s236 + $0x168] sm:$0xff] %v3695
          %3824 = vst [vmem:[%s236 + $0x170] sm:$0xff] %v3696
          %3825 = vst [vmem:[%s236 + $0x178] sm:$0xff] %v3697
          %3826 = vst [vmem:[%s236 + $0x180] sm:$0xff] %v3698
          %3827 = vst [vmem:[%s236 + $0x188] sm:$0xff] %v3699
          %3828 = vst [vmem:[%s236 + $0x190] sm:$0xff] %v3700
          %3829 = vst [vmem:[%s236 + $0x198] sm:$0xff] %v3701
          %3830 = vst [vmem:[%s236 + $0x1a0] sm:$0xff] %v3702
          %3831 = vst [vmem:[%s236 + $0x1a8] sm:$0xff] %v3703
          %3832 = vst [vmem:[%s236 + $0x1b0] sm:$0xff] %v3704
          %3833 = vst [vmem:[%s236 + $0x1b8] sm:$0xff] %v3705
          %3834 = vst [vmem:[%s236 + $0x1c0] sm:$0xff] %v3706
          %3835 = vst [vmem:[%s236 + $0x1c8] sm:$0xff] %v3707
          %3836 = vst [vmem:[%s236 + $0x1d0] sm:$0xff] %v3708
          %3837 = vst [vmem:[%s236 + $0x1d8] sm:$0xff] %v3709
          %3838 = vst [vmem:[%s236 + $0x1e0] sm:$0xff] %v3710
          %3839 = vst [vmem:[%s236 + $0x1e8] sm:$0xff] %v3711
          %3840 = vst [vmem:[%s236 + $0x1f0] sm:$0xff] %v3712
          %3841 = vst [vmem:[%s236 + $0x1f8] sm:$0xff] %v3713
          %3842 = vst [vmem:[%s236 + $0x200] sm:$0xff] %v3714
          %3843 = vst [vmem:[%s236 + $0x208] sm:$0xff] %v3715
          %3844 = vst [vmem:[%s236 + $0x210] sm:$0xff] %v3716
          %3845 = vst [vmem:[%s236 + $0x218] sm:$0xff] %v3717
          %3846 = vst [vmem:[%s236 + $0x220] sm:$0xff] %v3718
          %3847 = vst [vmem:[%s236 + $0x228] sm:$0xff] %v3719
          %3848 = vst [vmem:[%s236 + $0x230] sm:$0xff] %v3720
          %3849 = vst [vmem:[%s236 + $0x238] sm:$0xff] %v3721
          %3850 = vst [vmem:[%s236 + $0x240] sm:$0xff] %v3722
          %3851 = vst [vmem:[%s236 + $0x248] sm:$0xff] %v3723
          %3852 = vst [vmem:[%s236 + $0x250] sm:$0xff] %v3724
          %3853 = vst [vmem:[%s236 + $0x258] sm:$0xff] %v3725
          %3854 = vst [vmem:[%s236 + $0x260] sm:$0xff] %v3726
          %3855 = vst [vmem:[%s236 + $0x268] sm:$0xff] %v3727
          %3856 = vst [vmem:[%s236 + $0x270] sm:$0xff] %v3728
          %3857 = vst [vmem:[%s236 + $0x278] sm:$0xff] %v3729
          %3858 = vst [vmem:[%s236 + $0x280] sm:$0xff] %v3730
          %3859 = vst [vmem:[%s236 + $0x288] sm:$0xff] %v3731
          %3860 = vst [vmem:[%s236 + $0x290] sm:$0xff] %v3732
          %3861 = vst [vmem:[%s236 + $0x298] sm:$0xff] %v3733
          %3862 = vst [vmem:[%s236 + $0x2a0] sm:$0xff] %v3734
          %3863 = vst [vmem:[%s236 + $0x2a8] sm:$0xff] %v3735
          %3864 = vst [vmem:[%s236 + $0x2b0] sm:$0xff] %v3736
          %3865 = vst [vmem:[%s236 + $0x2b8] sm:$0xff] %v3737
          %3866 = vst [vmem:[%s236 + $0x2c0] sm:$0xff] %v3738
          %3867 = vst [vmem:[%s236 + $0x2c8] sm:$0xff] %v3739
          %3868 = vst [vmem:[%s236 + $0x2d0] sm:$0xff] %v3740
          %3869 = vst [vmem:[%s236 + $0x2d8] sm:$0xff] %v3741
          %3870 = vst [vmem:[%s236 + $0x2e0] sm:$0xff] %v3742
          %3871 = vst [vmem:[%s236 + $0x2e8] sm:$0xff] %v3743
          %3872 = vst [vmem:[%s236 + $0x2f0] sm:$0xff] %v3744
          %3873 = vst [vmem:[%s236 + $0x2f8] sm:$0xff] %v3745
          %3874 = vst [vmem:[%s236 + $0x300] sm:$0xff] %v3746
          %3875 = vst [vmem:[%s236 + $0x308] sm:$0xff] %v3747
          %3876 = vst [vmem:[%s236 + $0x310] sm:$0xff] %v3748
          %3877 = vst [vmem:[%s236 + $0x318] sm:$0xff] %v3749
          %3878 = vst [vmem:[%s236 + $0x320] sm:$0xff] %v3750
          %3879 = vst [vmem:[%s236 + $0x328] sm:$0xff] %v3751
          %3880 = vst [vmem:[%s236 + $0x330] sm:$0xff] %v3752
          %3881 = vst [vmem:[%s236 + $0x338] sm:$0xff] %v3753
          %3882 = vst [vmem:[%s236 + $0x340] sm:$0xff] %v3754
          %3883 = vst [vmem:[%s236 + $0x348] sm:$0xff] %v3755
          %3884 = vst [vmem:[%s236 + $0x350] sm:$0xff] %v3756
          %3885 = vst [vmem:[%s236 + $0x358] sm:$0xff] %v3757
          %3886 = vst [vmem:[%s236 + $0x360] sm:$0xff] %v3758
          %3887 = vst [vmem:[%s236 + $0x368] sm:$0xff] %v3759
          %3888 = vst [vmem:[%s236 + $0x370] sm:$0xff] %v3760
          %3889 = vst [vmem:[%s236 + $0x378] sm:$0xff] %v3761
          %3890 = vst [vmem:[%s236 + $0x380] sm:$0xff] %v3762
          %3891 = vst [vmem:[%s236 + $0x388] sm:$0xff] %v3763
          %3892 = vst [vmem:[%s236 + $0x390] sm:$0xff] %v3764
          %3893 = vst [vmem:[%s236 + $0x398] sm:$0xff] %v3765
          %3894 = vst [vmem:[%s236 + $0x3a0] sm:$0xff] %v3766
          %3895 = vst [vmem:[%s236 + $0x3a8] sm:$0xff] %v3767
          %3896 = vst [vmem:[%s236 + $0x3b0] sm:$0xff] %v3768
          %3897 = vst [vmem:[%s236 + $0x3b8] sm:$0xff] %v3769
          %3898 = vst [vmem:[%s236 + $0x3c0] sm:$0xff] %v3770
          %3899 = vst [vmem:[%s236 + $0x3c8] sm:$0xff] %v3771
          %3900 = vst [vmem:[%s236 + $0x3d0] sm:$0xff] %v3772
          %3901 = vst [vmem:[%s236 + $0x3d8] sm:$0xff] %v3773
          %3902 = vst [vmem:[%s236 + $0x3e0] sm:$0xff] %v3774
          %3903 = vst [vmem:[%s236 + $0x3e8] sm:$0xff] %v3775
          %3904 = vst [vmem:[%s236 + $0x3f0] sm:$0xff] %v3776
          %3905 = vst [vmem:[%s236 + $0x3f8] sm:$0xff] %v3777
        $region44: #{tpu_custom_call.1} parent=27 // pred_fallthru
          _
        %s3906 = sand.u32 %s107, 1
        %s3907 = scalar_lea.sflag [#allocation5], %s3906
        %s3908 = sand.u32 %s107, 1
        %s3909 = smul.addr %s3908, 1024
        %s3910 = scalar_lea.vmem [#allocation8], %s3909
        // Predicated region
        $region45: #{tpu_custom_call.1} parent=27 // pred_check
          %p3911 = pneg %p117
        $region46: #{tpu_custom_call.1} parent=27 // pred_check_branch
          %3913 = sbr.rel (%p3911) target = $region48
        $region47: #{tpu_custom_call.1} parent=27 // pred_region
          %s3914 = smul.u32 64, %s27
          %s3915 = smul.u32 4, %s28
          %3917 = vsyncadd %s3907, 0
          %s3918 = smul.addr %s3914, 8
          %s3919 = sadd.s32 %s3915, %s3918
          %s3920 = smul.addr %s3919, 4
          %s3921 = scalar_lea.hbm %s2, %s3920
          %s3922 = sshll.u32 %s3910, 4
          %s3923 = int_to_ptr.vmem [resolvable:$true] %s3922
          %s3924 = sshll.u32 %s3921, 4
          %s3925 = int_to_ptr.hbm [resolvable:$true] %s3924
          %3930 = dma.vmem_to_hbm [thread:$0]  %s3923, 16384, %s3925, %s3907, 256, 512, 16
        $region48: #{tpu_custom_call.1} parent=27 // pred_fallthru
          _
      $region28: #{tpu_custom_call.1} parent=5 // pred_fallthru
        _
      %p3931 = scmp.le.s32.totalorder 2, %s17
      // Predicated region
      $region49: #{tpu_custom_call.1} parent=5 // pred_check
        %p3932 = pneg %p3931
      $region50: #{tpu_custom_call.1} parent=5 // pred_check_branch
        %3934 = sbr.rel (%p3932) target = $region52
      $region51: #{tpu_custom_call.1} parent=5 // pred_region
        %s3935 = ssub.s32 %s17, 2
        // Predicated region
        $region53: #{tpu_custom_call.1} parent=51 // pred_check
          %p3936 = pneg %p123
        $region54: #{tpu_custom_call.1} parent=51 // pred_check_branch
          %3938 = sbr.rel (%p3936) target = $region56
        $region55: #{tpu_custom_call.1} parent=51 // pred_region
          %s3939 = sand.u32 %s108, 1
          %s3940 = scalar_lea.sflag [#allocation5], %s3939
          %s3941 = sand.u32 %s108, 1
          %s3942 = smul.addr %s3941, 1024
          %s3943 = scalar_lea.vmem [#allocation8], %s3942
          %3945 = dma.done %s3940, 16384
        $region56: #{tpu_custom_call.1} parent=51 // pred_fallthru
          _
      $region52: #{tpu_custom_call.1} parent=5 // pred_fallthru
        _
    $region6: #{tpu_custom_call.1} parent=1 // loop_footer
      %s21 = sadd.s32 1, %s17
    $region7: #{tpu_custom_call.1} parent=1 // loop_footer_branch
      %16 = sbr.rel target = $region3
    $region8: #{tpu_custom_call.1} parent=1 // loop_exit
      _
    %3946 = vsyncpa [#allocation4], 1
    %s3947 = scalar_lea.sflag [#allocation4], 1
    %3948 = vsyncpa %s3947, 1
    %3949 = vsyncpa [#allocation7], 1
    %s3950 = scalar_lea.sflag [#allocation7], 1
    %3951 = vsyncpa %s3950, 1
    %3952 = vsyncpa [#allocation5], 1
    %s3953 = scalar_lea.sflag [#allocation5], 1
    %3954 = vsyncpa %s3953, 1

</llo_original>
